<compile_context>
chip_gen: v7x
topology: tpu7x:2x2x1
jax: 0.10.0
libtpu: 0.0.40
codegen_flags: <defaults>
</compile_context>

<pallas_src>
import functools

import numpy as np
import jax
import jax.numpy as jnp
from jax.experimental import pallas as pl
from jax.experimental.pallas import tpu as pltpu

NEG = -1.0e20  # score_mask_value


def _round_up(x, m):
    return (x + m - 1) // m * m


# ---------------------------------------------------------------------------
# Pallas kernel: AttentionV2 forward for a block of Bblk batch rows.
# ---------------------------------------------------------------------------
def attention_v2_kernel(q_ref,       # (Bblk, R)        query, f32
                        feats_ref,   # (Bblk, Tp, 2K)   im2col'd location-conv input, f32
                        mem_ref,     # (Bblk, Tp, Ep)   memory, bf16
                        pmem_ref,    # (Bblk, Tp, A)    processed memory, bf16
                        mask_ref,    # (Bblk, Tp)       float {0,1} mask (1 == padded), f32
                        la_ref,      # (Bblk, Tp)       log_alpha (padded with NEG), f32
                        wq_ref,      # (R, A)           query_layer weight (transposed)
                        wloc_ref,    # (2K, A)          folded conv*dense location weight
                        v_ref,       # (1, A)           v weight (row)
                        ctx_ref,     # (Bblk, Ep)       attention context out
                        attw_ref,    # (Bblk, Tp)       attention weights out
                        la_new_ref): # (Bblk, Tp)       new log_alpha out
    Bblk, Tp, A = pmem_ref.shape
    CK = feats_ref.shape[-1]
    neg = jnp.float32(NEG)

    # ---- processed_query = query_layer(query)  : (Bblk, A) ----
    pq = jnp.dot(q_ref[...], wq_ref[...], preferred_element_type=jnp.float32)

    # ---- location path: single folded matmul  (Bblk*Tp, 2K) @ (2K, A) ----
    feats = feats_ref[...].reshape(Bblk * Tp, CK)
    loc = jnp.dot(feats, wloc_ref[...], preferred_element_type=jnp.float32)
    loc = loc.reshape(Bblk, Tp, A)

    # ---- energies = <v, tanh(pq + loc + processed_memory)>  (VPU mul + lane reduce) ----
    h = jnp.tanh(pq[:, None, :] + loc + pmem_ref[...].astype(jnp.float32))   # (Bblk, Tp, A)
    energies = jnp.sum(h * v_ref[...].astype(jnp.float32), axis=-1)          # (Bblk, Tp)

    # ---- mask fill (padded time positions were pre-set to mask=1 in the wrapper) ----
    log_energy = jnp.where(mask_ref[...] > 0.5, neg, energies)               # (Bblk, Tp)

    # ---- forward-attention recursion: logaddexp(log_alpha, shift-by-1(log_alpha)) ----
    la = la_ref[...]                                                          # (Bblk, Tp)
    t_idx = jax.lax.broadcasted_iota(jnp.int32, (Bblk, Tp), 1)
    la_prev = jnp.where(t_idx == 0, neg, pltpu.roll(la, shift=1, axis=1))
    m = jnp.maximum(la, la_prev)
    biased = m + jnp.log(1.0 + jnp.exp(-jnp.abs(la - la_prev)))               # single exp
    la_new = biased + log_energy                                              # (Bblk, Tp)

    # ---- softmax over time (lane axis) ----
    mx = jnp.max(la_new, axis=1, keepdims=True)
    p = jnp.exp(la_new - mx)
    s = jnp.sum(p, axis=1, keepdims=True)
    inv = pl.reciprocal(s, approx=True)
    inv = inv * (2.0 - s * inv)            # one Newton step -> full f32 accuracy, EUP does the heavy op
    attw = p * inv                                                            # (Bblk, Tp)

    # ---- attention context = attw @ memory  (batched matvec on the MXU; f32 accumulate) ----
    mem = mem_ref[...].astype(jnp.float32)                                    # bf16 in HBM, f32 math
    ctx = jnp.einsum('bqt,bte->bqe', attw[:, None, :], mem,
                     preferred_element_type=jnp.float32)[:, 0, :]             # (Bblk, Ep)

    ctx_ref[...] = ctx
    attw_ref[...] = attw
    la_new_ref[...] = la_new


# ---------------------------------------------------------------------------
# Wrapper: padding, im2col, weight folding, BlockSpecs.
# ---------------------------------------------------------------------------
@functools.partial(jax.jit, static_argnames=("kernel_size", "block_b"))
def attention_v2(query, memory, processed_memory, attention_weights_cat, mask,
                 log_alpha, wq_t, wconv, wdense_t, v_t, *, kernel_size, block_b=8):
    B, T, E = memory.shape
    A = processed_memory.shape[-1]
    R = query.shape[-1]
    K = kernel_size
    P = (K - 1) // 2
    f32 = jnp.float32

    Bblk = block_b
    Bp = _round_up(B, Bblk)          # batch padded to a multiple of the batch block
    Tp = _round_up(T, 128)           # lane-dense time axis
    Ep = _round_up(E, 128)           # lane-dense embedding axis

    # ---- batch/time padding + dtype policy (bf16 for the big memory operands) ----
    q = jnp.zeros((Bp, R), f32).at[:B].set(query.astype(f32))
    mem = jnp.zeros((Bp, Tp, Ep), jnp.bfloat16).at[:B, :T, :E].set(memory.astype(jnp.bfloat16))
    pmem = jnp.zeros((Bp, Tp, A), jnp.bfloat16).at[:B, :T].set(
        processed_memory.astype(jnp.bfloat16))
    maskf = jnp.ones((Bp, Tp), f32).at[:B, :T].set(mask.astype(f32))     # padded => masked
    la = jnp.full((Bp, Tp), NEG, f32).at[:B, :T].set(log_alpha.astype(f32))

    # ---- im2col of the location-conv input: feats[b, t, k*2 + c] = x_pad[b, c, t + k] ----
    aw = jnp.zeros((Bp, 2, Tp), f32).at[:B, :, :T].set(attention_weights_cat.astype(f32))
    awp = jnp.pad(aw, ((0, 0), (0, 0), (P, P)))                          # (Bp, 2, Tp + 2P)
    wins = jnp.stack([awp[:, :, k:k + Tp] for k in range(K)], axis=-1)   # (Bp, 2, Tp, K)
    feats = wins.transpose(0, 2, 3, 1).reshape(Bp, Tp, 2 * K)            # (Bp, Tp, 2K)

    # ---- fold location conv with location dense: W_loc[(k,c), a] = sum_f conv[k,c,f]*dense[f,a] ----
    wloc = jnp.einsum('kcf,fa->kca', wconv.astype(f32),
                      wdense_t.astype(f32)).reshape(2 * K, A)
    wq = wq_t.astype(f32)
    v_row = v_t.astype(f32).reshape(1, A)

    grid = (Bp // Bblk,)

    out_shapes = (
        jax.ShapeDtypeStruct((Bp, Ep), f32),   # context
        jax.ShapeDtypeStruct((Bp, Tp), f32),   # attention weights
        jax.ShapeDtypeStruct((Bp, Tp), f32),   # new log_alpha
    )

    b2 = lambda shp: pl.BlockSpec(shp, lambda i: (i, 0))
    b3 = lambda shp: pl.BlockSpec(shp, lambda i: (i, 0, 0))
    shared = lambda shp: pl.BlockSpec(shp, lambda i: (0, 0))

    ctx, attw, la_new = pl.pallas_call(
        attention_v2_kernel,
        out_shape=out_shapes,
        grid=grid,
        in_specs=[
            b2((Bblk, R)),            # query
            b3((Bblk, Tp, 2 * K)),    # im2col location features
            b3((Bblk, Tp, Ep)),       # memory (bf16)
            b3((Bblk, Tp, A)),        # processed memory (bf16)
            b2((Bblk, Tp)),           # mask
            b2((Bblk, Tp)),           # log_alpha
            shared((R, A)),           # wq
            shared((2 * K, A)),       # folded location weight
            shared((1, A)),           # v row
        ],
        out_specs=[
            b2((Bblk, Ep)),
            b2((Bblk, Tp)),
            b2((Bblk, Tp)),
        ],
        compiler_params=pltpu.CompilerParams(dimension_semantics=("parallel",)),
    )(q, feats, mem, pmem, maskf, la, wq, wloc, v_row)

    return ctx[:B, :E], attw[:B, :T], la_new[:B, :T]


# ---------------------------------------------------------------------------
# Pure-JAX reference (correctness check only).
# ---------------------------------------------------------------------------
def attention_v2_ref(query, memory, processed_memory, attention_weights_cat, mask,
                     log_alpha, wq_t, wconv, wdense_t, v_t, *, kernel_size):
    B, T, E = memory.shape
    K = kernel_size
    P = (K - 1) // 2
    pq = query[:, None, :] @ wq_t                                   # (B, 1, A)
    xp = jnp.pad(attention_weights_cat, ((0, 0), (0, 0), (P, P)))
    conv = jnp.zeros((B, T, wconv.shape[2]), jnp.float32)
    for k in range(K):
        conv = conv + jnp.einsum('bct,cf->btf', xp[:, :, k:k + T], wconv[k])
    loc = conv @ wdense_t                                           # (B, T, A)
    h = jnp.tanh(pq + loc + processed_memory)
    energies = (h @ v_t)[..., 0]                                    # (B, T)
    log_energy = jnp.where(mask, NEG, energies)
    la_prev = jnp.concatenate(
        [jnp.full((B, 1), NEG, jnp.float32), log_alpha[:, :T - 1]], axis=1)
    m = jnp.maximum(log_alpha, la_prev)
    biased = m + jnp.log(jnp.exp(log_alpha - m) + jnp.exp(la_prev - m))
    la_new = biased + log_energy
    attw = jax.nn.softmax(la_new, axis=1)
    ctx = jnp.einsum('bt,bte->be', attw, memory)
    return ctx, attw, la_new


# ---------------------------------------------------------------------------
# Deterministic parameter init (xavier-uniform-like; synthetic weights).
# ---------------------------------------------------------------------------
def xavier(key, shape, fan_in, fan_out, gain=1.0):
    a = gain * np.sqrt(6.0 / (fan_in + fan_out))
    return jax.random.uniform(key, shape, jnp.float32, -a, a)


if __name__ == "__main__":
    # Small, module-consistent hyperparameters.
    B, T = 2, 16
    R = 32   # attention_rnn_dim
    E = 32   # embedding_dim
    A = 32   # attention_dim
    F = 8    # attention_location_n_filters
    K = 5    # attention_location_kernel_size (odd)
    tanh_gain = 5.0 / 3.0

    key = jax.random.PRNGKey(0)
    ks = jax.random.split(key, 10)

    # Parameters (already in kernel layouts; PyTorch layouts noted).
    wq_t = xavier(ks[0], (R, A), R, A, tanh_gain)             # torch: (A, R)
    wconv = xavier(ks[1], (K, 2, F), 2 * K, F * K, 1.0)       # torch: (F, 2, K)
    wdense_t = xavier(ks[2], (F, A), F, A, tanh_gain)         # torch: (A, F)
    v_t = xavier(ks[3], (A, 1), A, 1, 1.0)                    # torch: (1, A)

    # Inputs.
    query = jax.random.normal(ks[4], (B, R), jnp.float32)
    memory = jax.random.normal(ks[5], (B, T, E), jnp.float32)
    processed_memory = jax.random.normal(ks[6], (B, T, A), jnp.float32)
    aw_prev = jax.nn.softmax(jax.random.normal(ks[7], (B, T), jnp.float32), axis=1)
    attention_weights_cat = jnp.stack([aw_prev, jnp.cumsum(aw_prev, axis=1)], axis=1)  # (B, 2, T)
    lengths = jnp.array([T, T - 3], jnp.int32)
    mask = jnp.arange(T)[None, :] >= lengths[:, None]          # (B, T) bool, True == padded
    log_alpha = jax.nn.log_softmax(jax.random.normal(ks[8], (B, T), jnp.float32), axis=1)

    ctx, attw, la_new = attention_v2(
        query, memory, processed_memory, attention_weights_cat, mask, log_alpha,
        wq_t, wconv, wdense_t, v_t, kernel_size=K, block_b=8)
    jax.block_until_ready((ctx, attw, la_new))

    # Reference consumes the same bf16-rounded memory/processed_memory the kernel sees,
    # so the comparison isolates kernel correctness (not the intended bf16 storage policy).
    mem_q = memory.astype(jnp.bfloat16).astype(jnp.float32)
    pmem_q = processed_memory.astype(jnp.bfloat16).astype(jnp.float32)
    ctx_r, attw_r, la_r = attention_v2_ref(
        query, mem_q, pmem_q, attention_weights_cat, mask, log_alpha,
        wq_t, wconv, wdense_t, v_t, kernel_size=K)

    np.testing.assert_allclose(np.asarray(ctx), np.asarray(ctx_r), rtol=2e-3, atol=2e-3)
    np.testing.assert_allclose(np.asarray(attw), np.asarray(attw_r), rtol=2e-3, atol=2e-3)
    np.testing.assert_allclose(np.asarray(la_new), np.asarray(la_r), rtol=2e-3, atol=2e-3)

    print("KERNEL_OK")
</pallas_src>

<mosaic_0001>
module attributes {stable_mosaic.version = 11 : i64} {
  func.func @attention_v2_kernel(%arg0: i32, %arg1: memref<8x32xf32, #tpu.memory_space<vmem>>, %arg2: memref<8x128x10xf32, #tpu.memory_space<vmem>>, %arg3: memref<8x128x128xbf16, #tpu.memory_space<vmem>>, %arg4: memref<8x128x32xbf16, #tpu.memory_space<vmem>>, %arg5: memref<8x128xf32, #tpu.memory_space<vmem>>, %arg6: memref<8x128xf32, #tpu.memory_space<vmem>>, %arg7: memref<32x32xf32, #tpu.memory_space<vmem>>, %arg8: memref<10x32xf32, #tpu.memory_space<vmem>>, %arg9: memref<1x32xf32, #tpu.memory_space<vmem>>, %arg10: memref<8x128xf32, #tpu.memory_space<vmem>>, %arg11: memref<8x128xf32, #tpu.memory_space<vmem>>, %arg12: memref<8x128xf32, #tpu.memory_space<vmem>>) attributes {dimension_semantics = [#tpu.dimension_semantics<parallel>], iteration_bounds = array<i64: 1>, scalar_prefetch = 0 : i64, scratch_operands = 0 : i64, tpu.core_type = #tpu.core_type<tc>, window_params = [{transform_indices = @transform_0, window_bounds = array<i64: 8, 32>}, {transform_indices = @transform_1, window_bounds = array<i64: 8, 128, 10>}, {transform_indices = @transform_2, window_bounds = array<i64: 8, 128, 128>}, {transform_indices = @transform_3, window_bounds = array<i64: 8, 128, 32>}, {transform_indices = @transform_4, window_bounds = array<i64: 8, 128>}, {transform_indices = @transform_5, window_bounds = array<i64: 8, 128>}, {pipeline_mode = #tpu.pipeline_mode<synchronous>, transform_indices = @transform_6, window_bounds = array<i64: 32, 32>}, {pipeline_mode = #tpu.pipeline_mode<synchronous>, transform_indices = @transform_7, window_bounds = array<i64: 10, 32>}, {pipeline_mode = #tpu.pipeline_mode<synchronous>, transform_indices = @transform_8, window_bounds = array<i64: 1, 32>}, {transform_indices = @transform_9, window_bounds = array<i64: 8, 128>}, {transform_indices = @transform_10, window_bounds = array<i64: 8, 128>}, {transform_indices = @transform_11, window_bounds = array<i64: 8, 128>}]} {
    %c0 = arith.constant 0 : index
    %c0_0 = arith.constant 0 : index
    %0 = vector.load %arg1[%c0, %c0_0] : memref<8x32xf32, #tpu.memory_space<vmem>>, vector<8x32xf32>
    %c0_1 = arith.constant 0 : index
    %c0_2 = arith.constant 0 : index
    %1 = vector.load %arg7[%c0_1, %c0_2] : memref<32x32xf32, #tpu.memory_space<vmem>>, vector<32x32xf32>
    %cst = arith.constant dense<0.000000e+00> : vector<8x32xf32>
    %2 = tpu.matmul %0, %1, %cst {dimension_numbers = #tpu.dot_dimension_numbers<[1], [0], [0], [1], [0, 0, 1, 1], [], []>} : vector<8x32xf32>, vector<32x32xf32>, vector<8x32xf32> -> vector<8x32xf32>
    %c0_3 = arith.constant 0 : index
    %c0_4 = arith.constant 0 : index
    %c0_5 = arith.constant 0 : index
    %3 = vector.load %arg2[%c0_3, %c0_4, %c0_5] : memref<8x128x10xf32, #tpu.memory_space<vmem>>, vector<8x128x10xf32>
    %4 = vector.shape_cast %3 : vector<8x128x10xf32> to vector<1024x10xf32>
    %c0_6 = arith.constant 0 : index
    %c0_7 = arith.constant 0 : index
    %5 = vector.load %arg8[%c0_6, %c0_7] : memref<10x32xf32, #tpu.memory_space<vmem>>, vector<10x32xf32>
    %cst_8 = arith.constant dense<0.000000e+00> : vector<1024x32xf32>
    %6 = tpu.matmul %4, %5, %cst_8 {dimension_numbers = #tpu.dot_dimension_numbers<[1], [0], [0], [1], [0, 0, 1, 1], [], []>} : vector<1024x10xf32>, vector<10x32xf32>, vector<1024x32xf32> -> vector<1024x32xf32>
    %7 = vector.shape_cast %6 : vector<1024x32xf32> to vector<8x128x32xf32>
    %8 = vector.shape_cast %2 : vector<8x32xf32> to vector<8x1x32xf32>
    %9 = vector.broadcast %8 : vector<8x1x32xf32> to vector<8x128x32xf32>
    %10 = arith.addf %9, %7 : vector<8x128x32xf32>
    %c0_9 = arith.constant 0 : index
    %c0_10 = arith.constant 0 : index
    %c0_11 = arith.constant 0 : index
    %11 = vector.load %arg4[%c0_9, %c0_10, %c0_11] : memref<8x128x32xbf16, #tpu.memory_space<vmem>>, vector<8x128x32xbf16>
    %12 = arith.extf %11 : vector<8x128x32xbf16> to vector<8x128x32xf32>
    %13 = arith.addf %10, %12 : vector<8x128x32xf32>
    %14 = math.tanh %13 : vector<8x128x32xf32>
    %c0_12 = arith.constant 0 : index
    %c0_13 = arith.constant 0 : index
    %15 = vector.load %arg9[%c0_12, %c0_13] : memref<1x32xf32, #tpu.memory_space<vmem>>, vector<1x32xf32>
    %16 = vector.shape_cast %15 : vector<1x32xf32> to vector<1x1x32xf32>
    %17 = vector.broadcast %16 : vector<1x1x32xf32> to vector<8x128x32xf32>
    %18 = arith.mulf %14, %17 : vector<8x128x32xf32>
    %cst_14 = arith.constant dense<0.000000e+00> : vector<8x128xf32>
    %19 = vector.multi_reduction <add>, %18, %cst_14 [2] : vector<8x128x32xf32> to vector<8x128xf32>
    %c0_15 = arith.constant 0 : index
    %c0_16 = arith.constant 0 : index
    %20 = vector.load %arg5[%c0_15, %c0_16] : memref<8x128xf32, #tpu.memory_space<vmem>>, vector<8x128xf32>
    %cst_17 = arith.constant 5.000000e-01 : f32
    %21 = vector.broadcast %cst_17 : f32 to vector<8x128xf32>
    %22 = arith.cmpf ogt, %20, %21 : vector<8x128xf32>
    %cst_18 = arith.constant -1.000000e+20 : f32
    %23 = vector.broadcast %cst_18 : f32 to vector<8x128xf32>
    %24 = arith.select %22, %23, %19 : vector<8x128xi1>, vector<8x128xf32>
    %c0_19 = arith.constant 0 : index
    %c0_20 = arith.constant 0 : index
    %25 = vector.load %arg6[%c0_19, %c0_20] : memref<8x128xf32, #tpu.memory_space<vmem>>, vector<8x128xf32>
    %26 = tpu.iota {dimensions = array<i32: 1>} : vector<8x128xi32>
    %c0_i32 = arith.constant 0 : i32
    %27 = vector.broadcast %c0_i32 : i32 to vector<8x128xi32>
    %28 = arith.cmpi eq, %26, %27 : vector<8x128xi32>
    %c1_i32 = arith.constant 1 : i32
    %29 = tpu.dynamic_rotate %25 by %c1_i32 dim 1 : vector<8x128xf32>, i32 -> vector<8x128xf32>
    %cst_21 = arith.constant -1.000000e+20 : f32
    %30 = vector.broadcast %cst_21 : f32 to vector<8x128xf32>
    %31 = arith.select %28, %30, %29 : vector<8x128xi1>, vector<8x128xf32>
    %32 = arith.maximumf %25, %31 : vector<8x128xf32>
    %33 = arith.subf %25, %31 : vector<8x128xf32>
    %34 = math.absf %33 : vector<8x128xf32>
    %cst_22 = arith.constant 0.000000e+00 : f32
    %35 = vector.broadcast %cst_22 : f32 to vector<8x128xf32>
    %36 = arith.subf %35, %34 : vector<8x128xf32>
    %37 = math.exp %36 : vector<8x128xf32>
    %cst_23 = arith.constant 1.000000e+00 : f32
    %38 = vector.broadcast %cst_23 : f32 to vector<8x128xf32>
    %39 = arith.addf %38, %37 : vector<8x128xf32>
    %40 = math.log %39 : vector<8x128xf32>
    %41 = arith.addf %32, %40 : vector<8x128xf32>
    %42 = arith.addf %41, %24 : vector<8x128xf32>
    %cst_24 = arith.constant dense<0xFF800000> : vector<8xf32>
    %43 = vector.multi_reduction <maximumf>, %42, %cst_24 [1] : vector<8x128xf32> to vector<8xf32>
    %44 = vector.shape_cast %43 : vector<8xf32> to vector<8x1xf32>
    %45 = vector.broadcast %44 : vector<8x1xf32> to vector<8x128xf32>
    %46 = arith.subf %42, %45 : vector<8x128xf32>
    %47 = math.exp %46 : vector<8x128xf32>
    %cst_25 = arith.constant dense<0.000000e+00> : vector<8xf32>
    %48 = vector.multi_reduction <add>, %47, %cst_25 [1] : vector<8x128xf32> to vector<8xf32>
    %49 = vector.shape_cast %48 : vector<8xf32> to vector<8x1xf32>
    %50 = tpu.reciprocal %49 {approx = true} : vector<8x1xf32> -> vector<8x1xf32>
    %51 = arith.mulf %49, %50 : vector<8x1xf32>
    %cst_26 = arith.constant 2.000000e+00 : f32
    %52 = vector.broadcast %cst_26 : f32 to vector<8x1xf32>
    %53 = arith.subf %52, %51 : vector<8x1xf32>
    %54 = arith.mulf %50, %53 : vector<8x1xf32>
    %55 = vector.broadcast %54 : vector<8x1xf32> to vector<8x128xf32>
    %56 = arith.mulf %47, %55 : vector<8x128xf32>
    %c0_27 = arith.constant 0 : index
    %c0_28 = arith.constant 0 : index
    %c0_29 = arith.constant 0 : index
    %57 = vector.load %arg3[%c0_27, %c0_28, %c0_29] : memref<8x128x128xbf16, #tpu.memory_space<vmem>>, vector<8x128x128xbf16>
    %58 = arith.extf %57 : vector<8x128x128xbf16> to vector<8x128x128xf32>
    %59 = vector.shape_cast %56 : vector<8x128xf32> to vector<8x1x128xf32>
    "tpu.trace_start"() <{level = 10 : i32, message = "bqt,bte->bqe"}> : () -> ()
    %cst_30 = arith.constant dense<0.000000e+00> : vector<8x1x128xf32>
    %60 = tpu.matmul %59, %58, %cst_30 {dimension_numbers = #tpu.dot_dimension_numbers<[2], [1], [1], [2], [0, 0, 0, 1, 1, 2], [0], [0]>} : vector<8x1x128xf32>, vector<8x128x128xf32>, vector<8x1x128xf32> -> vector<8x1x128xf32>
    "tpu.trace_stop"() : () -> ()
    %61 = vector.shape_cast %60 : vector<8x1x128xf32> to vector<8x128xf32>
    %c0_31 = arith.constant 0 : index
    %c0_32 = arith.constant 0 : index
    %62 = vector.load %arg10[%c0_31, %c0_32] : memref<8x128xf32, #tpu.memory_space<vmem>>, vector<8x128xf32>
    tpu.vector_store %arg10[%c0_31, %c0_32], %61 {strides = array<i32>} : memref<8x128xf32, #tpu.memory_space<vmem>>, vector<8x128xf32>,
    %c0_33 = arith.constant 0 : index
    %c0_34 = arith.constant 0 : index
    %63 = vector.load %arg11[%c0_33, %c0_34] : memref<8x128xf32, #tpu.memory_space<vmem>>, vector<8x128xf32>
    tpu.vector_store %arg11[%c0_33, %c0_34], %56 {strides = array<i32>} : memref<8x128xf32, #tpu.memory_space<vmem>>, vector<8x128xf32>,
    %c0_35 = arith.constant 0 : index
    %c0_36 = arith.constant 0 : index
    %64 = vector.load %arg12[%c0_35, %c0_36] : memref<8x128xf32, #tpu.memory_space<vmem>>, vector<8x128xf32>
    tpu.vector_store %arg12[%c0_35, %c0_36], %42 {strides = array<i32>} : memref<8x128xf32, #tpu.memory_space<vmem>>, vector<8x128xf32>,
    return
  }
  func.func @transform_0(%arg0: i32) -> (i32, i32) {
    %c0_i32 = arith.constant 0 : i32
    %c0_i32_0 = arith.constant 0 : i32
    return %arg0, %c0_i32 : i32, i32
  }
  func.func @transform_1(%arg0: i32) -> (i32, i32, i32) {
    %c0_i32 = arith.constant 0 : i32
    %c0_i32_0 = arith.constant 0 : i32
    %c0_i32_1 = arith.constant 0 : i32
    return %arg0, %c0_i32, %c0_i32_0 : i32, i32, i32
  }
  func.func @transform_2(%arg0: i32) -> (i32, i32, i32) {
    %c0_i32 = arith.constant 0 : i32
    %c0_i32_0 = arith.constant 0 : i32
    %c0_i32_1 = arith.constant 0 : i32
    return %arg0, %c0_i32, %c0_i32_0 : i32, i32, i32
  }
  func.func @transform_3(%arg0: i32) -> (i32, i32, i32) {
    %c0_i32 = arith.constant 0 : i32
    %c0_i32_0 = arith.constant 0 : i32
    %c0_i32_1 = arith.constant 0 : i32
    return %arg0, %c0_i32, %c0_i32_0 : i32, i32, i32
  }
  func.func @transform_4(%arg0: i32) -> (i32, i32) {
    %c0_i32 = arith.constant 0 : i32
    %c0_i32_0 = arith.constant 0 : i32
    return %arg0, %c0_i32 : i32, i32
  }
  func.func @transform_5(%arg0: i32) -> (i32, i32) {
    %c0_i32 = arith.constant 0 : i32
    %c0_i32_0 = arith.constant 0 : i32
    return %arg0, %c0_i32 : i32, i32
  }
  func.func @transform_6(%arg0: i32) -> (i32, i32) {
    %c0_i32 = arith.constant 0 : i32
    %c0_i32_0 = arith.constant 0 : i32
    %c0_i32_1 = arith.constant 0 : i32
    return %c0_i32, %c0_i32_0 : i32, i32
  }
  func.func @transform_7(%arg0: i32) -> (i32, i32) {
    %c0_i32 = arith.constant 0 : i32
    %c0_i32_0 = arith.constant 0 : i32
    %c0_i32_1 = arith.constant 0 : i32
    return %c0_i32, %c0_i32_0 : i32, i32
  }
  func.func @transform_8(%arg0: i32) -> (i32, i32) {
    %c0_i32 = arith.constant 0 : i32
    %c0_i32_0 = arith.constant 0 : i32
    %c0_i32_1 = arith.constant 0 : i32
    return %c0_i32, %c0_i32_0 : i32, i32
  }
  func.func @transform_9(%arg0: i32) -> (i32, i32) {
    %c0_i32 = arith.constant 0 : i32
    %c0_i32_0 = arith.constant 0 : i32
    return %arg0, %c0_i32 : i32, i32
  }
  func.func @transform_10(%arg0: i32) -> (i32, i32) {
    %c0_i32 = arith.constant 0 : i32
    %c0_i32_0 = arith.constant 0 : i32
    return %arg0, %c0_i32 : i32, i32
  }
  func.func @transform_11(%arg0: i32) -> (i32, i32) {
    %c0_i32 = arith.constant 0 : i32
    %c0_i32_0 = arith.constant 0 : i32
    return %arg0, %c0_i32 : i32, i32
  }
}

</mosaic_0001>

<llo_original>
// kernel: attention_v2.1
$region0: #{attention_v2.1}
  #allocation0 [shape = 'u32[]', space=smem, size = 0x4, offset = 0x4, fixed_abs, tag = 'smem constant byte address 0x4 - core index']
  #allocation1 [shape = 'u32[144,128]{1,0:T(1,128)}', space=vmem, size = 0x12000, scoped, tag = 'internal scratch']
  %s0 = inlined_call_operand.vmem [shape: f32[8,32], index: 0, kind: input, shape index: {}]
  %s1 = inlined_call_operand.vmem [shape: f32[8,128,10], index: 1, kind: input, shape index: {}]
  %s2 = inlined_call_operand.vmem [shape: bf16[8,128,128], index: 2, kind: input, shape index: {}]
  %s3 = inlined_call_operand.vmem [shape: bf16[8,128,32], index: 3, kind: input, shape index: {}]
  %s4 = inlined_call_operand.vmem [shape: f32[8,128], index: 4, kind: input, shape index: {}]
  %s5 = inlined_call_operand.vmem [shape: f32[8,128], index: 5, kind: input, shape index: {}]
  %s6 = inlined_call_operand.vmem [shape: f32[32,32], index: 6, kind: input, shape index: {}]
  %s7 = inlined_call_operand.vmem [shape: f32[10,32], index: 7, kind: input, shape index: {}]
  %s8 = inlined_call_operand.vmem [shape: f32[1,32], index: 8, kind: input, shape index: {}]
  %s9 = inlined_call_operand.vmem [shape: f32[8,128], index: 9, kind: output, shape index: {0}]
  %s10 = inlined_call_operand.vmem [shape: f32[8,128], index: 10, kind: output, shape index: {1}]
  %s11 = inlined_call_operand.vmem [shape: f32[8,128], index: 11, kind: output, shape index: {2}]
  %12 = xla_tuple %s9, %s10, %s11
  %s13 = sld [smem:[#allocation0]]
  $region62: #{attention_v2.1} parent=0
    _
  %s15 = ssub.s32 1, %s13
  %s16 = scalar_select 0, %s15, %s13
  // Predicated region
  $region2: #{attention_v2.1} parent=0 // pred_check
    _
  $region3: #{attention_v2.1} parent=0 // pred_check_branch
    %18 = sbr.rel (0) target = $region5
  $region4: #{attention_v2.1} parent=0 // pred_region
    _
  $region5: #{attention_v2.1} parent=0 // pred_fallthru
    _
  // Predicated region
  $region6: #{attention_v2.1} parent=0 // pred_check
    _
  $region7: #{attention_v2.1} parent=0 // pred_check_branch
    %20 = sbr.rel (0) target = $region9
  $region8: #{attention_v2.1} parent=0 // pred_region
    _
  $region9: #{attention_v2.1} parent=0 // pred_fallthru
    _
  // Predicated region
  $region10: #{attention_v2.1} parent=0 // pred_check
    _
  $region11: #{attention_v2.1} parent=0 // pred_check_branch
    %22 = sbr.rel (0) target = $region13
  $region12: #{attention_v2.1} parent=0 // pred_region
    _
  $region13: #{attention_v2.1} parent=0 // pred_fallthru
    _
  // Predicated region
  $region14: #{attention_v2.1} parent=0 // pred_check
    _
  $region15: #{attention_v2.1} parent=0 // pred_check_branch
    %24 = sbr.rel (0) target = $region17
  $region16: #{attention_v2.1} parent=0 // pred_region
    _
  $region17: #{attention_v2.1} parent=0 // pred_fallthru
    _
  // Predicated region
  $region18: #{attention_v2.1} parent=0 // pred_check
    _
  $region19: #{attention_v2.1} parent=0 // pred_check_branch
    %26 = sbr.rel (0) target = $region21
  $region20: #{attention_v2.1} parent=0 // pred_region
    _
  $region21: #{attention_v2.1} parent=0 // pred_fallthru
    _
  // Predicated region
  $region22: #{attention_v2.1} parent=0 // pred_check
    _
  $region23: #{attention_v2.1} parent=0 // pred_check_branch
    %28 = sbr.rel (0) target = $region25
  $region24: #{attention_v2.1} parent=0 // pred_region
    _
  $region25: #{attention_v2.1} parent=0 // pred_fallthru
    _
  // Predicated region
  $region26: #{attention_v2.1} parent=0 // pred_check
    _
  $region27: #{attention_v2.1} parent=0 // pred_check_branch
    %30 = sbr.rel (0) target = $region29
  $region28: #{attention_v2.1} parent=0 // pred_region
    _
  $region29: #{attention_v2.1} parent=0 // pred_fallthru
    _
  // Predicated region
  $region30: #{attention_v2.1} parent=0 // pred_check
    _
  $region31: #{attention_v2.1} parent=0 // pred_check_branch
    %32 = sbr.rel (0) target = $region33
  $region32: #{attention_v2.1} parent=0 // pred_region
    _
  $region33: #{attention_v2.1} parent=0 // pred_fallthru
    _
  // Predicated region
  $region34: #{attention_v2.1} parent=0 // pred_check
    _
  $region35: #{attention_v2.1} parent=0 // pred_check_branch
    %34 = sbr.rel (0) target = $region37
  $region36: #{attention_v2.1} parent=0 // pred_region
    _
  $region37: #{attention_v2.1} parent=0 // pred_fallthru
    _
  %v35 = vld [vmem:[%s0] sm:$0xff]
  %v36 = vld [vmem:[%s6] sm:$0xff]
  %v37 = vld [vmem:[%s6 + $0x8] sm:$0xff]
  %v38 = vld [vmem:[%s6 + $0x10] sm:$0xff]
  %v39 = vld [vmem:[%s6 + $0x18] sm:$0xff]
  %vm40 = vcmask 261120
  %v42 = vsel %vm40, %v35, 0
  %44 = vmatprep.subr.mxu0 0.0
  %45 = vmatpush1.msra.mxu0 %v36
  %46 = vmatprep.subr.mxu0 0.0
  %47 = vmatpush1.msra.mxu0 %v37
  %48 = vmatprep.subr.mxu0 0.0
  %49 = vmatpush1.msra.mxu0 %v38
  %50 = vmatprep.subr.mxu0 0.0
  %51 = vmatpush1.msra.mxu0 %v39
  %52 = vmatprep.subr.mxu0 0.0
  %53 = vmatpush1.msra.mxu0 0.0
  %54 = vmatprep.subr.mxu0 0.0
  %55 = vmatpush1.msra.mxu0 0.0
  %56 = vmatprep.subr.mxu0 0.0
  %57 = vmatpush1.msra.mxu0 0.0
  %58 = vmatprep.subr.mxu0 0.0
  %59 = vmatpush1.msra.mxu0 0.0
  %60 = vmatprep.subr.mxu0 0.0
  %61 = vmatpush1.msra.mxu0 0.0
  %62 = vmatprep.subr.mxu0 0.0
  %63 = vmatpush1.msra.mxu0 0.0
  %64 = vmatprep.subr.mxu0 0.0
  %65 = vmatpush1.msra.mxu0 0.0
  %66 = vmatprep.subr.mxu0 0.0
  %67 = vmatpush1.msra.mxu0 0.0
  %68 = vmatprep.subr.mxu0 0.0
  %69 = vmatpush1.msra.mxu0 0.0
  %70 = vmatprep.subr.mxu0 0.0
  %71 = vmatpush1.msra.mxu0 0.0
  %72 = vmatprep.subr.mxu0 0.0
  %73 = vmatpush1.msra.mxu0 0.0
  %74 = vmatprep.subr.mxu0 0.0
  %75 = vmatpush1.msra.mxu0 0.0
  %76 = vmatprep.subr.mxu0 0.0
  %77 = vmatpush1.msra.mxu0 0.0
  %78 = vmatprep.subr.mxu0 0.0
  %79 = vmatpush1.msra.mxu0 0.0
  %80 = vmatprep.subr.mxu0 0.0
  %81 = vmatpush1.msra.mxu0 0.0
  %82 = vmatprep.subr.mxu0 0.0
  %83 = vmatpush1.msra.mxu0 0.0
  %84 = vmatprep.subr.mxu0 0.0
  %85 = vmatpush1.msra.mxu0 0.0
  %86 = vmatprep.subr.mxu0 0.0
  %87 = vmatpush1.msra.mxu0 0.0
  %88 = vmatprep.subr.mxu0 0.0
  %89 = vmatpush1.msra.mxu0 0.0
  %90 = vmatprep.subr.mxu0 0.0
  %91 = vmatpush1.msra.mxu0 0.0
  %92 = vmatprep.subr.mxu0 0.0
  %93 = vmatpush1.msra.mxu0 0.0
  %94 = vmatprep.subr.mxu0 0.0
  %95 = vmatpush1.msra.mxu0 0.0
  %96 = vmatprep.subr.mxu0 0.0
  %97 = vmatpush1.msra.mxu0 0.0
  %98 = vmatprep.subr.mxu0 0.0
  %99 = vmatpush1.msra.mxu0 0.0
  %100 = vmatprep.subr.mxu0 0.0
  %101 = vmatpush1.msra.mxu0 0.0
  %102 = vmatprep.subr.mxu0 0.0
  %103 = vmatpush1.msra.mxu0 0.0
  %104 = vmatprep.subr.mxu0 0.0
  %105 = vmatpush1.msra.mxu0 0.0
  %106 = vmatprep.subr.mxu0 0.0
  %107 = vmatpush1.msra.mxu0 0.0
  %108 = vmatprep.mubr.f32.mxu0 0.0
  %109 = vmatmul.mubr.f32.gmra.mrb[0].mxu0 %v42
  %v110 = vpop.f32.mrb[0].mxu0
  %v111 = vadd.f32 0.0, %v110
  %v112 = vpop.f32.mrb[0].mxu0
  %113 = vdwg.mxu0
  %v114 = vld [vmem:[%s1] sm:$0xff]
  %v115 = vld [vmem:[%s1 + $0x8] sm:$0xff]
  %v116 = vld [vmem:[%s1 + $0x10] sm:$0xff]
  %v117 = vld [vmem:[%s1 + $0x18] sm:$0xff]
  %v118 = vld [vmem:[%s1 + $0x20] sm:$0xff]
  %v119 = vld [vmem:[%s1 + $0x28] sm:$0xff]
  %v120 = vld [vmem:[%s1 + $0x30] sm:$0xff]
  %v121 = vld [vmem:[%s1 + $0x38] sm:$0xff]
  %v122 = vld [vmem:[%s1 + $0x40] sm:$0xff]
  %v123 = vld [vmem:[%s1 + $0x48] sm:$0xff]
  %v124 = vld [vmem:[%s1 + $0x50] sm:$0xff]
  %v125 = vld [vmem:[%s1 + $0x58] sm:$0xff]
  %v126 = vld [vmem:[%s1 + $0x60] sm:$0xff]
  %v127 = vld [vmem:[%s1 + $0x68] sm:$0xff]
  %v128 = vld [vmem:[%s1 + $0x70] sm:$0xff]
  %v129 = vld [vmem:[%s1 + $0x78] sm:$0xff]
  %v130 = vld [vmem:[%s1 + $0x80] sm:$0xff]
  %v131 = vld [vmem:[%s1 + $0x88] sm:$0xff]
  %v132 = vld [vmem:[%s1 + $0x90] sm:$0xff]
  %v133 = vld [vmem:[%s1 + $0x98] sm:$0xff]
  %v134 = vld [vmem:[%s1 + $0xa0] sm:$0xff]
  %v135 = vld [vmem:[%s1 + $0xa8] sm:$0xff]
  %v136 = vld [vmem:[%s1 + $0xb0] sm:$0xff]
  %v137 = vld [vmem:[%s1 + $0xb8] sm:$0xff]
  %v138 = vld [vmem:[%s1 + $0xc0] sm:$0xff]
  %v139 = vld [vmem:[%s1 + $0xc8] sm:$0xff]
  %v140 = vld [vmem:[%s1 + $0xd0] sm:$0xff]
  %v141 = vld [vmem:[%s1 + $0xd8] sm:$0xff]
  %v142 = vld [vmem:[%s1 + $0xe0] sm:$0xff]
  %v143 = vld [vmem:[%s1 + $0xe8] sm:$0xff]
  %v144 = vld [vmem:[%s1 + $0xf0] sm:$0xff]
  %v145 = vld [vmem:[%s1 + $0xf8] sm:$0xff]
  %v146 = vld [vmem:[%s1 + $0x100] sm:$0xff]
  %v147 = vld [vmem:[%s1 + $0x108] sm:$0xff]
  %v148 = vld [vmem:[%s1 + $0x110] sm:$0xff]
  %v149 = vld [vmem:[%s1 + $0x118] sm:$0xff]
  %v150 = vld [vmem:[%s1 + $0x120] sm:$0xff]
  %v151 = vld [vmem:[%s1 + $0x128] sm:$0xff]
  %v152 = vld [vmem:[%s1 + $0x130] sm:$0xff]
  %v153 = vld [vmem:[%s1 + $0x138] sm:$0xff]
  %v154 = vld [vmem:[%s1 + $0x140] sm:$0xff]
  %v155 = vld [vmem:[%s1 + $0x148] sm:$0xff]
  %v156 = vld [vmem:[%s1 + $0x150] sm:$0xff]
  %v157 = vld [vmem:[%s1 + $0x158] sm:$0xff]
  %v158 = vld [vmem:[%s1 + $0x160] sm:$0xff]
  %v159 = vld [vmem:[%s1 + $0x168] sm:$0xff]
  %v160 = vld [vmem:[%s1 + $0x170] sm:$0xff]
  %v161 = vld [vmem:[%s1 + $0x178] sm:$0xff]
  %v162 = vld [vmem:[%s1 + $0x180] sm:$0xff]
  %v163 = vld [vmem:[%s1 + $0x188] sm:$0xff]
  %v164 = vld [vmem:[%s1 + $0x190] sm:$0xff]
  %v165 = vld [vmem:[%s1 + $0x198] sm:$0xff]
  %v166 = vld [vmem:[%s1 + $0x1a0] sm:$0xff]
  %v167 = vld [vmem:[%s1 + $0x1a8] sm:$0xff]
  %v168 = vld [vmem:[%s1 + $0x1b0] sm:$0xff]
  %v169 = vld [vmem:[%s1 + $0x1b8] sm:$0xff]
  %v170 = vld [vmem:[%s1 + $0x1c0] sm:$0xff]
  %v171 = vld [vmem:[%s1 + $0x1c8] sm:$0xff]
  %v172 = vld [vmem:[%s1 + $0x1d0] sm:$0xff]
  %v173 = vld [vmem:[%s1 + $0x1d8] sm:$0xff]
  %v174 = vld [vmem:[%s1 + $0x1e0] sm:$0xff]
  %v175 = vld [vmem:[%s1 + $0x1e8] sm:$0xff]
  %v176 = vld [vmem:[%s1 + $0x1f0] sm:$0xff]
  %v177 = vld [vmem:[%s1 + $0x1f8] sm:$0xff]
  %v178 = vld [vmem:[%s1 + $0x200] sm:$0xff]
  %v179 = vld [vmem:[%s1 + $0x208] sm:$0xff]
  %v180 = vld [vmem:[%s1 + $0x210] sm:$0xff]
  %v181 = vld [vmem:[%s1 + $0x218] sm:$0xff]
  %v182 = vld [vmem:[%s1 + $0x220] sm:$0xff]
  %v183 = vld [vmem:[%s1 + $0x228] sm:$0xff]
  %v184 = vld [vmem:[%s1 + $0x230] sm:$0xff]
  %v185 = vld [vmem:[%s1 + $0x238] sm:$0xff]
  %v186 = vld [vmem:[%s1 + $0x240] sm:$0xff]
  %v187 = vld [vmem:[%s1 + $0x248] sm:$0xff]
  %v188 = vld [vmem:[%s1 + $0x250] sm:$0xff]
  %v189 = vld [vmem:[%s1 + $0x258] sm:$0xff]
  %v190 = vld [vmem:[%s1 + $0x260] sm:$0xff]
  %v191 = vld [vmem:[%s1 + $0x268] sm:$0xff]
  %v192 = vld [vmem:[%s1 + $0x270] sm:$0xff]
  %v193 = vld [vmem:[%s1 + $0x278] sm:$0xff]
  %v194 = vld [vmem:[%s1 + $0x280] sm:$0xff]
  %v195 = vld [vmem:[%s1 + $0x288] sm:$0xff]
  %v196 = vld [vmem:[%s1 + $0x290] sm:$0xff]
  %v197 = vld [vmem:[%s1 + $0x298] sm:$0xff]
  %v198 = vld [vmem:[%s1 + $0x2a0] sm:$0xff]
  %v199 = vld [vmem:[%s1 + $0x2a8] sm:$0xff]
  %v200 = vld [vmem:[%s1 + $0x2b0] sm:$0xff]
  %v201 = vld [vmem:[%s1 + $0x2b8] sm:$0xff]
  %v202 = vld [vmem:[%s1 + $0x2c0] sm:$0xff]
  %v203 = vld [vmem:[%s1 + $0x2c8] sm:$0xff]
  %v204 = vld [vmem:[%s1 + $0x2d0] sm:$0xff]
  %v205 = vld [vmem:[%s1 + $0x2d8] sm:$0xff]
  %v206 = vld [vmem:[%s1 + $0x2e0] sm:$0xff]
  %v207 = vld [vmem:[%s1 + $0x2e8] sm:$0xff]
  %v208 = vld [vmem:[%s1 + $0x2f0] sm:$0xff]
  %v209 = vld [vmem:[%s1 + $0x2f8] sm:$0xff]
  %v210 = vld [vmem:[%s1 + $0x300] sm:$0xff]
  %v211 = vld [vmem:[%s1 + $0x308] sm:$0xff]
  %v212 = vld [vmem:[%s1 + $0x310] sm:$0xff]
  %v213 = vld [vmem:[%s1 + $0x318] sm:$0xff]
  %v214 = vld [vmem:[%s1 + $0x320] sm:$0xff]
  %v215 = vld [vmem:[%s1 + $0x328] sm:$0xff]
  %v216 = vld [vmem:[%s1 + $0x330] sm:$0xff]
  %v217 = vld [vmem:[%s1 + $0x338] sm:$0xff]
  %v218 = vld [vmem:[%s1 + $0x340] sm:$0xff]
  %v219 = vld [vmem:[%s1 + $0x348] sm:$0xff]
  %v220 = vld [vmem:[%s1 + $0x350] sm:$0xff]
  %v221 = vld [vmem:[%s1 + $0x358] sm:$0xff]
  %v222 = vld [vmem:[%s1 + $0x360] sm:$0xff]
  %v223 = vld [vmem:[%s1 + $0x368] sm:$0xff]
  %v224 = vld [vmem:[%s1 + $0x370] sm:$0xff]
  %v225 = vld [vmem:[%s1 + $0x378] sm:$0xff]
  %v226 = vld [vmem:[%s1 + $0x380] sm:$0xff]
  %v227 = vld [vmem:[%s1 + $0x388] sm:$0xff]
  %v228 = vld [vmem:[%s1 + $0x390] sm:$0xff]
  %v229 = vld [vmem:[%s1 + $0x398] sm:$0xff]
  %v230 = vld [vmem:[%s1 + $0x3a0] sm:$0xff]
  %v231 = vld [vmem:[%s1 + $0x3a8] sm:$0xff]
  %v232 = vld [vmem:[%s1 + $0x3b0] sm:$0xff]
  %v233 = vld [vmem:[%s1 + $0x3b8] sm:$0xff]
  %v234 = vld [vmem:[%s1 + $0x3c0] sm:$0xff]
  %v235 = vld [vmem:[%s1 + $0x3c8] sm:$0xff]
  %v236 = vld [vmem:[%s1 + $0x3d0] sm:$0xff]
  %v237 = vld [vmem:[%s1 + $0x3d8] sm:$0xff]
  %v238 = vld [vmem:[%s1 + $0x3e0] sm:$0xff]
  %v239 = vld [vmem:[%s1 + $0x3e8] sm:$0xff]
  %v240 = vld [vmem:[%s1 + $0x3f0] sm:$0xff]
  %v241 = vld [vmem:[%s1 + $0x3f8] sm:$0xff]
  %v242 = vld [vmem:[%s7] sm:$0xff]
  %v243 = vld [vmem:[%s7 + $0x8] sm:$0x3]
  %vm244 = vcmask 80896
  %v246 = vsel %vm244, %v114, 0
  %v249 = vsel %vm244, %v115, 0
  %v252 = vsel %vm244, %v116, 0
  %v255 = vsel %vm244, %v117, 0
  %v258 = vsel %vm244, %v118, 0
  %v261 = vsel %vm244, %v119, 0
  %v264 = vsel %vm244, %v120, 0
  %v267 = vsel %vm244, %v121, 0
  %v270 = vsel %vm244, %v122, 0
  %v273 = vsel %vm244, %v123, 0
  %v276 = vsel %vm244, %v124, 0
  %v279 = vsel %vm244, %v125, 0
  %v282 = vsel %vm244, %v126, 0
  %v285 = vsel %vm244, %v127, 0
  %v288 = vsel %vm244, %v128, 0
  %v291 = vsel %vm244, %v129, 0
  %v294 = vsel %vm244, %v130, 0
  %v297 = vsel %vm244, %v131, 0
  %v300 = vsel %vm244, %v132, 0
  %v303 = vsel %vm244, %v133, 0
  %v306 = vsel %vm244, %v134, 0
  %v309 = vsel %vm244, %v135, 0
  %v312 = vsel %vm244, %v136, 0
  %v315 = vsel %vm244, %v137, 0
  %v318 = vsel %vm244, %v138, 0
  %v321 = vsel %vm244, %v139, 0
  %v324 = vsel %vm244, %v140, 0
  %v327 = vsel %vm244, %v141, 0
  %v330 = vsel %vm244, %v142, 0
  %v333 = vsel %vm244, %v143, 0
  %v336 = vsel %vm244, %v144, 0
  %v339 = vsel %vm244, %v145, 0
  %v342 = vsel %vm244, %v146, 0
  %v345 = vsel %vm244, %v147, 0
  %v348 = vsel %vm244, %v148, 0
  %v351 = vsel %vm244, %v149, 0
  %v354 = vsel %vm244, %v150, 0
  %v357 = vsel %vm244, %v151, 0
  %v360 = vsel %vm244, %v152, 0
  %v363 = vsel %vm244, %v153, 0
  %v366 = vsel %vm244, %v154, 0
  %v369 = vsel %vm244, %v155, 0
  %v372 = vsel %vm244, %v156, 0
  %v375 = vsel %vm244, %v157, 0
  %v378 = vsel %vm244, %v158, 0
  %v381 = vsel %vm244, %v159, 0
  %v384 = vsel %vm244, %v160, 0
  %v387 = vsel %vm244, %v161, 0
  %v390 = vsel %vm244, %v162, 0
  %v393 = vsel %vm244, %v163, 0
  %v396 = vsel %vm244, %v164, 0
  %v399 = vsel %vm244, %v165, 0
  %v402 = vsel %vm244, %v166, 0
  %v405 = vsel %vm244, %v167, 0
  %v408 = vsel %vm244, %v168, 0
  %v411 = vsel %vm244, %v169, 0
  %v414 = vsel %vm244, %v170, 0
  %v417 = vsel %vm244, %v171, 0
  %v420 = vsel %vm244, %v172, 0
  %v423 = vsel %vm244, %v173, 0
  %v426 = vsel %vm244, %v174, 0
  %v429 = vsel %vm244, %v175, 0
  %v432 = vsel %vm244, %v176, 0
  %v435 = vsel %vm244, %v177, 0
  %v438 = vsel %vm244, %v178, 0
  %v441 = vsel %vm244, %v179, 0
  %v444 = vsel %vm244, %v180, 0
  %v447 = vsel %vm244, %v181, 0
  %v450 = vsel %vm244, %v182, 0
  %v453 = vsel %vm244, %v183, 0
  %v456 = vsel %vm244, %v184, 0
  %v459 = vsel %vm244, %v185, 0
  %v462 = vsel %vm244, %v186, 0
  %v465 = vsel %vm244, %v187, 0
  %v468 = vsel %vm244, %v188, 0
  %v471 = vsel %vm244, %v189, 0
  %v474 = vsel %vm244, %v190, 0
  %v477 = vsel %vm244, %v191, 0
  %v480 = vsel %vm244, %v192, 0
  %v483 = vsel %vm244, %v193, 0
  %v486 = vsel %vm244, %v194, 0
  %v489 = vsel %vm244, %v195, 0
  %v492 = vsel %vm244, %v196, 0
  %v495 = vsel %vm244, %v197, 0
  %v498 = vsel %vm244, %v198, 0
  %v501 = vsel %vm244, %v199, 0
  %v504 = vsel %vm244, %v200, 0
  %v507 = vsel %vm244, %v201, 0
  %v510 = vsel %vm244, %v202, 0
  %v513 = vsel %vm244, %v203, 0
  %v516 = vsel %vm244, %v204, 0
  %v519 = vsel %vm244, %v205, 0
  %v522 = vsel %vm244, %v206, 0
  %v525 = vsel %vm244, %v207, 0
  %v528 = vsel %vm244, %v208, 0
  %v531 = vsel %vm244, %v209, 0
  %v534 = vsel %vm244, %v210, 0
  %v537 = vsel %vm244, %v211, 0
  %v540 = vsel %vm244, %v212, 0
  %v543 = vsel %vm244, %v213, 0
  %v546 = vsel %vm244, %v214, 0
  %v549 = vsel %vm244, %v215, 0
  %v552 = vsel %vm244, %v216, 0
  %v555 = vsel %vm244, %v217, 0
  %v558 = vsel %vm244, %v218, 0
  %v561 = vsel %vm244, %v219, 0
  %v564 = vsel %vm244, %v220, 0
  %v567 = vsel %vm244, %v221, 0
  %v570 = vsel %vm244, %v222, 0
  %v573 = vsel %vm244, %v223, 0
  %v576 = vsel %vm244, %v224, 0
  %v579 = vsel %vm244, %v225, 0
  %v582 = vsel %vm244, %v226, 0
  %v585 = vsel %vm244, %v227, 0
  %v588 = vsel %vm244, %v228, 0
  %v591 = vsel %vm244, %v229, 0
  %v594 = vsel %vm244, %v230, 0
  %v597 = vsel %vm244, %v231, 0
  %v600 = vsel %vm244, %v232, 0
  %v603 = vsel %vm244, %v233, 0
  %v606 = vsel %vm244, %v234, 0
  %v609 = vsel %vm244, %v235, 0
  %v612 = vsel %vm244, %v236, 0
  %v615 = vsel %vm244, %v237, 0
  %v618 = vsel %vm244, %v238, 0
  %v621 = vsel %vm244, %v239, 0
  %v624 = vsel %vm244, %v240, 0
  %v627 = vsel %vm244, %v241, 0
  %vm629 = vcmask 1041408
  %v631 = vsel %vm629, %v243, 0
  %633 = vmatprep.subr.mxu0 0.0
  %634 = vmatpush1.msra.mxu0 %v242
  %635 = vmatprep.subr.mxu0 0.0
  %636 = vmatpush1.msra.mxu0 %v631
  %637 = vmatprep.subr.mxu0 0.0
  %638 = vmatpush1.msra.mxu0 0.0
  %639 = vmatprep.subr.mxu0 0.0
  %640 = vmatpush1.msra.mxu0 0.0
  %641 = vmatprep.subr.mxu0 0.0
  %642 = vmatpush1.msra.mxu0 0.0
  %643 = vmatprep.subr.mxu0 0.0
  %644 = vmatpush1.msra.mxu0 0.0
  %645 = vmatprep.subr.mxu0 0.0
  %646 = vmatpush1.msra.mxu0 0.0
  %647 = vmatprep.subr.mxu0 0.0
  %648 = vmatpush1.msra.mxu0 0.0
  %649 = vmatprep.subr.mxu0 0.0
  %650 = vmatpush1.msra.mxu0 0.0
  %651 = vmatprep.subr.mxu0 0.0
  %652 = vmatpush1.msra.mxu0 0.0
  %653 = vmatprep.subr.mxu0 0.0
  %654 = vmatpush1.msra.mxu0 0.0
  %655 = vmatprep.subr.mxu0 0.0
  %656 = vmatpush1.msra.mxu0 0.0
  %657 = vmatprep.subr.mxu0 0.0
  %658 = vmatpush1.msra.mxu0 0.0
  %659 = vmatprep.subr.mxu0 0.0
  %660 = vmatpush1.msra.mxu0 0.0
  %661 = vmatprep.subr.mxu0 0.0
  %662 = vmatpush1.msra.mxu0 0.0
  %663 = vmatprep.subr.mxu0 0.0
  %664 = vmatpush1.msra.mxu0 0.0
  %665 = vmatprep.subr.mxu0 0.0
  %666 = vmatpush1.msra.mxu0 0.0
  %667 = vmatprep.subr.mxu0 0.0
  %668 = vmatpush1.msra.mxu0 0.0
  %669 = vmatprep.subr.mxu0 0.0
  %670 = vmatpush1.msra.mxu0 0.0
  %671 = vmatprep.subr.mxu0 0.0
  %672 = vmatpush1.msra.mxu0 0.0
  %673 = vmatprep.subr.mxu0 0.0
  %674 = vmatpush1.msra.mxu0 0.0
  %675 = vmatprep.subr.mxu0 0.0
  %676 = vmatpush1.msra.mxu0 0.0
  %677 = vmatprep.subr.mxu0 0.0
  %678 = vmatpush1.msra.mxu0 0.0
  %679 = vmatprep.subr.mxu0 0.0
  %680 = vmatpush1.msra.mxu0 0.0
  %681 = vmatprep.subr.mxu0 0.0
  %682 = vmatpush1.msra.mxu0 0.0
  %683 = vmatprep.subr.mxu0 0.0
  %684 = vmatpush1.msra.mxu0 0.0
  %685 = vmatprep.subr.mxu0 0.0
  %686 = vmatpush1.msra.mxu0 0.0
  %687 = vmatprep.subr.mxu0 0.0
  %688 = vmatpush1.msra.mxu0 0.0
  %689 = vmatprep.subr.mxu0 0.0
  %690 = vmatpush1.msra.mxu0 0.0
  %691 = vmatprep.subr.mxu0 0.0
  %692 = vmatpush1.msra.mxu0 0.0
  %693 = vmatprep.subr.mxu0 0.0
  %694 = vmatpush1.msra.mxu0 0.0
  %695 = vmatprep.subr.mxu0 0.0
  %696 = vmatpush1.msra.mxu0 0.0
  %697 = vmatprep.mubr.f32.mxu0 0.0
  %698 = vmatmul.mubr.f32.gmra.mrb[0].mxu0 %v246
  %v699 = vpop.f32.mrb[0].mxu0
  %v700 = vadd.f32 0.0, %v699
  %v701 = vpop.f32.mrb[0].mxu0
  %702 = vmatprep.mubr.f32.mxu0 0.0
  %703 = vmatmul.mubr.f32.gmra.mrb[0].mxu0 %v249
  %v704 = vpop.f32.mrb[0].mxu0
  %v705 = vadd.f32 0.0, %v704
  %v706 = vpop.f32.mrb[0].mxu0
  %707 = vmatprep.mubr.f32.mxu0 0.0
  %708 = vmatmul.mubr.f32.gmra.mrb[0].mxu0 %v252
  %v709 = vpop.f32.mrb[0].mxu0
  %v710 = vadd.f32 0.0, %v709
  %v711 = vpop.f32.mrb[0].mxu0
  %712 = vmatprep.mubr.f32.mxu0 0.0
  %713 = vmatmul.mubr.f32.gmra.mrb[0].mxu0 %v255
  %v714 = vpop.f32.mrb[0].mxu0
  %v715 = vadd.f32 0.0, %v714
  %v716 = vpop.f32.mrb[0].mxu0
  %717 = vmatprep.mubr.f32.mxu0 0.0
  %718 = vmatmul.mubr.f32.gmra.mrb[0].mxu0 %v258
  %v719 = vpop.f32.mrb[0].mxu0
  %v720 = vadd.f32 0.0, %v719
  %v721 = vpop.f32.mrb[0].mxu0
  %722 = vmatprep.mubr.f32.mxu0 0.0
  %723 = vmatmul.mubr.f32.gmra.mrb[0].mxu0 %v261
  %v724 = vpop.f32.mrb[0].mxu0
  %v725 = vadd.f32 0.0, %v724
  %v726 = vpop.f32.mrb[0].mxu0
  %727 = vmatprep.mubr.f32.mxu0 0.0
  %728 = vmatmul.mubr.f32.gmra.mrb[0].mxu0 %v264
  %v729 = vpop.f32.mrb[0].mxu0
  %v730 = vadd.f32 0.0, %v729
  %v731 = vpop.f32.mrb[0].mxu0
  %732 = vmatprep.mubr.f32.mxu0 0.0
  %733 = vmatmul.mubr.f32.gmra.mrb[0].mxu0 %v267
  %v734 = vpop.f32.mrb[0].mxu0
  %v735 = vadd.f32 0.0, %v734
  %v736 = vpop.f32.mrb[0].mxu0
  %737 = vmatprep.mubr.f32.mxu0 0.0
  %738 = vmatmul.mubr.f32.gmra.mrb[0].mxu0 %v270
  %v739 = vpop.f32.mrb[0].mxu0
  %v740 = vadd.f32 0.0, %v739
  %v741 = vpop.f32.mrb[0].mxu0
  %742 = vmatprep.mubr.f32.mxu0 0.0
  %743 = vmatmul.mubr.f32.gmra.mrb[0].mxu0 %v273
  %v744 = vpop.f32.mrb[0].mxu0
  %v745 = vadd.f32 0.0, %v744
  %v746 = vpop.f32.mrb[0].mxu0
  %747 = vmatprep.mubr.f32.mxu0 0.0
  %748 = vmatmul.mubr.f32.gmra.mrb[0].mxu0 %v276
  %v749 = vpop.f32.mrb[0].mxu0
  %v750 = vadd.f32 0.0, %v749
  %v751 = vpop.f32.mrb[0].mxu0
  %752 = vmatprep.mubr.f32.mxu0 0.0
  %753 = vmatmul.mubr.f32.gmra.mrb[0].mxu0 %v279
  %v754 = vpop.f32.mrb[0].mxu0
  %v755 = vadd.f32 0.0, %v754
  %v756 = vpop.f32.mrb[0].mxu0
  %757 = vmatprep.mubr.f32.mxu0 0.0
  %758 = vmatmul.mubr.f32.gmra.mrb[0].mxu0 %v282
  %v759 = vpop.f32.mrb[0].mxu0
  %v760 = vadd.f32 0.0, %v759
  %v761 = vpop.f32.mrb[0].mxu0
  %762 = vmatprep.mubr.f32.mxu0 0.0
  %763 = vmatmul.mubr.f32.gmra.mrb[0].mxu0 %v285
  %v764 = vpop.f32.mrb[0].mxu0
  %v765 = vadd.f32 0.0, %v764
  %v766 = vpop.f32.mrb[0].mxu0
  %767 = vmatprep.mubr.f32.mxu0 0.0
  %768 = vmatmul.mubr.f32.gmra.mrb[0].mxu0 %v288
  %v769 = vpop.f32.mrb[0].mxu0
  %v770 = vadd.f32 0.0, %v769
  %v771 = vpop.f32.mrb[0].mxu0
  %772 = vmatprep.mubr.f32.mxu0 0.0
  %773 = vmatmul.mubr.f32.gmra.mrb[0].mxu0 %v291
  %v774 = vpop.f32.mrb[0].mxu0
  %v775 = vadd.f32 0.0, %v774
  %v776 = vpop.f32.mrb[0].mxu0
  %777 = vmatprep.mubr.f32.mxu0 0.0
  %778 = vmatmul.mubr.f32.gmra.mrb[0].mxu0 %v294
  %v779 = vpop.f32.mrb[0].mxu0
  %v780 = vadd.f32 0.0, %v779
  %v781 = vpop.f32.mrb[0].mxu0
  %782 = vmatprep.mubr.f32.mxu0 0.0
  %783 = vmatmul.mubr.f32.gmra.mrb[0].mxu0 %v297
  %v784 = vpop.f32.mrb[0].mxu0
  %v785 = vadd.f32 0.0, %v784
  %v786 = vpop.f32.mrb[0].mxu0
  %787 = vmatprep.mubr.f32.mxu0 0.0
  %788 = vmatmul.mubr.f32.gmra.mrb[0].mxu0 %v300
  %v789 = vpop.f32.mrb[0].mxu0
  %v790 = vadd.f32 0.0, %v789
  %v791 = vpop.f32.mrb[0].mxu0
  %792 = vmatprep.mubr.f32.mxu0 0.0
  %793 = vmatmul.mubr.f32.gmra.mrb[0].mxu0 %v303
  %v794 = vpop.f32.mrb[0].mxu0
  %v795 = vadd.f32 0.0, %v794
  %v796 = vpop.f32.mrb[0].mxu0
  %797 = vmatprep.mubr.f32.mxu0 0.0
  %798 = vmatmul.mubr.f32.gmra.mrb[0].mxu0 %v306
  %v799 = vpop.f32.mrb[0].mxu0
  %v800 = vadd.f32 0.0, %v799
  %v801 = vpop.f32.mrb[0].mxu0
  %802 = vmatprep.mubr.f32.mxu0 0.0
  %803 = vmatmul.mubr.f32.gmra.mrb[0].mxu0 %v309
  %v804 = vpop.f32.mrb[0].mxu0
  %v805 = vadd.f32 0.0, %v804
  %v806 = vpop.f32.mrb[0].mxu0
  %807 = vmatprep.mubr.f32.mxu0 0.0
  %808 = vmatmul.mubr.f32.gmra.mrb[0].mxu0 %v312
  %v809 = vpop.f32.mrb[0].mxu0
  %v810 = vadd.f32 0.0, %v809
  %v811 = vpop.f32.mrb[0].mxu0
  %812 = vmatprep.mubr.f32.mxu0 0.0
  %813 = vmatmul.mubr.f32.gmra.mrb[0].mxu0 %v315
  %v814 = vpop.f32.mrb[0].mxu0
  %v815 = vadd.f32 0.0, %v814
  %v816 = vpop.f32.mrb[0].mxu0
  %817 = vmatprep.mubr.f32.mxu0 0.0
  %818 = vmatmul.mubr.f32.gmra.mrb[0].mxu0 %v318
  %v819 = vpop.f32.mrb[0].mxu0
  %v820 = vadd.f32 0.0, %v819
  %v821 = vpop.f32.mrb[0].mxu0
  %822 = vmatprep.mubr.f32.mxu0 0.0
  %823 = vmatmul.mubr.f32.gmra.mrb[0].mxu0 %v321
  %v824 = vpop.f32.mrb[0].mxu0
  %v825 = vadd.f32 0.0, %v824
  %v826 = vpop.f32.mrb[0].mxu0
  %827 = vmatprep.mubr.f32.mxu0 0.0
  %828 = vmatmul.mubr.f32.gmra.mrb[0].mxu0 %v324
  %v829 = vpop.f32.mrb[0].mxu0
  %v830 = vadd.f32 0.0, %v829
  %v831 = vpop.f32.mrb[0].mxu0
  %832 = vmatprep.mubr.f32.mxu0 0.0
  %833 = vmatmul.mubr.f32.gmra.mrb[0].mxu0 %v327
  %v834 = vpop.f32.mrb[0].mxu0
  %v835 = vadd.f32 0.0, %v834
  %v836 = vpop.f32.mrb[0].mxu0
  %837 = vmatprep.mubr.f32.mxu0 0.0
  %838 = vmatmul.mubr.f32.gmra.mrb[0].mxu0 %v330
  %v839 = vpop.f32.mrb[0].mxu0
  %v840 = vadd.f32 0.0, %v839
  %v841 = vpop.f32.mrb[0].mxu0
  %842 = vmatprep.mubr.f32.mxu0 0.0
  %843 = vmatmul.mubr.f32.gmra.mrb[0].mxu0 %v333
  %v844 = vpop.f32.mrb[0].mxu0
  %v845 = vadd.f32 0.0, %v844
  %v846 = vpop.f32.mrb[0].mxu0
  %847 = vmatprep.mubr.f32.mxu0 0.0
  %848 = vmatmul.mubr.f32.gmra.mrb[0].mxu0 %v336
  %v849 = vpop.f32.mrb[0].mxu0
  %v850 = vadd.f32 0.0, %v849
  %v851 = vpop.f32.mrb[0].mxu0
  %852 = vmatprep.mubr.f32.mxu0 0.0
  %853 = vmatmul.mubr.f32.gmra.mrb[0].mxu0 %v339
  %v854 = vpop.f32.mrb[0].mxu0
  %v855 = vadd.f32 0.0, %v854
  %v856 = vpop.f32.mrb[0].mxu0
  %857 = vmatprep.mubr.f32.mxu0 0.0
  %858 = vmatmul.mubr.f32.gmra.mrb[0].mxu0 %v342
  %v859 = vpop.f32.mrb[0].mxu0
  %v860 = vadd.f32 0.0, %v859
  %v861 = vpop.f32.mrb[0].mxu0
  %862 = vmatprep.mubr.f32.mxu0 0.0
  %863 = vmatmul.mubr.f32.gmra.mrb[0].mxu0 %v345
  %v864 = vpop.f32.mrb[0].mxu0
  %v865 = vadd.f32 0.0, %v864
  %v866 = vpop.f32.mrb[0].mxu0
  %867 = vmatprep.mubr.f32.mxu0 0.0
  %868 = vmatmul.mubr.f32.gmra.mrb[0].mxu0 %v348
  %v869 = vpop.f32.mrb[0].mxu0
  %v870 = vadd.f32 0.0, %v869
  %v871 = vpop.f32.mrb[0].mxu0
  %872 = vmatprep.mubr.f32.mxu0 0.0
  %873 = vmatmul.mubr.f32.gmra.mrb[0].mxu0 %v351
  %v874 = vpop.f32.mrb[0].mxu0
  %v875 = vadd.f32 0.0, %v874
  %v876 = vpop.f32.mrb[0].mxu0
  %877 = vmatprep.mubr.f32.mxu0 0.0
  %878 = vmatmul.mubr.f32.gmra.mrb[0].mxu0 %v354
  %v879 = vpop.f32.mrb[0].mxu0
  %v880 = vadd.f32 0.0, %v879
  %v881 = vpop.f32.mrb[0].mxu0
  %882 = vmatprep.mubr.f32.mxu0 0.0
  %883 = vmatmul.mubr.f32.gmra.mrb[0].mxu0 %v357
  %v884 = vpop.f32.mrb[0].mxu0
  %v885 = vadd.f32 0.0, %v884
  %v886 = vpop.f32.mrb[0].mxu0
  %887 = vmatprep.mubr.f32.mxu0 0.0
  %888 = vmatmul.mubr.f32.gmra.mrb[0].mxu0 %v360
  %v889 = vpop.f32.mrb[0].mxu0
  %v890 = vadd.f32 0.0, %v889
  %v891 = vpop.f32.mrb[0].mxu0
  %892 = vmatprep.mubr.f32.mxu0 0.0
  %893 = vmatmul.mubr.f32.gmra.mrb[0].mxu0 %v363
  %v894 = vpop.f32.mrb[0].mxu0
  %v895 = vadd.f32 0.0, %v894
  %v896 = vpop.f32.mrb[0].mxu0
  %897 = vmatprep.mubr.f32.mxu0 0.0
  %898 = vmatmul.mubr.f32.gmra.mrb[0].mxu0 %v366
  %v899 = vpop.f32.mrb[0].mxu0
  %v900 = vadd.f32 0.0, %v899
  %v901 = vpop.f32.mrb[0].mxu0
  %902 = vmatprep.mubr.f32.mxu0 0.0
  %903 = vmatmul.mubr.f32.gmra.mrb[0].mxu0 %v369
  %v904 = vpop.f32.mrb[0].mxu0
  %v905 = vadd.f32 0.0, %v904
  %v906 = vpop.f32.mrb[0].mxu0
  %907 = vmatprep.mubr.f32.mxu0 0.0
  %908 = vmatmul.mubr.f32.gmra.mrb[0].mxu0 %v372
  %v909 = vpop.f32.mrb[0].mxu0
  %v910 = vadd.f32 0.0, %v909
  %v911 = vpop.f32.mrb[0].mxu0
  %912 = vmatprep.mubr.f32.mxu0 0.0
  %913 = vmatmul.mubr.f32.gmra.mrb[0].mxu0 %v375
  %v914 = vpop.f32.mrb[0].mxu0
  %v915 = vadd.f32 0.0, %v914
  %v916 = vpop.f32.mrb[0].mxu0
  %917 = vmatprep.mubr.f32.mxu0 0.0
  %918 = vmatmul.mubr.f32.gmra.mrb[0].mxu0 %v378
  %v919 = vpop.f32.mrb[0].mxu0
  %v920 = vadd.f32 0.0, %v919
  %v921 = vpop.f32.mrb[0].mxu0
  %922 = vmatprep.mubr.f32.mxu0 0.0
  %923 = vmatmul.mubr.f32.gmra.mrb[0].mxu0 %v381
  %v924 = vpop.f32.mrb[0].mxu0
  %v925 = vadd.f32 0.0, %v924
  %v926 = vpop.f32.mrb[0].mxu0
  %927 = vmatprep.mubr.f32.mxu0 0.0
  %928 = vmatmul.mubr.f32.gmra.mrb[0].mxu0 %v384
  %v929 = vpop.f32.mrb[0].mxu0
  %v930 = vadd.f32 0.0, %v929
  %v931 = vpop.f32.mrb[0].mxu0
  %932 = vmatprep.mubr.f32.mxu0 0.0
  %933 = vmatmul.mubr.f32.gmra.mrb[0].mxu0 %v387
  %v934 = vpop.f32.mrb[0].mxu0
  %v935 = vadd.f32 0.0, %v934
  %v936 = vpop.f32.mrb[0].mxu0
  %937 = vmatprep.mubr.f32.mxu0 0.0
  %938 = vmatmul.mubr.f32.gmra.mrb[0].mxu0 %v390
  %v939 = vpop.f32.mrb[0].mxu0
  %v940 = vadd.f32 0.0, %v939
  %v941 = vpop.f32.mrb[0].mxu0
  %942 = vmatprep.mubr.f32.mxu0 0.0
  %943 = vmatmul.mubr.f32.gmra.mrb[0].mxu0 %v393
  %v944 = vpop.f32.mrb[0].mxu0
  %v945 = vadd.f32 0.0, %v944
  %v946 = vpop.f32.mrb[0].mxu0
  %947 = vmatprep.mubr.f32.mxu0 0.0
  %948 = vmatmul.mubr.f32.gmra.mrb[0].mxu0 %v396
  %v949 = vpop.f32.mrb[0].mxu0
  %v950 = vadd.f32 0.0, %v949
  %v951 = vpop.f32.mrb[0].mxu0
  %952 = vmatprep.mubr.f32.mxu0 0.0
  %953 = vmatmul.mubr.f32.gmra.mrb[0].mxu0 %v399
  %v954 = vpop.f32.mrb[0].mxu0
  %v955 = vadd.f32 0.0, %v954
  %v956 = vpop.f32.mrb[0].mxu0
  %957 = vmatprep.mubr.f32.mxu0 0.0
  %958 = vmatmul.mubr.f32.gmra.mrb[0].mxu0 %v402
  %v959 = vpop.f32.mrb[0].mxu0
  %v960 = vadd.f32 0.0, %v959
  %v961 = vpop.f32.mrb[0].mxu0
  %962 = vmatprep.mubr.f32.mxu0 0.0
  %963 = vmatmul.mubr.f32.gmra.mrb[0].mxu0 %v405
  %v964 = vpop.f32.mrb[0].mxu0
  %v965 = vadd.f32 0.0, %v964
  %v966 = vpop.f32.mrb[0].mxu0
  %967 = vmatprep.mubr.f32.mxu0 0.0
  %968 = vmatmul.mubr.f32.gmra.mrb[0].mxu0 %v408
  %v969 = vpop.f32.mrb[0].mxu0
  %v970 = vadd.f32 0.0, %v969
  %v971 = vpop.f32.mrb[0].mxu0
  %972 = vmatprep.mubr.f32.mxu0 0.0
  %973 = vmatmul.mubr.f32.gmra.mrb[0].mxu0 %v411
  %v974 = vpop.f32.mrb[0].mxu0
  %v975 = vadd.f32 0.0, %v974
  %v976 = vpop.f32.mrb[0].mxu0
  %977 = vmatprep.mubr.f32.mxu0 0.0
  %978 = vmatmul.mubr.f32.gmra.mrb[0].mxu0 %v414
  %v979 = vpop.f32.mrb[0].mxu0
  %v980 = vadd.f32 0.0, %v979
  %v981 = vpop.f32.mrb[0].mxu0
  %982 = vmatprep.mubr.f32.mxu0 0.0
  %983 = vmatmul.mubr.f32.gmra.mrb[0].mxu0 %v417
  %v984 = vpop.f32.mrb[0].mxu0
  %v985 = vadd.f32 0.0, %v984
  %v986 = vpop.f32.mrb[0].mxu0
  %987 = vmatprep.mubr.f32.mxu0 0.0
  %988 = vmatmul.mubr.f32.gmra.mrb[0].mxu0 %v420
  %v989 = vpop.f32.mrb[0].mxu0
  %v990 = vadd.f32 0.0, %v989
  %v991 = vpop.f32.mrb[0].mxu0
  %992 = vmatprep.mubr.f32.mxu0 0.0
  %993 = vmatmul.mubr.f32.gmra.mrb[0].mxu0 %v423
  %v994 = vpop.f32.mrb[0].mxu0
  %v995 = vadd.f32 0.0, %v994
  %v996 = vpop.f32.mrb[0].mxu0
  %997 = vmatprep.mubr.f32.mxu0 0.0
  %998 = vmatmul.mubr.f32.gmra.mrb[0].mxu0 %v426
  %v999 = vpop.f32.mrb[0].mxu0
  %v1000 = vadd.f32 0.0, %v999
  %v1001 = vpop.f32.mrb[0].mxu0
  %1002 = vmatprep.mubr.f32.mxu0 0.0
  %1003 = vmatmul.mubr.f32.gmra.mrb[0].mxu0 %v429
  %v1004 = vpop.f32.mrb[0].mxu0
  %v1005 = vadd.f32 0.0, %v1004
  %v1006 = vpop.f32.mrb[0].mxu0
  %1007 = vmatprep.mubr.f32.mxu0 0.0
  %1008 = vmatmul.mubr.f32.gmra.mrb[0].mxu0 %v432
  %v1009 = vpop.f32.mrb[0].mxu0
  %v1010 = vadd.f32 0.0, %v1009
  %v1011 = vpop.f32.mrb[0].mxu0
  %1012 = vmatprep.mubr.f32.mxu0 0.0
  %1013 = vmatmul.mubr.f32.gmra.mrb[0].mxu0 %v435
  %v1014 = vpop.f32.mrb[0].mxu0
  %v1015 = vadd.f32 0.0, %v1014
  %v1016 = vpop.f32.mrb[0].mxu0
  %1017 = vmatprep.mubr.f32.mxu0 0.0
  %1018 = vmatmul.mubr.f32.gmra.mrb[0].mxu0 %v438
  %v1019 = vpop.f32.mrb[0].mxu0
  %v1020 = vadd.f32 0.0, %v1019
  %v1021 = vpop.f32.mrb[0].mxu0
  %1022 = vmatprep.mubr.f32.mxu0 0.0
  %1023 = vmatmul.mubr.f32.gmra.mrb[0].mxu0 %v441
  %v1024 = vpop.f32.mrb[0].mxu0
  %v1025 = vadd.f32 0.0, %v1024
  %v1026 = vpop.f32.mrb[0].mxu0
  %1027 = vmatprep.mubr.f32.mxu0 0.0
  %1028 = vmatmul.mubr.f32.gmra.mrb[0].mxu0 %v444
  %v1029 = vpop.f32.mrb[0].mxu0
  %v1030 = vadd.f32 0.0, %v1029
  %v1031 = vpop.f32.mrb[0].mxu0
  %1032 = vmatprep.mubr.f32.mxu0 0.0
  %1033 = vmatmul.mubr.f32.gmra.mrb[0].mxu0 %v447
  %v1034 = vpop.f32.mrb[0].mxu0
  %v1035 = vadd.f32 0.0, %v1034
  %v1036 = vpop.f32.mrb[0].mxu0
  %1037 = vmatprep.mubr.f32.mxu0 0.0
  %1038 = vmatmul.mubr.f32.gmra.mrb[0].mxu0 %v450
  %v1039 = vpop.f32.mrb[0].mxu0
  %v1040 = vadd.f32 0.0, %v1039
  %v1041 = vpop.f32.mrb[0].mxu0
  %1042 = vmatprep.mubr.f32.mxu0 0.0
  %1043 = vmatmul.mubr.f32.gmra.mrb[0].mxu0 %v453
  %v1044 = vpop.f32.mrb[0].mxu0
  %v1045 = vadd.f32 0.0, %v1044
  %v1046 = vpop.f32.mrb[0].mxu0
  %1047 = vmatprep.mubr.f32.mxu0 0.0
  %1048 = vmatmul.mubr.f32.gmra.mrb[0].mxu0 %v456
  %v1049 = vpop.f32.mrb[0].mxu0
  %v1050 = vadd.f32 0.0, %v1049
  %v1051 = vpop.f32.mrb[0].mxu0
  %1052 = vmatprep.mubr.f32.mxu0 0.0
  %1053 = vmatmul.mubr.f32.gmra.mrb[0].mxu0 %v459
  %v1054 = vpop.f32.mrb[0].mxu0
  %v1055 = vadd.f32 0.0, %v1054
  %v1056 = vpop.f32.mrb[0].mxu0
  %1057 = vmatprep.mubr.f32.mxu0 0.0
  %1058 = vmatmul.mubr.f32.gmra.mrb[0].mxu0 %v462
  %v1059 = vpop.f32.mrb[0].mxu0
  %v1060 = vadd.f32 0.0, %v1059
  %v1061 = vpop.f32.mrb[0].mxu0
  %1062 = vmatprep.mubr.f32.mxu0 0.0
  %1063 = vmatmul.mubr.f32.gmra.mrb[0].mxu0 %v465
  %v1064 = vpop.f32.mrb[0].mxu0
  %v1065 = vadd.f32 0.0, %v1064
  %v1066 = vpop.f32.mrb[0].mxu0
  %1067 = vmatprep.mubr.f32.mxu0 0.0
  %1068 = vmatmul.mubr.f32.gmra.mrb[0].mxu0 %v468
  %v1069 = vpop.f32.mrb[0].mxu0
  %v1070 = vadd.f32 0.0, %v1069
  %v1071 = vpop.f32.mrb[0].mxu0
  %1072 = vmatprep.mubr.f32.mxu0 0.0
  %1073 = vmatmul.mubr.f32.gmra.mrb[0].mxu0 %v471
  %v1074 = vpop.f32.mrb[0].mxu0
  %v1075 = vadd.f32 0.0, %v1074
  %v1076 = vpop.f32.mrb[0].mxu0
  %1077 = vmatprep.mubr.f32.mxu0 0.0
  %1078 = vmatmul.mubr.f32.gmra.mrb[0].mxu0 %v474
  %v1079 = vpop.f32.mrb[0].mxu0
  %v1080 = vadd.f32 0.0, %v1079
  %v1081 = vpop.f32.mrb[0].mxu0
  %1082 = vmatprep.mubr.f32.mxu0 0.0
  %1083 = vmatmul.mubr.f32.gmra.mrb[0].mxu0 %v477
  %v1084 = vpop.f32.mrb[0].mxu0
  %v1085 = vadd.f32 0.0, %v1084
  %v1086 = vpop.f32.mrb[0].mxu0
  %1087 = vmatprep.mubr.f32.mxu0 0.0
  %1088 = vmatmul.mubr.f32.gmra.mrb[0].mxu0 %v480
  %v1089 = vpop.f32.mrb[0].mxu0
  %v1090 = vadd.f32 0.0, %v1089
  %v1091 = vpop.f32.mrb[0].mxu0
  %1092 = vmatprep.mubr.f32.mxu0 0.0
  %1093 = vmatmul.mubr.f32.gmra.mrb[0].mxu0 %v483
  %v1094 = vpop.f32.mrb[0].mxu0
  %v1095 = vadd.f32 0.0, %v1094
  %v1096 = vpop.f32.mrb[0].mxu0
  %1097 = vmatprep.mubr.f32.mxu0 0.0
  %1098 = vmatmul.mubr.f32.gmra.mrb[0].mxu0 %v486
  %v1099 = vpop.f32.mrb[0].mxu0
  %v1100 = vadd.f32 0.0, %v1099
  %v1101 = vpop.f32.mrb[0].mxu0
  %1102 = vmatprep.mubr.f32.mxu0 0.0
  %1103 = vmatmul.mubr.f32.gmra.mrb[0].mxu0 %v489
  %v1104 = vpop.f32.mrb[0].mxu0
  %v1105 = vadd.f32 0.0, %v1104
  %v1106 = vpop.f32.mrb[0].mxu0
  %1107 = vmatprep.mubr.f32.mxu0 0.0
  %1108 = vmatmul.mubr.f32.gmra.mrb[0].mxu0 %v492
  %v1109 = vpop.f32.mrb[0].mxu0
  %v1110 = vadd.f32 0.0, %v1109
  %v1111 = vpop.f32.mrb[0].mxu0
  %1112 = vmatprep.mubr.f32.mxu0 0.0
  %1113 = vmatmul.mubr.f32.gmra.mrb[0].mxu0 %v495
  %v1114 = vpop.f32.mrb[0].mxu0
  %v1115 = vadd.f32 0.0, %v1114
  %v1116 = vpop.f32.mrb[0].mxu0
  %1117 = vmatprep.mubr.f32.mxu0 0.0
  %1118 = vmatmul.mubr.f32.gmra.mrb[0].mxu0 %v498
  %v1119 = vpop.f32.mrb[0].mxu0
  %v1120 = vadd.f32 0.0, %v1119
  %v1121 = vpop.f32.mrb[0].mxu0
  %1122 = vmatprep.mubr.f32.mxu0 0.0
  %1123 = vmatmul.mubr.f32.gmra.mrb[0].mxu0 %v501
  %v1124 = vpop.f32.mrb[0].mxu0
  %v1125 = vadd.f32 0.0, %v1124
  %v1126 = vpop.f32.mrb[0].mxu0
  %1127 = vmatprep.mubr.f32.mxu0 0.0
  %1128 = vmatmul.mubr.f32.gmra.mrb[0].mxu0 %v504
  %v1129 = vpop.f32.mrb[0].mxu0
  %v1130 = vadd.f32 0.0, %v1129
  %v1131 = vpop.f32.mrb[0].mxu0
  %1132 = vmatprep.mubr.f32.mxu0 0.0
  %1133 = vmatmul.mubr.f32.gmra.mrb[0].mxu0 %v507
  %v1134 = vpop.f32.mrb[0].mxu0
  %v1135 = vadd.f32 0.0, %v1134
  %v1136 = vpop.f32.mrb[0].mxu0
  %1137 = vmatprep.mubr.f32.mxu0 0.0
  %1138 = vmatmul.mubr.f32.gmra.mrb[0].mxu0 %v510
  %v1139 = vpop.f32.mrb[0].mxu0
  %v1140 = vadd.f32 0.0, %v1139
  %v1141 = vpop.f32.mrb[0].mxu0
  %1142 = vmatprep.mubr.f32.mxu0 0.0
  %1143 = vmatmul.mubr.f32.gmra.mrb[0].mxu0 %v513
  %v1144 = vpop.f32.mrb[0].mxu0
  %v1145 = vadd.f32 0.0, %v1144
  %v1146 = vpop.f32.mrb[0].mxu0
  %1147 = vmatprep.mubr.f32.mxu0 0.0
  %1148 = vmatmul.mubr.f32.gmra.mrb[0].mxu0 %v516
  %v1149 = vpop.f32.mrb[0].mxu0
  %v1150 = vadd.f32 0.0, %v1149
  %v1151 = vpop.f32.mrb[0].mxu0
  %1152 = vmatprep.mubr.f32.mxu0 0.0
  %1153 = vmatmul.mubr.f32.gmra.mrb[0].mxu0 %v519
  %v1154 = vpop.f32.mrb[0].mxu0
  %v1155 = vadd.f32 0.0, %v1154
  %v1156 = vpop.f32.mrb[0].mxu0
  %1157 = vmatprep.mubr.f32.mxu0 0.0
  %1158 = vmatmul.mubr.f32.gmra.mrb[0].mxu0 %v522
  %v1159 = vpop.f32.mrb[0].mxu0
  %v1160 = vadd.f32 0.0, %v1159
  %v1161 = vpop.f32.mrb[0].mxu0
  %1162 = vmatprep.mubr.f32.mxu0 0.0
  %1163 = vmatmul.mubr.f32.gmra.mrb[0].mxu0 %v525
  %v1164 = vpop.f32.mrb[0].mxu0
  %v1165 = vadd.f32 0.0, %v1164
  %v1166 = vpop.f32.mrb[0].mxu0
  %1167 = vmatprep.mubr.f32.mxu0 0.0
  %1168 = vmatmul.mubr.f32.gmra.mrb[0].mxu0 %v528
  %v1169 = vpop.f32.mrb[0].mxu0
  %v1170 = vadd.f32 0.0, %v1169
  %v1171 = vpop.f32.mrb[0].mxu0
  %1172 = vmatprep.mubr.f32.mxu0 0.0
  %1173 = vmatmul.mubr.f32.gmra.mrb[0].mxu0 %v531
  %v1174 = vpop.f32.mrb[0].mxu0
  %v1175 = vadd.f32 0.0, %v1174
  %v1176 = vpop.f32.mrb[0].mxu0
  %1177 = vmatprep.mubr.f32.mxu0 0.0
  %1178 = vmatmul.mubr.f32.gmra.mrb[0].mxu0 %v534
  %v1179 = vpop.f32.mrb[0].mxu0
  %v1180 = vadd.f32 0.0, %v1179
  %v1181 = vpop.f32.mrb[0].mxu0
  %1182 = vmatprep.mubr.f32.mxu0 0.0
  %1183 = vmatmul.mubr.f32.gmra.mrb[0].mxu0 %v537
  %v1184 = vpop.f32.mrb[0].mxu0
  %v1185 = vadd.f32 0.0, %v1184
  %v1186 = vpop.f32.mrb[0].mxu0
  %1187 = vmatprep.mubr.f32.mxu0 0.0
  %1188 = vmatmul.mubr.f32.gmra.mrb[0].mxu0 %v540
  %v1189 = vpop.f32.mrb[0].mxu0
  %v1190 = vadd.f32 0.0, %v1189
  %v1191 = vpop.f32.mrb[0].mxu0
  %1192 = vmatprep.mubr.f32.mxu0 0.0
  %1193 = vmatmul.mubr.f32.gmra.mrb[0].mxu0 %v543
  %v1194 = vpop.f32.mrb[0].mxu0
  %v1195 = vadd.f32 0.0, %v1194
  %v1196 = vpop.f32.mrb[0].mxu0
  %1197 = vmatprep.mubr.f32.mxu0 0.0
  %1198 = vmatmul.mubr.f32.gmra.mrb[0].mxu0 %v546
  %v1199 = vpop.f32.mrb[0].mxu0
  %v1200 = vadd.f32 0.0, %v1199
  %v1201 = vpop.f32.mrb[0].mxu0
  %1202 = vmatprep.mubr.f32.mxu0 0.0
  %1203 = vmatmul.mubr.f32.gmra.mrb[0].mxu0 %v549
  %v1204 = vpop.f32.mrb[0].mxu0
  %v1205 = vadd.f32 0.0, %v1204
  %v1206 = vpop.f32.mrb[0].mxu0
  %1207 = vmatprep.mubr.f32.mxu0 0.0
  %1208 = vmatmul.mubr.f32.gmra.mrb[0].mxu0 %v552
  %v1209 = vpop.f32.mrb[0].mxu0
  %v1210 = vadd.f32 0.0, %v1209
  %v1211 = vpop.f32.mrb[0].mxu0
  %1212 = vmatprep.mubr.f32.mxu0 0.0
  %1213 = vmatmul.mubr.f32.gmra.mrb[0].mxu0 %v555
  %v1214 = vpop.f32.mrb[0].mxu0
  %v1215 = vadd.f32 0.0, %v1214
  %v1216 = vpop.f32.mrb[0].mxu0
  %1217 = vmatprep.mubr.f32.mxu0 0.0
  %1218 = vmatmul.mubr.f32.gmra.mrb[0].mxu0 %v558
  %v1219 = vpop.f32.mrb[0].mxu0
  %v1220 = vadd.f32 0.0, %v1219
  %v1221 = vpop.f32.mrb[0].mxu0
  %1222 = vmatprep.mubr.f32.mxu0 0.0
  %1223 = vmatmul.mubr.f32.gmra.mrb[0].mxu0 %v561
  %v1224 = vpop.f32.mrb[0].mxu0
  %v1225 = vadd.f32 0.0, %v1224
  %v1226 = vpop.f32.mrb[0].mxu0
  %1227 = vmatprep.mubr.f32.mxu0 0.0
  %1228 = vmatmul.mubr.f32.gmra.mrb[0].mxu0 %v564
  %v1229 = vpop.f32.mrb[0].mxu0
  %v1230 = vadd.f32 0.0, %v1229
  %v1231 = vpop.f32.mrb[0].mxu0
  %1232 = vmatprep.mubr.f32.mxu0 0.0
  %1233 = vmatmul.mubr.f32.gmra.mrb[0].mxu0 %v567
  %v1234 = vpop.f32.mrb[0].mxu0
  %v1235 = vadd.f32 0.0, %v1234
  %v1236 = vpop.f32.mrb[0].mxu0
  %1237 = vmatprep.mubr.f32.mxu0 0.0
  %1238 = vmatmul.mubr.f32.gmra.mrb[0].mxu0 %v570
  %v1239 = vpop.f32.mrb[0].mxu0
  %v1240 = vadd.f32 0.0, %v1239
  %v1241 = vpop.f32.mrb[0].mxu0
  %1242 = vmatprep.mubr.f32.mxu0 0.0
  %1243 = vmatmul.mubr.f32.gmra.mrb[0].mxu0 %v573
  %v1244 = vpop.f32.mrb[0].mxu0
  %v1245 = vadd.f32 0.0, %v1244
  %v1246 = vpop.f32.mrb[0].mxu0
  %1247 = vmatprep.mubr.f32.mxu0 0.0
  %1248 = vmatmul.mubr.f32.gmra.mrb[0].mxu0 %v576
  %v1249 = vpop.f32.mrb[0].mxu0
  %v1250 = vadd.f32 0.0, %v1249
  %v1251 = vpop.f32.mrb[0].mxu0
  %1252 = vmatprep.mubr.f32.mxu0 0.0
  %1253 = vmatmul.mubr.f32.gmra.mrb[0].mxu0 %v579
  %v1254 = vpop.f32.mrb[0].mxu0
  %v1255 = vadd.f32 0.0, %v1254
  %v1256 = vpop.f32.mrb[0].mxu0
  %1257 = vmatprep.mubr.f32.mxu0 0.0
  %1258 = vmatmul.mubr.f32.gmra.mrb[0].mxu0 %v582
  %v1259 = vpop.f32.mrb[0].mxu0
  %v1260 = vadd.f32 0.0, %v1259
  %v1261 = vpop.f32.mrb[0].mxu0
  %1262 = vmatprep.mubr.f32.mxu0 0.0
  %1263 = vmatmul.mubr.f32.gmra.mrb[0].mxu0 %v585
  %v1264 = vpop.f32.mrb[0].mxu0
  %v1265 = vadd.f32 0.0, %v1264
  %v1266 = vpop.f32.mrb[0].mxu0
  %1267 = vmatprep.mubr.f32.mxu0 0.0
  %1268 = vmatmul.mubr.f32.gmra.mrb[0].mxu0 %v588
  %v1269 = vpop.f32.mrb[0].mxu0
  %v1270 = vadd.f32 0.0, %v1269
  %v1271 = vpop.f32.mrb[0].mxu0
  %1272 = vmatprep.mubr.f32.mxu0 0.0
  %1273 = vmatmul.mubr.f32.gmra.mrb[0].mxu0 %v591
  %v1274 = vpop.f32.mrb[0].mxu0
  %v1275 = vadd.f32 0.0, %v1274
  %v1276 = vpop.f32.mrb[0].mxu0
  %1277 = vmatprep.mubr.f32.mxu0 0.0
  %1278 = vmatmul.mubr.f32.gmra.mrb[0].mxu0 %v594
  %v1279 = vpop.f32.mrb[0].mxu0
  %v1280 = vadd.f32 0.0, %v1279
  %v1281 = vpop.f32.mrb[0].mxu0
  %1282 = vmatprep.mubr.f32.mxu0 0.0
  %1283 = vmatmul.mubr.f32.gmra.mrb[0].mxu0 %v597
  %v1284 = vpop.f32.mrb[0].mxu0
  %v1285 = vadd.f32 0.0, %v1284
  %v1286 = vpop.f32.mrb[0].mxu0
  %1287 = vmatprep.mubr.f32.mxu0 0.0
  %1288 = vmatmul.mubr.f32.gmra.mrb[0].mxu0 %v600
  %v1289 = vpop.f32.mrb[0].mxu0
  %v1290 = vadd.f32 0.0, %v1289
  %v1291 = vpop.f32.mrb[0].mxu0
  %1292 = vmatprep.mubr.f32.mxu0 0.0
  %1293 = vmatmul.mubr.f32.gmra.mrb[0].mxu0 %v603
  %v1294 = vpop.f32.mrb[0].mxu0
  %v1295 = vadd.f32 0.0, %v1294
  %v1296 = vpop.f32.mrb[0].mxu0
  %1297 = vmatprep.mubr.f32.mxu0 0.0
  %1298 = vmatmul.mubr.f32.gmra.mrb[0].mxu0 %v606
  %v1299 = vpop.f32.mrb[0].mxu0
  %v1300 = vadd.f32 0.0, %v1299
  %v1301 = vpop.f32.mrb[0].mxu0
  %1302 = vmatprep.mubr.f32.mxu0 0.0
  %1303 = vmatmul.mubr.f32.gmra.mrb[0].mxu0 %v609
  %v1304 = vpop.f32.mrb[0].mxu0
  %v1305 = vadd.f32 0.0, %v1304
  %v1306 = vpop.f32.mrb[0].mxu0
  %1307 = vmatprep.mubr.f32.mxu0 0.0
  %1308 = vmatmul.mubr.f32.gmra.mrb[0].mxu0 %v612
  %v1309 = vpop.f32.mrb[0].mxu0
  %v1310 = vadd.f32 0.0, %v1309
  %v1311 = vpop.f32.mrb[0].mxu0
  %1312 = vmatprep.mubr.f32.mxu0 0.0
  %1313 = vmatmul.mubr.f32.gmra.mrb[0].mxu0 %v615
  %v1314 = vpop.f32.mrb[0].mxu0
  %v1315 = vadd.f32 0.0, %v1314
  %v1316 = vpop.f32.mrb[0].mxu0
  %1317 = vmatprep.mubr.f32.mxu0 0.0
  %1318 = vmatmul.mubr.f32.gmra.mrb[0].mxu0 %v618
  %v1319 = vpop.f32.mrb[0].mxu0
  %v1320 = vadd.f32 0.0, %v1319
  %v1321 = vpop.f32.mrb[0].mxu0
  %1322 = vmatprep.mubr.f32.mxu0 0.0
  %1323 = vmatmul.mubr.f32.gmra.mrb[0].mxu0 %v621
  %v1324 = vpop.f32.mrb[0].mxu0
  %v1325 = vadd.f32 0.0, %v1324
  %v1326 = vpop.f32.mrb[0].mxu0
  %1327 = vmatprep.mubr.f32.mxu0 0.0
  %1328 = vmatmul.mubr.f32.gmra.mrb[0].mxu0 %v624
  %v1329 = vpop.f32.mrb[0].mxu0
  %v1330 = vadd.f32 0.0, %v1329
  %v1331 = vpop.f32.mrb[0].mxu0
  %1332 = vmatprep.mubr.f32.mxu0 0.0
  %1333 = vmatmul.mubr.f32.gmra.mrb[0].mxu0 %v627
  %v1334 = vpop.f32.mrb[0].mxu0
  %v1335 = vadd.f32 0.0, %v1334
  %v1336 = vpop.f32.mrb[0].mxu0
  %1337 = vdwg.mxu0
  %v1339 = vcombine.high %v111, %v111
  %v1341 = vunpack.c.l.s4 1966171168
  %v1342 = vunpack.c.0.s8 %v1341
  %v1343 = vlaneseq
  %v1344 = vshrl.u32 %v1343, 7
  %v1345 = vsub.s32 %v1342, %v1344
  %v1346 = vrot.slane %v111, %v1345
  %v1348 = vunpack.c.l.s4 1966171168
  %v1349 = vunpack.c.0.s8 %v1348
  %v1350 = vlaneseq
  %v1351 = vshrl.u32 %v1350, 7
  %v1352 = vsub.s32 %v1349, %v1351
  %v1353 = vrot.slane %v1339, %v1352
  %v1354 = vcombine.high %v1346, %v1346
  %v1355 = vcombine.high %v1353, %v1353
  %v1357 = vunpack.c.l.s4 1966171168
  %v1358 = vunpack.c.0.s8 %v1357
  %v1359 = vlaneseq
  %v1360 = vshrl.u32 %v1359, 7
  %v1361 = vsub.s32 %v1358, %v1360
  %v1362 = vrot.slane %v1346, %v1361
  %v1364 = vunpack.c.l.s4 1966171168
  %v1365 = vunpack.c.0.s8 %v1364
  %v1366 = vlaneseq
  %v1367 = vshrl.u32 %v1366, 7
  %v1368 = vsub.s32 %v1365, %v1367
  %v1369 = vrot.slane %v1353, %v1368
  %v1371 = vunpack.c.l.s4 1966171168
  %v1372 = vunpack.c.0.s8 %v1371
  %v1373 = vlaneseq
  %v1374 = vshrl.u32 %v1373, 7
  %v1375 = vsub.s32 %v1372, %v1374
  %v1376 = vrot.slane %v1354, %v1375
  %v1378 = vunpack.c.l.s4 1966171168
  %v1379 = vunpack.c.0.s8 %v1378
  %v1380 = vlaneseq
  %v1381 = vshrl.u32 %v1380, 7
  %v1382 = vsub.s32 %v1379, %v1381
  %v1383 = vrot.slane %v1355, %v1382
  %v1384 = vcombine.high %v1362, %v1362
  %v1385 = vcombine.high %v1369, %v1369
  %v1386 = vcombine.high %v1376, %v1376
  %v1387 = vcombine.high %v1383, %v1383
  %v1388 = vlaneseq
  %v1389 = vshrl.u32 %v1388, 7
  %v1390 = vsub.s32 0, %v1389
  %v1391 = vrot.slane %v1362, %v1390
  %v1392 = vlaneseq
  %v1393 = vshrl.u32 %v1392, 7
  %v1394 = vsub.s32 0, %v1393
  %v1395 = vrot.slane %v1376, %v1394
  %v1396 = vlaneseq
  %v1397 = vshrl.u32 %v1396, 7
  %v1398 = vsub.s32 0, %v1397
  %v1399 = vrot.slane %v1384, %v1398
  %v1400 = vlaneseq
  %v1401 = vshrl.u32 %v1400, 7
  %v1402 = vsub.s32 0, %v1401
  %v1403 = vrot.slane %v1386, %v1402
  %v1404 = vlaneseq
  %v1405 = vshrl.u32 %v1404, 7
  %v1406 = vsub.s32 0, %v1405
  %v1407 = vrot.slane %v1369, %v1406
  %v1408 = vlaneseq
  %v1409 = vshrl.u32 %v1408, 7
  %v1410 = vsub.s32 0, %v1409
  %v1411 = vrot.slane %v1383, %v1410
  %v1412 = vlaneseq
  %v1413 = vshrl.u32 %v1412, 7
  %v1414 = vsub.s32 0, %v1413
  %v1415 = vrot.slane %v1385, %v1414
  %v1416 = vlaneseq
  %v1417 = vshrl.u32 %v1416, 7
  %v1418 = vsub.s32 0, %v1417
  %v1419 = vrot.slane %v1387, %v1418
  %v1428 = vadd.f32 %v1391, %v700
  %v1429 = vadd.f32 %v1391, %v705
  %v1430 = vadd.f32 %v1391, %v710
  %v1431 = vadd.f32 %v1391, %v715
  %v1432 = vadd.f32 %v1391, %v720
  %v1433 = vadd.f32 %v1391, %v725
  %v1434 = vadd.f32 %v1391, %v730
  %v1435 = vadd.f32 %v1391, %v735
  %v1436 = vadd.f32 %v1391, %v740
  %v1437 = vadd.f32 %v1391, %v745
  %v1438 = vadd.f32 %v1391, %v750
  %v1439 = vadd.f32 %v1391, %v755
  %v1440 = vadd.f32 %v1391, %v760
  %v1441 = vadd.f32 %v1391, %v765
  %v1442 = vadd.f32 %v1391, %v770
  %v1443 = vadd.f32 %v1391, %v775
  %v1444 = vadd.f32 %v1395, %v780
  %v1445 = vadd.f32 %v1395, %v785
  %v1446 = vadd.f32 %v1395, %v790
  %v1447 = vadd.f32 %v1395, %v795
  %v1448 = vadd.f32 %v1395, %v800
  %v1449 = vadd.f32 %v1395, %v805
  %v1450 = vadd.f32 %v1395, %v810
  %v1451 = vadd.f32 %v1395, %v815
  %v1452 = vadd.f32 %v1395, %v820
  %v1453 = vadd.f32 %v1395, %v825
  %v1454 = vadd.f32 %v1395, %v830
  %v1455 = vadd.f32 %v1395, %v835
  %v1456 = vadd.f32 %v1395, %v840
  %v1457 = vadd.f32 %v1395, %v845
  %v1458 = vadd.f32 %v1395, %v850
  %v1459 = vadd.f32 %v1395, %v855
  %v1460 = vadd.f32 %v1399, %v860
  %v1461 = vadd.f32 %v1399, %v865
  %v1462 = vadd.f32 %v1399, %v870
  %v1463 = vadd.f32 %v1399, %v875
  %v1464 = vadd.f32 %v1399, %v880
  %v1465 = vadd.f32 %v1399, %v885
  %v1466 = vadd.f32 %v1399, %v890
  %v1467 = vadd.f32 %v1399, %v895
  %v1468 = vadd.f32 %v1399, %v900
  %v1469 = vadd.f32 %v1399, %v905
  %v1470 = vadd.f32 %v1399, %v910
  %v1471 = vadd.f32 %v1399, %v915
  %v1472 = vadd.f32 %v1399, %v920
  %v1473 = vadd.f32 %v1399, %v925
  %v1474 = vadd.f32 %v1399, %v930
  %v1475 = vadd.f32 %v1399, %v935
  %v1476 = vadd.f32 %v1403, %v940
  %v1477 = vadd.f32 %v1403, %v945
  %v1478 = vadd.f32 %v1403, %v950
  %v1479 = vadd.f32 %v1403, %v955
  %v1480 = vadd.f32 %v1403, %v960
  %v1481 = vadd.f32 %v1403, %v965
  %v1482 = vadd.f32 %v1403, %v970
  %v1483 = vadd.f32 %v1403, %v975
  %v1484 = vadd.f32 %v1403, %v980
  %v1485 = vadd.f32 %v1403, %v985
  %v1486 = vadd.f32 %v1403, %v990
  %v1487 = vadd.f32 %v1403, %v995
  %v1488 = vadd.f32 %v1403, %v1000
  %v1489 = vadd.f32 %v1403, %v1005
  %v1490 = vadd.f32 %v1403, %v1010
  %v1491 = vadd.f32 %v1403, %v1015
  %v1492 = vadd.f32 %v1407, %v1020
  %v1493 = vadd.f32 %v1407, %v1025
  %v1494 = vadd.f32 %v1407, %v1030
  %v1495 = vadd.f32 %v1407, %v1035
  %v1496 = vadd.f32 %v1407, %v1040
  %v1497 = vadd.f32 %v1407, %v1045
  %v1498 = vadd.f32 %v1407, %v1050
  %v1499 = vadd.f32 %v1407, %v1055
  %v1500 = vadd.f32 %v1407, %v1060
  %v1501 = vadd.f32 %v1407, %v1065
  %v1502 = vadd.f32 %v1407, %v1070
  %v1503 = vadd.f32 %v1407, %v1075
  %v1504 = vadd.f32 %v1407, %v1080
  %v1505 = vadd.f32 %v1407, %v1085
  %v1506 = vadd.f32 %v1407, %v1090
  %v1507 = vadd.f32 %v1407, %v1095
  %v1508 = vadd.f32 %v1411, %v1100
  %v1509 = vadd.f32 %v1411, %v1105
  %v1510 = vadd.f32 %v1411, %v1110
  %v1511 = vadd.f32 %v1411, %v1115
  %v1512 = vadd.f32 %v1411, %v1120
  %v1513 = vadd.f32 %v1411, %v1125
  %v1514 = vadd.f32 %v1411, %v1130
  %v1515 = vadd.f32 %v1411, %v1135
  %v1516 = vadd.f32 %v1411, %v1140
  %v1517 = vadd.f32 %v1411, %v1145
  %v1518 = vadd.f32 %v1411, %v1150
  %v1519 = vadd.f32 %v1411, %v1155
  %v1520 = vadd.f32 %v1411, %v1160
  %v1521 = vadd.f32 %v1411, %v1165
  %v1522 = vadd.f32 %v1411, %v1170
  %v1523 = vadd.f32 %v1411, %v1175
  %v1524 = vadd.f32 %v1415, %v1180
  %v1525 = vadd.f32 %v1415, %v1185
  %v1526 = vadd.f32 %v1415, %v1190
  %v1527 = vadd.f32 %v1415, %v1195
  %v1528 = vadd.f32 %v1415, %v1200
  %v1529 = vadd.f32 %v1415, %v1205
  %v1530 = vadd.f32 %v1415, %v1210
  %v1531 = vadd.f32 %v1415, %v1215
  %v1532 = vadd.f32 %v1415, %v1220
  %v1533 = vadd.f32 %v1415, %v1225
  %v1534 = vadd.f32 %v1415, %v1230
  %v1535 = vadd.f32 %v1415, %v1235
  %v1536 = vadd.f32 %v1415, %v1240
  %v1537 = vadd.f32 %v1415, %v1245
  %v1538 = vadd.f32 %v1415, %v1250
  %v1539 = vadd.f32 %v1415, %v1255
  %v1540 = vadd.f32 %v1419, %v1260
  %v1541 = vadd.f32 %v1419, %v1265
  %v1542 = vadd.f32 %v1419, %v1270
  %v1543 = vadd.f32 %v1419, %v1275
  %v1544 = vadd.f32 %v1419, %v1280
  %v1545 = vadd.f32 %v1419, %v1285
  %v1546 = vadd.f32 %v1419, %v1290
  %v1547 = vadd.f32 %v1419, %v1295
  %v1548 = vadd.f32 %v1419, %v1300
  %v1549 = vadd.f32 %v1419, %v1305
  %v1550 = vadd.f32 %v1419, %v1310
  %v1551 = vadd.f32 %v1419, %v1315
  %v1552 = vadd.f32 %v1419, %v1320
  %v1553 = vadd.f32 %v1419, %v1325
  %v1554 = vadd.f32 %v1419, %v1330
  %v1555 = vadd.f32 %v1419, %v1335
  %v1556 = vld [vmem:[%s3] sm:$0xf]
  %v1557 = vld [vmem:[%s3 + $0x4] sm:$0xf]
  %v1558 = vld [vmem:[%s3 + $0x8] sm:$0xf]
  %v1559 = vld [vmem:[%s3 + $0xc] sm:$0xf]
  %v1560 = vld [vmem:[%s3 + $0x10] sm:$0xf]
  %v1561 = vld [vmem:[%s3 + $0x14] sm:$0xf]
  %v1562 = vld [vmem:[%s3 + $0x18] sm:$0xf]
  %v1563 = vld [vmem:[%s3 + $0x1c] sm:$0xf]
  %v1564 = vld [vmem:[%s3 + $0x20] sm:$0xf]
  %v1565 = vld [vmem:[%s3 + $0x24] sm:$0xf]
  %v1566 = vld [vmem:[%s3 + $0x28] sm:$0xf]
  %v1567 = vld [vmem:[%s3 + $0x2c] sm:$0xf]
  %v1568 = vld [vmem:[%s3 + $0x30] sm:$0xf]
  %v1569 = vld [vmem:[%s3 + $0x34] sm:$0xf]
  %v1570 = vld [vmem:[%s3 + $0x38] sm:$0xf]
  %v1571 = vld [vmem:[%s3 + $0x3c] sm:$0xf]
  %v1572 = vld [vmem:[%s3 + $0x40] sm:$0xf]
  %v1573 = vld [vmem:[%s3 + $0x44] sm:$0xf]
  %v1574 = vld [vmem:[%s3 + $0x48] sm:$0xf]
  %v1575 = vld [vmem:[%s3 + $0x4c] sm:$0xf]
  %v1576 = vld [vmem:[%s3 + $0x50] sm:$0xf]
  %v1577 = vld [vmem:[%s3 + $0x54] sm:$0xf]
  %v1578 = vld [vmem:[%s3 + $0x58] sm:$0xf]
  %v1579 = vld [vmem:[%s3 + $0x5c] sm:$0xf]
  %v1580 = vld [vmem:[%s3 + $0x60] sm:$0xf]
  %v1581 = vld [vmem:[%s3 + $0x64] sm:$0xf]
  %v1582 = vld [vmem:[%s3 + $0x68] sm:$0xf]
  %v1583 = vld [vmem:[%s3 + $0x6c] sm:$0xf]
  %v1584 = vld [vmem:[%s3 + $0x70] sm:$0xf]
  %v1585 = vld [vmem:[%s3 + $0x74] sm:$0xf]
  %v1586 = vld [vmem:[%s3 + $0x78] sm:$0xf]
  %v1587 = vld [vmem:[%s3 + $0x7c] sm:$0xf]
  %v1588 = vld [vmem:[%s3 + $0x80] sm:$0xf]
  %v1589 = vld [vmem:[%s3 + $0x84] sm:$0xf]
  %v1590 = vld [vmem:[%s3 + $0x88] sm:$0xf]
  %v1591 = vld [vmem:[%s3 + $0x8c] sm:$0xf]
  %v1592 = vld [vmem:[%s3 + $0x90] sm:$0xf]
  %v1593 = vld [vmem:[%s3 + $0x94] sm:$0xf]
  %v1594 = vld [vmem:[%s3 + $0x98] sm:$0xf]
  %v1595 = vld [vmem:[%s3 + $0x9c] sm:$0xf]
  %v1596 = vld [vmem:[%s3 + $0xa0] sm:$0xf]
  %v1597 = vld [vmem:[%s3 + $0xa4] sm:$0xf]
  %v1598 = vld [vmem:[%s3 + $0xa8] sm:$0xf]
  %v1599 = vld [vmem:[%s3 + $0xac] sm:$0xf]
  %v1600 = vld [vmem:[%s3 + $0xb0] sm:$0xf]
  %v1601 = vld [vmem:[%s3 + $0xb4] sm:$0xf]
  %v1602 = vld [vmem:[%s3 + $0xb8] sm:$0xf]
  %v1603 = vld [vmem:[%s3 + $0xbc] sm:$0xf]
  %v1604 = vld [vmem:[%s3 + $0xc0] sm:$0xf]
  %v1605 = vld [vmem:[%s3 + $0xc4] sm:$0xf]
  %v1606 = vld [vmem:[%s3 + $0xc8] sm:$0xf]
  %v1607 = vld [vmem:[%s3 + $0xcc] sm:$0xf]
  %v1608 = vld [vmem:[%s3 + $0xd0] sm:$0xf]
  %v1609 = vld [vmem:[%s3 + $0xd4] sm:$0xf]
  %v1610 = vld [vmem:[%s3 + $0xd8] sm:$0xf]
  %v1611 = vld [vmem:[%s3 + $0xdc] sm:$0xf]
  %v1612 = vld [vmem:[%s3 + $0xe0] sm:$0xf]
  %v1613 = vld [vmem:[%s3 + $0xe4] sm:$0xf]
  %v1614 = vld [vmem:[%s3 + $0xe8] sm:$0xf]
  %v1615 = vld [vmem:[%s3 + $0xec] sm:$0xf]
  %v1616 = vld [vmem:[%s3 + $0xf0] sm:$0xf]
  %v1617 = vld [vmem:[%s3 + $0xf4] sm:$0xf]
  %v1618 = vld [vmem:[%s3 + $0xf8] sm:$0xf]
  %v1619 = vld [vmem:[%s3 + $0xfc] sm:$0xf]
  %v1620 = vld [vmem:[%s3 + $0x100] sm:$0xf]
  %v1621 = vld [vmem:[%s3 + $0x104] sm:$0xf]
  %v1622 = vld [vmem:[%s3 + $0x108] sm:$0xf]
  %v1623 = vld [vmem:[%s3 + $0x10c] sm:$0xf]
  %v1624 = vld [vmem:[%s3 + $0x110] sm:$0xf]
  %v1625 = vld [vmem:[%s3 + $0x114] sm:$0xf]
  %v1626 = vld [vmem:[%s3 + $0x118] sm:$0xf]
  %v1627 = vld [vmem:[%s3 + $0x11c] sm:$0xf]
  %v1628 = vld [vmem:[%s3 + $0x120] sm:$0xf]
  %v1629 = vld [vmem:[%s3 + $0x124] sm:$0xf]
  %v1630 = vld [vmem:[%s3 + $0x128] sm:$0xf]
  %v1631 = vld [vmem:[%s3 + $0x12c] sm:$0xf]
  %v1632 = vld [vmem:[%s3 + $0x130] sm:$0xf]
  %v1633 = vld [vmem:[%s3 + $0x134] sm:$0xf]
  %v1634 = vld [vmem:[%s3 + $0x138] sm:$0xf]
  %v1635 = vld [vmem:[%s3 + $0x13c] sm:$0xf]
  %v1636 = vld [vmem:[%s3 + $0x140] sm:$0xf]
  %v1637 = vld [vmem:[%s3 + $0x144] sm:$0xf]
  %v1638 = vld [vmem:[%s3 + $0x148] sm:$0xf]
  %v1639 = vld [vmem:[%s3 + $0x14c] sm:$0xf]
  %v1640 = vld [vmem:[%s3 + $0x150] sm:$0xf]
  %v1641 = vld [vmem:[%s3 + $0x154] sm:$0xf]
  %v1642 = vld [vmem:[%s3 + $0x158] sm:$0xf]
  %v1643 = vld [vmem:[%s3 + $0x15c] sm:$0xf]
  %v1644 = vld [vmem:[%s3 + $0x160] sm:$0xf]
  %v1645 = vld [vmem:[%s3 + $0x164] sm:$0xf]
  %v1646 = vld [vmem:[%s3 + $0x168] sm:$0xf]
  %v1647 = vld [vmem:[%s3 + $0x16c] sm:$0xf]
  %v1648 = vld [vmem:[%s3 + $0x170] sm:$0xf]
  %v1649 = vld [vmem:[%s3 + $0x174] sm:$0xf]
  %v1650 = vld [vmem:[%s3 + $0x178] sm:$0xf]
  %v1651 = vld [vmem:[%s3 + $0x17c] sm:$0xf]
  %v1652 = vld [vmem:[%s3 + $0x180] sm:$0xf]
  %v1653 = vld [vmem:[%s3 + $0x184] sm:$0xf]
  %v1654 = vld [vmem:[%s3 + $0x188] sm:$0xf]
  %v1655 = vld [vmem:[%s3 + $0x18c] sm:$0xf]
  %v1656 = vld [vmem:[%s3 + $0x190] sm:$0xf]
  %v1657 = vld [vmem:[%s3 + $0x194] sm:$0xf]
  %v1658 = vld [vmem:[%s3 + $0x198] sm:$0xf]
  %v1659 = vld [vmem:[%s3 + $0x19c] sm:$0xf]
  %v1660 = vld [vmem:[%s3 + $0x1a0] sm:$0xf]
  %v1661 = vld [vmem:[%s3 + $0x1a4] sm:$0xf]
  %v1662 = vld [vmem:[%s3 + $0x1a8] sm:$0xf]
  %v1663 = vld [vmem:[%s3 + $0x1ac] sm:$0xf]
  %v1664 = vld [vmem:[%s3 + $0x1b0] sm:$0xf]
  %v1665 = vld [vmem:[%s3 + $0x1b4] sm:$0xf]
  %v1666 = vld [vmem:[%s3 + $0x1b8] sm:$0xf]
  %v1667 = vld [vmem:[%s3 + $0x1bc] sm:$0xf]
  %v1668 = vld [vmem:[%s3 + $0x1c0] sm:$0xf]
  %v1669 = vld [vmem:[%s3 + $0x1c4] sm:$0xf]
  %v1670 = vld [vmem:[%s3 + $0x1c8] sm:$0xf]
  %v1671 = vld [vmem:[%s3 + $0x1cc] sm:$0xf]
  %v1672 = vld [vmem:[%s3 + $0x1d0] sm:$0xf]
  %v1673 = vld [vmem:[%s3 + $0x1d4] sm:$0xf]
  %v1674 = vld [vmem:[%s3 + $0x1d8] sm:$0xf]
  %v1675 = vld [vmem:[%s3 + $0x1dc] sm:$0xf]
  %v1676 = vld [vmem:[%s3 + $0x1e0] sm:$0xf]
  %v1677 = vld [vmem:[%s3 + $0x1e4] sm:$0xf]
  %v1678 = vld [vmem:[%s3 + $0x1e8] sm:$0xf]
  %v1679 = vld [vmem:[%s3 + $0x1ec] sm:$0xf]
  %v1680 = vld [vmem:[%s3 + $0x1f0] sm:$0xf]
  %v1681 = vld [vmem:[%s3 + $0x1f4] sm:$0xf]
  %v1682 = vld [vmem:[%s3 + $0x1f8] sm:$0xf]
  %v1683 = vld [vmem:[%s3 + $0x1fc] sm:$0xf]
  %v1684 = vunpack.c.l.bf16 %v1556
  %v1685 = vunpack.c.l.bf16 %v1557
  %v1686 = vunpack.c.l.bf16 %v1558
  %v1687 = vunpack.c.l.bf16 %v1559
  %v1688 = vunpack.c.l.bf16 %v1560
  %v1689 = vunpack.c.l.bf16 %v1561
  %v1690 = vunpack.c.l.bf16 %v1562
  %v1691 = vunpack.c.l.bf16 %v1563
  %v1692 = vunpack.c.l.bf16 %v1564
  %v1693 = vunpack.c.l.bf16 %v1565
  %v1694 = vunpack.c.l.bf16 %v1566
  %v1695 = vunpack.c.l.bf16 %v1567
  %v1696 = vunpack.c.l.bf16 %v1568
  %v1697 = vunpack.c.l.bf16 %v1569
  %v1698 = vunpack.c.l.bf16 %v1570
  %v1699 = vunpack.c.l.bf16 %v1571
  %v1700 = vunpack.c.l.bf16 %v1572
  %v1701 = vunpack.c.l.bf16 %v1573
  %v1702 = vunpack.c.l.bf16 %v1574
  %v1703 = vunpack.c.l.bf16 %v1575
  %v1704 = vunpack.c.l.bf16 %v1576
  %v1705 = vunpack.c.l.bf16 %v1577
  %v1706 = vunpack.c.l.bf16 %v1578
  %v1707 = vunpack.c.l.bf16 %v1579
  %v1708 = vunpack.c.l.bf16 %v1580
  %v1709 = vunpack.c.l.bf16 %v1581
  %v1710 = vunpack.c.l.bf16 %v1582
  %v1711 = vunpack.c.l.bf16 %v1583
  %v1712 = vunpack.c.l.bf16 %v1584
  %v1713 = vunpack.c.l.bf16 %v1585
  %v1714 = vunpack.c.l.bf16 %v1586
  %v1715 = vunpack.c.l.bf16 %v1587
  %v1716 = vunpack.c.l.bf16 %v1588
  %v1717 = vunpack.c.l.bf16 %v1589
  %v1718 = vunpack.c.l.bf16 %v1590
  %v1719 = vunpack.c.l.bf16 %v1591
  %v1720 = vunpack.c.l.bf16 %v1592
  %v1721 = vunpack.c.l.bf16 %v1593
  %v1722 = vunpack.c.l.bf16 %v1594
  %v1723 = vunpack.c.l.bf16 %v1595
  %v1724 = vunpack.c.l.bf16 %v1596
  %v1725 = vunpack.c.l.bf16 %v1597
  %v1726 = vunpack.c.l.bf16 %v1598
  %v1727 = vunpack.c.l.bf16 %v1599
  %v1728 = vunpack.c.l.bf16 %v1600
  %v1729 = vunpack.c.l.bf16 %v1601
  %v1730 = vunpack.c.l.bf16 %v1602
  %v1731 = vunpack.c.l.bf16 %v1603
  %v1732 = vunpack.c.l.bf16 %v1604
  %v1733 = vunpack.c.l.bf16 %v1605
  %v1734 = vunpack.c.l.bf16 %v1606
  %v1735 = vunpack.c.l.bf16 %v1607
  %v1736 = vunpack.c.l.bf16 %v1608
  %v1737 = vunpack.c.l.bf16 %v1609
  %v1738 = vunpack.c.l.bf16 %v1610
  %v1739 = vunpack.c.l.bf16 %v1611
  %v1740 = vunpack.c.l.bf16 %v1612
  %v1741 = vunpack.c.l.bf16 %v1613
  %v1742 = vunpack.c.l.bf16 %v1614
  %v1743 = vunpack.c.l.bf16 %v1615
  %v1744 = vunpack.c.l.bf16 %v1616
  %v1745 = vunpack.c.l.bf16 %v1617
  %v1746 = vunpack.c.l.bf16 %v1618
  %v1747 = vunpack.c.l.bf16 %v1619
  %v1748 = vunpack.c.l.bf16 %v1620
  %v1749 = vunpack.c.l.bf16 %v1621
  %v1750 = vunpack.c.l.bf16 %v1622
  %v1751 = vunpack.c.l.bf16 %v1623
  %v1752 = vunpack.c.l.bf16 %v1624
  %v1753 = vunpack.c.l.bf16 %v1625
  %v1754 = vunpack.c.l.bf16 %v1626
  %v1755 = vunpack.c.l.bf16 %v1627
  %v1756 = vunpack.c.l.bf16 %v1628
  %v1757 = vunpack.c.l.bf16 %v1629
  %v1758 = vunpack.c.l.bf16 %v1630
  %v1759 = vunpack.c.l.bf16 %v1631
  %v1760 = vunpack.c.l.bf16 %v1632
  %v1761 = vunpack.c.l.bf16 %v1633
  %v1762 = vunpack.c.l.bf16 %v1634
  %v1763 = vunpack.c.l.bf16 %v1635
  %v1764 = vunpack.c.l.bf16 %v1636
  %v1765 = vunpack.c.l.bf16 %v1637
  %v1766 = vunpack.c.l.bf16 %v1638
  %v1767 = vunpack.c.l.bf16 %v1639
  %v1768 = vunpack.c.l.bf16 %v1640
  %v1769 = vunpack.c.l.bf16 %v1641
  %v1770 = vunpack.c.l.bf16 %v1642
  %v1771 = vunpack.c.l.bf16 %v1643
  %v1772 = vunpack.c.l.bf16 %v1644
  %v1773 = vunpack.c.l.bf16 %v1645
  %v1774 = vunpack.c.l.bf16 %v1646
  %v1775 = vunpack.c.l.bf16 %v1647
  %v1776 = vunpack.c.l.bf16 %v1648
  %v1777 = vunpack.c.l.bf16 %v1649
  %v1778 = vunpack.c.l.bf16 %v1650
  %v1779 = vunpack.c.l.bf16 %v1651
  %v1780 = vunpack.c.l.bf16 %v1652
  %v1781 = vunpack.c.l.bf16 %v1653
  %v1782 = vunpack.c.l.bf16 %v1654
  %v1783 = vunpack.c.l.bf16 %v1655
  %v1784 = vunpack.c.l.bf16 %v1656
  %v1785 = vunpack.c.l.bf16 %v1657
  %v1786 = vunpack.c.l.bf16 %v1658
  %v1787 = vunpack.c.l.bf16 %v1659
  %v1788 = vunpack.c.l.bf16 %v1660
  %v1789 = vunpack.c.l.bf16 %v1661
  %v1790 = vunpack.c.l.bf16 %v1662
  %v1791 = vunpack.c.l.bf16 %v1663
  %v1792 = vunpack.c.l.bf16 %v1664
  %v1793 = vunpack.c.l.bf16 %v1665
  %v1794 = vunpack.c.l.bf16 %v1666
  %v1795 = vunpack.c.l.bf16 %v1667
  %v1796 = vunpack.c.l.bf16 %v1668
  %v1797 = vunpack.c.l.bf16 %v1669
  %v1798 = vunpack.c.l.bf16 %v1670
  %v1799 = vunpack.c.l.bf16 %v1671
  %v1800 = vunpack.c.l.bf16 %v1672
  %v1801 = vunpack.c.l.bf16 %v1673
  %v1802 = vunpack.c.l.bf16 %v1674
  %v1803 = vunpack.c.l.bf16 %v1675
  %v1804 = vunpack.c.l.bf16 %v1676
  %v1805 = vunpack.c.l.bf16 %v1677
  %v1806 = vunpack.c.l.bf16 %v1678
  %v1807 = vunpack.c.l.bf16 %v1679
  %v1808 = vunpack.c.l.bf16 %v1680
  %v1809 = vunpack.c.l.bf16 %v1681
  %v1810 = vunpack.c.l.bf16 %v1682
  %v1811 = vunpack.c.l.bf16 %v1683
  %v1812 = vadd.f32 %v1428, %v1684
  %v1813 = vadd.f32 %v1429, %v1685
  %v1814 = vadd.f32 %v1430, %v1686
  %v1815 = vadd.f32 %v1431, %v1687
  %v1816 = vadd.f32 %v1432, %v1688
  %v1817 = vadd.f32 %v1433, %v1689
  %v1818 = vadd.f32 %v1434, %v1690
  %v1819 = vadd.f32 %v1435, %v1691
  %v1820 = vadd.f32 %v1436, %v1692
  %v1821 = vadd.f32 %v1437, %v1693
  %v1822 = vadd.f32 %v1438, %v1694
  %v1823 = vadd.f32 %v1439, %v1695
  %v1824 = vadd.f32 %v1440, %v1696
  %v1825 = vadd.f32 %v1441, %v1697
  %v1826 = vadd.f32 %v1442, %v1698
  %v1827 = vadd.f32 %v1443, %v1699
  %v1828 = vadd.f32 %v1444, %v1700
  %v1829 = vadd.f32 %v1445, %v1701
  %v1830 = vadd.f32 %v1446, %v1702
  %v1831 = vadd.f32 %v1447, %v1703
  %v1832 = vadd.f32 %v1448, %v1704
  %v1833 = vadd.f32 %v1449, %v1705
  %v1834 = vadd.f32 %v1450, %v1706
  %v1835 = vadd.f32 %v1451, %v1707
  %v1836 = vadd.f32 %v1452, %v1708
  %v1837 = vadd.f32 %v1453, %v1709
  %v1838 = vadd.f32 %v1454, %v1710
  %v1839 = vadd.f32 %v1455, %v1711
  %v1840 = vadd.f32 %v1456, %v1712
  %v1841 = vadd.f32 %v1457, %v1713
  %v1842 = vadd.f32 %v1458, %v1714
  %v1843 = vadd.f32 %v1459, %v1715
  %v1844 = vadd.f32 %v1460, %v1716
  %v1845 = vadd.f32 %v1461, %v1717
  %v1846 = vadd.f32 %v1462, %v1718
  %v1847 = vadd.f32 %v1463, %v1719
  %v1848 = vadd.f32 %v1464, %v1720
  %v1849 = vadd.f32 %v1465, %v1721
  %v1850 = vadd.f32 %v1466, %v1722
  %v1851 = vadd.f32 %v1467, %v1723
  %v1852 = vadd.f32 %v1468, %v1724
  %v1853 = vadd.f32 %v1469, %v1725
  %v1854 = vadd.f32 %v1470, %v1726
  %v1855 = vadd.f32 %v1471, %v1727
  %v1856 = vadd.f32 %v1472, %v1728
  %v1857 = vadd.f32 %v1473, %v1729
  %v1858 = vadd.f32 %v1474, %v1730
  %v1859 = vadd.f32 %v1475, %v1731
  %v1860 = vadd.f32 %v1476, %v1732
  %v1861 = vadd.f32 %v1477, %v1733
  %v1862 = vadd.f32 %v1478, %v1734
  %v1863 = vadd.f32 %v1479, %v1735
  %v1864 = vadd.f32 %v1480, %v1736
  %v1865 = vadd.f32 %v1481, %v1737
  %v1866 = vadd.f32 %v1482, %v1738
  %v1867 = vadd.f32 %v1483, %v1739
  %v1868 = vadd.f32 %v1484, %v1740
  %v1869 = vadd.f32 %v1485, %v1741
  %v1870 = vadd.f32 %v1486, %v1742
  %v1871 = vadd.f32 %v1487, %v1743
  %v1872 = vadd.f32 %v1488, %v1744
  %v1873 = vadd.f32 %v1489, %v1745
  %v1874 = vadd.f32 %v1490, %v1746
  %v1875 = vadd.f32 %v1491, %v1747
  %v1876 = vadd.f32 %v1492, %v1748
  %v1877 = vadd.f32 %v1493, %v1749
  %v1878 = vadd.f32 %v1494, %v1750
  %v1879 = vadd.f32 %v1495, %v1751
  %v1880 = vadd.f32 %v1496, %v1752
  %v1881 = vadd.f32 %v1497, %v1753
  %v1882 = vadd.f32 %v1498, %v1754
  %v1883 = vadd.f32 %v1499, %v1755
  %v1884 = vadd.f32 %v1500, %v1756
  %v1885 = vadd.f32 %v1501, %v1757
  %v1886 = vadd.f32 %v1502, %v1758
  %v1887 = vadd.f32 %v1503, %v1759
  %v1888 = vadd.f32 %v1504, %v1760
  %v1889 = vadd.f32 %v1505, %v1761
  %v1890 = vadd.f32 %v1506, %v1762
  %v1891 = vadd.f32 %v1507, %v1763
  %v1892 = vadd.f32 %v1508, %v1764
  %v1893 = vadd.f32 %v1509, %v1765
  %v1894 = vadd.f32 %v1510, %v1766
  %v1895 = vadd.f32 %v1511, %v1767
  %v1896 = vadd.f32 %v1512, %v1768
  %v1897 = vadd.f32 %v1513, %v1769
  %v1898 = vadd.f32 %v1514, %v1770
  %v1899 = vadd.f32 %v1515, %v1771
  %v1900 = vadd.f32 %v1516, %v1772
  %v1901 = vadd.f32 %v1517, %v1773
  %v1902 = vadd.f32 %v1518, %v1774
  %v1903 = vadd.f32 %v1519, %v1775
  %v1904 = vadd.f32 %v1520, %v1776
  %v1905 = vadd.f32 %v1521, %v1777
  %v1906 = vadd.f32 %v1522, %v1778
  %v1907 = vadd.f32 %v1523, %v1779
  %v1908 = vadd.f32 %v1524, %v1780
  %v1909 = vadd.f32 %v1525, %v1781
  %v1910 = vadd.f32 %v1526, %v1782
  %v1911 = vadd.f32 %v1527, %v1783
  %v1912 = vadd.f32 %v1528, %v1784
  %v1913 = vadd.f32 %v1529, %v1785
  %v1914 = vadd.f32 %v1530, %v1786
  %v1915 = vadd.f32 %v1531, %v1787
  %v1916 = vadd.f32 %v1532, %v1788
  %v1917 = vadd.f32 %v1533, %v1789
  %v1918 = vadd.f32 %v1534, %v1790
  %v1919 = vadd.f32 %v1535, %v1791
  %v1920 = vadd.f32 %v1536, %v1792
  %v1921 = vadd.f32 %v1537, %v1793
  %v1922 = vadd.f32 %v1538, %v1794
  %v1923 = vadd.f32 %v1539, %v1795
  %v1924 = vadd.f32 %v1540, %v1796
  %v1925 = vadd.f32 %v1541, %v1797
  %v1926 = vadd.f32 %v1542, %v1798
  %v1927 = vadd.f32 %v1543, %v1799
  %v1928 = vadd.f32 %v1544, %v1800
  %v1929 = vadd.f32 %v1545, %v1801
  %v1930 = vadd.f32 %v1546, %v1802
  %v1931 = vadd.f32 %v1547, %v1803
  %v1932 = vadd.f32 %v1548, %v1804
  %v1933 = vadd.f32 %v1549, %v1805
  %v1934 = vadd.f32 %v1550, %v1806
  %v1935 = vadd.f32 %v1551, %v1807
  %v1936 = vadd.f32 %v1552, %v1808
  %v1937 = vadd.f32 %v1553, %v1809
  %v1938 = vadd.f32 %v1554, %v1810
  %v1939 = vadd.f32 %v1555, %v1811
  %v1940 = vtanh.pop %v1812
  %v1941 = vtanh.pop %v1813
  %v1942 = vtanh.pop %v1814
  %v1943 = vtanh.pop %v1815
  %v1944 = vtanh.pop %v1816
  %v1945 = vtanh.pop %v1817
  %v1946 = vtanh.pop %v1818
  %v1947 = vtanh.pop %v1819
  %v1948 = vtanh.pop %v1820
  %v1949 = vtanh.pop %v1821
  %v1950 = vtanh.pop %v1822
  %v1951 = vtanh.pop %v1823
  %v1952 = vtanh.pop %v1824
  %v1953 = vtanh.pop %v1825
  %v1954 = vtanh.pop %v1826
  %v1955 = vtanh.pop %v1827
  %v1956 = vtanh.pop %v1828
  %v1957 = vtanh.pop %v1829
  %v1958 = vtanh.pop %v1830
  %v1959 = vtanh.pop %v1831
  %v1960 = vtanh.pop %v1832
  %v1961 = vtanh.pop %v1833
  %v1962 = vtanh.pop %v1834
  %v1963 = vtanh.pop %v1835
  %v1964 = vtanh.pop %v1836
  %v1965 = vtanh.pop %v1837
  %v1966 = vtanh.pop %v1838
  %v1967 = vtanh.pop %v1839
  %v1968 = vtanh.pop %v1840
  %v1969 = vtanh.pop %v1841
  %v1970 = vtanh.pop %v1842
  %v1971 = vtanh.pop %v1843
  %v1972 = vtanh.pop %v1844
  %v1973 = vtanh.pop %v1845
  %v1974 = vtanh.pop %v1846
  %v1975 = vtanh.pop %v1847
  %v1976 = vtanh.pop %v1848
  %v1977 = vtanh.pop %v1849
  %v1978 = vtanh.pop %v1850
  %v1979 = vtanh.pop %v1851
  %v1980 = vtanh.pop %v1852
  %v1981 = vtanh.pop %v1853
  %v1982 = vtanh.pop %v1854
  %v1983 = vtanh.pop %v1855
  %v1984 = vtanh.pop %v1856
  %v1985 = vtanh.pop %v1857
  %v1986 = vtanh.pop %v1858
  %v1987 = vtanh.pop %v1859
  %v1988 = vtanh.pop %v1860
  %v1989 = vtanh.pop %v1861
  %v1990 = vtanh.pop %v1862
  %v1991 = vtanh.pop %v1863
  %v1992 = vtanh.pop %v1864
  %v1993 = vtanh.pop %v1865
  %v1994 = vtanh.pop %v1866
  %v1995 = vtanh.pop %v1867
  %v1996 = vtanh.pop %v1868
  %v1997 = vtanh.pop %v1869
  %v1998 = vtanh.pop %v1870
  %v1999 = vtanh.pop %v1871
  %v2000 = vtanh.pop %v1872
  %v2001 = vtanh.pop %v1873
  %v2002 = vtanh.pop %v1874
  %v2003 = vtanh.pop %v1875
  %v2004 = vtanh.pop %v1876
  %v2005 = vtanh.pop %v1877
  %v2006 = vtanh.pop %v1878
  %v2007 = vtanh.pop %v1879
  %v2008 = vtanh.pop %v1880
  %v2009 = vtanh.pop %v1881
  %v2010 = vtanh.pop %v1882
  %v2011 = vtanh.pop %v1883
  %v2012 = vtanh.pop %v1884
  %v2013 = vtanh.pop %v1885
  %v2014 = vtanh.pop %v1886
  %v2015 = vtanh.pop %v1887
  %v2016 = vtanh.pop %v1888
  %v2017 = vtanh.pop %v1889
  %v2018 = vtanh.pop %v1890
  %v2019 = vtanh.pop %v1891
  %v2020 = vtanh.pop %v1892
  %v2021 = vtanh.pop %v1893
  %v2022 = vtanh.pop %v1894
  %v2023 = vtanh.pop %v1895
  %v2024 = vtanh.pop %v1896
  %v2025 = vtanh.pop %v1897
  %v2026 = vtanh.pop %v1898
  %v2027 = vtanh.pop %v1899
  %v2028 = vtanh.pop %v1900
  %v2029 = vtanh.pop %v1901
  %v2030 = vtanh.pop %v1902
  %v2031 = vtanh.pop %v1903
  %v2032 = vtanh.pop %v1904
  %v2033 = vtanh.pop %v1905
  %v2034 = vtanh.pop %v1906
  %v2035 = vtanh.pop %v1907
  %v2036 = vtanh.pop %v1908
  %v2037 = vtanh.pop %v1909
  %v2038 = vtanh.pop %v1910
  %v2039 = vtanh.pop %v1911
  %v2040 = vtanh.pop %v1912
  %v2041 = vtanh.pop %v1913
  %v2042 = vtanh.pop %v1914
  %v2043 = vtanh.pop %v1915
  %v2044 = vtanh.pop %v1916
  %v2045 = vtanh.pop %v1917
  %v2046 = vtanh.pop %v1918
  %v2047 = vtanh.pop %v1919
  %v2048 = vtanh.pop %v1920
  %v2049 = vtanh.pop %v1921
  %v2050 = vtanh.pop %v1922
  %v2051 = vtanh.pop %v1923
  %v2052 = vtanh.pop %v1924
  %v2053 = vtanh.pop %v1925
  %v2054 = vtanh.pop %v1926
  %v2055 = vtanh.pop %v1927
  %v2056 = vtanh.pop %v1928
  %v2057 = vtanh.pop %v1929
  %v2058 = vtanh.pop %v1930
  %v2059 = vtanh.pop %v1931
  %v2060 = vtanh.pop %v1932
  %v2061 = vtanh.pop %v1933
  %v2062 = vtanh.pop %v1934
  %v2063 = vtanh.pop %v1935
  %v2064 = vtanh.pop %v1936
  %v2065 = vtanh.pop %v1937
  %v2066 = vtanh.pop %v1938
  %v2067 = vtanh.pop %v1939
  %v2068 = vld [vmem:[%s8] sm:$0x1]
  %v2070 = vlaneseq
  %v2071 = vshrl.u32 %v2070, 7
  %v2072 = vsub.s32 0, %v2071
  %v2073 = vrot.slane %v2068, %v2072
  %v2075 = vmul.f32 %v1940, %v2073
  %v2076 = vmul.f32 %v1941, %v2073
  %v2077 = vmul.f32 %v1942, %v2073
  %v2078 = vmul.f32 %v1943, %v2073
  %v2079 = vmul.f32 %v1944, %v2073
  %v2080 = vmul.f32 %v1945, %v2073
  %v2081 = vmul.f32 %v1946, %v2073
  %v2082 = vmul.f32 %v1947, %v2073
  %v2083 = vmul.f32 %v1948, %v2073
  %v2084 = vmul.f32 %v1949, %v2073
  %v2085 = vmul.f32 %v1950, %v2073
  %v2086 = vmul.f32 %v1951, %v2073
  %v2087 = vmul.f32 %v1952, %v2073
  %v2088 = vmul.f32 %v1953, %v2073
  %v2089 = vmul.f32 %v1954, %v2073
  %v2090 = vmul.f32 %v1955, %v2073
  %v2091 = vmul.f32 %v1956, %v2073
  %v2092 = vmul.f32 %v1957, %v2073
  %v2093 = vmul.f32 %v1958, %v2073
  %v2094 = vmul.f32 %v1959, %v2073
  %v2095 = vmul.f32 %v1960, %v2073
  %v2096 = vmul.f32 %v1961, %v2073
  %v2097 = vmul.f32 %v1962, %v2073
  %v2098 = vmul.f32 %v1963, %v2073
  %v2099 = vmul.f32 %v1964, %v2073
  %v2100 = vmul.f32 %v1965, %v2073
  %v2101 = vmul.f32 %v1966, %v2073
  %v2102 = vmul.f32 %v1967, %v2073
  %v2103 = vmul.f32 %v1968, %v2073
  %v2104 = vmul.f32 %v1969, %v2073
  %v2105 = vmul.f32 %v1970, %v2073
  %v2106 = vmul.f32 %v1971, %v2073
  %v2107 = vmul.f32 %v1972, %v2073
  %v2108 = vmul.f32 %v1973, %v2073
  %v2109 = vmul.f32 %v1974, %v2073
  %v2110 = vmul.f32 %v1975, %v2073
  %v2111 = vmul.f32 %v1976, %v2073
  %v2112 = vmul.f32 %v1977, %v2073
  %v2113 = vmul.f32 %v1978, %v2073
  %v2114 = vmul.f32 %v1979, %v2073
  %v2115 = vmul.f32 %v1980, %v2073
  %v2116 = vmul.f32 %v1981, %v2073
  %v2117 = vmul.f32 %v1982, %v2073
  %v2118 = vmul.f32 %v1983, %v2073
  %v2119 = vmul.f32 %v1984, %v2073
  %v2120 = vmul.f32 %v1985, %v2073
  %v2121 = vmul.f32 %v1986, %v2073
  %v2122 = vmul.f32 %v1987, %v2073
  %v2123 = vmul.f32 %v1988, %v2073
  %v2124 = vmul.f32 %v1989, %v2073
  %v2125 = vmul.f32 %v1990, %v2073
  %v2126 = vmul.f32 %v1991, %v2073
  %v2127 = vmul.f32 %v1992, %v2073
  %v2128 = vmul.f32 %v1993, %v2073
  %v2129 = vmul.f32 %v1994, %v2073
  %v2130 = vmul.f32 %v1995, %v2073
  %v2131 = vmul.f32 %v1996, %v2073
  %v2132 = vmul.f32 %v1997, %v2073
  %v2133 = vmul.f32 %v1998, %v2073
  %v2134 = vmul.f32 %v1999, %v2073
  %v2135 = vmul.f32 %v2000, %v2073
  %v2136 = vmul.f32 %v2001, %v2073
  %v2137 = vmul.f32 %v2002, %v2073
  %v2138 = vmul.f32 %v2003, %v2073
  %v2139 = vmul.f32 %v2004, %v2073
  %v2140 = vmul.f32 %v2005, %v2073
  %v2141 = vmul.f32 %v2006, %v2073
  %v2142 = vmul.f32 %v2007, %v2073
  %v2143 = vmul.f32 %v2008, %v2073
  %v2144 = vmul.f32 %v2009, %v2073
  %v2145 = vmul.f32 %v2010, %v2073
  %v2146 = vmul.f32 %v2011, %v2073
  %v2147 = vmul.f32 %v2012, %v2073
  %v2148 = vmul.f32 %v2013, %v2073
  %v2149 = vmul.f32 %v2014, %v2073
  %v2150 = vmul.f32 %v2015, %v2073
  %v2151 = vmul.f32 %v2016, %v2073
  %v2152 = vmul.f32 %v2017, %v2073
  %v2153 = vmul.f32 %v2018, %v2073
  %v2154 = vmul.f32 %v2019, %v2073
  %v2155 = vmul.f32 %v2020, %v2073
  %v2156 = vmul.f32 %v2021, %v2073
  %v2157 = vmul.f32 %v2022, %v2073
  %v2158 = vmul.f32 %v2023, %v2073
  %v2159 = vmul.f32 %v2024, %v2073
  %v2160 = vmul.f32 %v2025, %v2073
  %v2161 = vmul.f32 %v2026, %v2073
  %v2162 = vmul.f32 %v2027, %v2073
  %v2163 = vmul.f32 %v2028, %v2073
  %v2164 = vmul.f32 %v2029, %v2073
  %v2165 = vmul.f32 %v2030, %v2073
  %v2166 = vmul.f32 %v2031, %v2073
  %v2167 = vmul.f32 %v2032, %v2073
  %v2168 = vmul.f32 %v2033, %v2073
  %v2169 = vmul.f32 %v2034, %v2073
  %v2170 = vmul.f32 %v2035, %v2073
  %v2171 = vmul.f32 %v2036, %v2073
  %v2172 = vmul.f32 %v2037, %v2073
  %v2173 = vmul.f32 %v2038, %v2073
  %v2174 = vmul.f32 %v2039, %v2073
  %v2175 = vmul.f32 %v2040, %v2073
  %v2176 = vmul.f32 %v2041, %v2073
  %v2177 = vmul.f32 %v2042, %v2073
  %v2178 = vmul.f32 %v2043, %v2073
  %v2179 = vmul.f32 %v2044, %v2073
  %v2180 = vmul.f32 %v2045, %v2073
  %v2181 = vmul.f32 %v2046, %v2073
  %v2182 = vmul.f32 %v2047, %v2073
  %v2183 = vmul.f32 %v2048, %v2073
  %v2184 = vmul.f32 %v2049, %v2073
  %v2185 = vmul.f32 %v2050, %v2073
  %v2186 = vmul.f32 %v2051, %v2073
  %v2187 = vmul.f32 %v2052, %v2073
  %v2188 = vmul.f32 %v2053, %v2073
  %v2189 = vmul.f32 %v2054, %v2073
  %v2190 = vmul.f32 %v2055, %v2073
  %v2191 = vmul.f32 %v2056, %v2073
  %v2192 = vmul.f32 %v2057, %v2073
  %v2193 = vmul.f32 %v2058, %v2073
  %v2194 = vmul.f32 %v2059, %v2073
  %v2195 = vmul.f32 %v2060, %v2073
  %v2196 = vmul.f32 %v2061, %v2073
  %v2197 = vmul.f32 %v2062, %v2073
  %v2198 = vmul.f32 %v2063, %v2073
  %v2199 = vmul.f32 %v2064, %v2073
  %v2200 = vmul.f32 %v2065, %v2073
  %v2201 = vmul.f32 %v2066, %v2073
  %v2202 = vmul.f32 %v2067, %v2073
  %v2203 = vsel %vm40, %v2075, 0.0
  %2204 = vadd.xlane.f32.xlu0 %v2203
  %v2205 = vpop.xlane.xlu0 %2204
  %v2206 = vsel %vm40, %v2076, 0.0
  %2207 = vadd.xlane.f32.xlu0 %v2206
  %v2208 = vpop.xlane.xlu0 %2207
  %v2209 = vsel %vm40, %v2077, 0.0
  %2210 = vadd.xlane.f32.xlu0 %v2209
  %v2211 = vpop.xlane.xlu0 %2210
  %v2212 = vsel %vm40, %v2078, 0.0
  %2213 = vadd.xlane.f32.xlu0 %v2212
  %v2214 = vpop.xlane.xlu0 %2213
  %v2215 = vsel %vm40, %v2079, 0.0
  %2216 = vadd.xlane.f32.xlu0 %v2215
  %v2217 = vpop.xlane.xlu0 %2216
  %v2218 = vsel %vm40, %v2080, 0.0
  %2219 = vadd.xlane.f32.xlu0 %v2218
  %v2220 = vpop.xlane.xlu0 %2219
  %v2221 = vsel %vm40, %v2081, 0.0
  %2222 = vadd.xlane.f32.xlu0 %v2221
  %v2223 = vpop.xlane.xlu0 %2222
  %v2224 = vsel %vm40, %v2082, 0.0
  %2225 = vadd.xlane.f32.xlu0 %v2224
  %v2226 = vpop.xlane.xlu0 %2225
  %v2227 = vsel %vm40, %v2083, 0.0
  %2228 = vadd.xlane.f32.xlu0 %v2227
  %v2229 = vpop.xlane.xlu0 %2228
  %v2230 = vsel %vm40, %v2084, 0.0
  %2231 = vadd.xlane.f32.xlu0 %v2230
  %v2232 = vpop.xlane.xlu0 %2231
  %v2233 = vsel %vm40, %v2085, 0.0
  %2234 = vadd.xlane.f32.xlu0 %v2233
  %v2235 = vpop.xlane.xlu0 %2234
  %v2236 = vsel %vm40, %v2086, 0.0
  %2237 = vadd.xlane.f32.xlu0 %v2236
  %v2238 = vpop.xlane.xlu0 %2237
  %v2239 = vsel %vm40, %v2087, 0.0
  %2240 = vadd.xlane.f32.xlu0 %v2239
  %v2241 = vpop.xlane.xlu0 %2240
  %v2242 = vsel %vm40, %v2088, 0.0
  %2243 = vadd.xlane.f32.xlu0 %v2242
  %v2244 = vpop.xlane.xlu0 %2243
  %v2245 = vsel %vm40, %v2089, 0.0
  %2246 = vadd.xlane.f32.xlu0 %v2245
  %v2247 = vpop.xlane.xlu0 %2246
  %v2248 = vsel %vm40, %v2090, 0.0
  %2249 = vadd.xlane.f32.xlu0 %v2248
  %v2250 = vpop.xlane.xlu0 %2249
  %v2251 = vsel %vm40, %v2091, 0.0
  %2252 = vadd.xlane.f32.xlu0 %v2251
  %v2253 = vpop.xlane.xlu0 %2252
  %v2254 = vsel %vm40, %v2092, 0.0
  %2255 = vadd.xlane.f32.xlu0 %v2254
  %v2256 = vpop.xlane.xlu0 %2255
  %v2257 = vsel %vm40, %v2093, 0.0
  %2258 = vadd.xlane.f32.xlu0 %v2257
  %v2259 = vpop.xlane.xlu0 %2258
  %v2260 = vsel %vm40, %v2094, 0.0
  %2261 = vadd.xlane.f32.xlu0 %v2260
  %v2262 = vpop.xlane.xlu0 %2261
  %v2263 = vsel %vm40, %v2095, 0.0
  %2264 = vadd.xlane.f32.xlu0 %v2263
  %v2265 = vpop.xlane.xlu0 %2264
  %v2266 = vsel %vm40, %v2096, 0.0
  %2267 = vadd.xlane.f32.xlu0 %v2266
  %v2268 = vpop.xlane.xlu0 %2267
  %v2269 = vsel %vm40, %v2097, 0.0
  %2270 = vadd.xlane.f32.xlu0 %v2269
  %v2271 = vpop.xlane.xlu0 %2270
  %v2272 = vsel %vm40, %v2098, 0.0
  %2273 = vadd.xlane.f32.xlu0 %v2272
  %v2274 = vpop.xlane.xlu0 %2273
  %v2275 = vsel %vm40, %v2099, 0.0
  %2276 = vadd.xlane.f32.xlu0 %v2275
  %v2277 = vpop.xlane.xlu0 %2276
  %v2278 = vsel %vm40, %v2100, 0.0
  %2279 = vadd.xlane.f32.xlu0 %v2278
  %v2280 = vpop.xlane.xlu0 %2279
  %v2281 = vsel %vm40, %v2101, 0.0
  %2282 = vadd.xlane.f32.xlu0 %v2281
  %v2283 = vpop.xlane.xlu0 %2282
  %v2284 = vsel %vm40, %v2102, 0.0
  %2285 = vadd.xlane.f32.xlu0 %v2284
  %v2286 = vpop.xlane.xlu0 %2285
  %v2287 = vsel %vm40, %v2103, 0.0
  %2288 = vadd.xlane.f32.xlu0 %v2287
  %v2289 = vpop.xlane.xlu0 %2288
  %v2290 = vsel %vm40, %v2104, 0.0
  %2291 = vadd.xlane.f32.xlu0 %v2290
  %v2292 = vpop.xlane.xlu0 %2291
  %v2293 = vsel %vm40, %v2105, 0.0
  %2294 = vadd.xlane.f32.xlu0 %v2293
  %v2295 = vpop.xlane.xlu0 %2294
  %v2296 = vsel %vm40, %v2106, 0.0
  %2297 = vadd.xlane.f32.xlu0 %v2296
  %v2298 = vpop.xlane.xlu0 %2297
  %v2299 = vsel %vm40, %v2107, 0.0
  %2300 = vadd.xlane.f32.xlu0 %v2299
  %v2301 = vpop.xlane.xlu0 %2300
  %v2302 = vsel %vm40, %v2108, 0.0
  %2303 = vadd.xlane.f32.xlu0 %v2302
  %v2304 = vpop.xlane.xlu0 %2303
  %v2305 = vsel %vm40, %v2109, 0.0
  %2306 = vadd.xlane.f32.xlu0 %v2305
  %v2307 = vpop.xlane.xlu0 %2306
  %v2308 = vsel %vm40, %v2110, 0.0
  %2309 = vadd.xlane.f32.xlu0 %v2308
  %v2310 = vpop.xlane.xlu0 %2309
  %v2311 = vsel %vm40, %v2111, 0.0
  %2312 = vadd.xlane.f32.xlu0 %v2311
  %v2313 = vpop.xlane.xlu0 %2312
  %v2314 = vsel %vm40, %v2112, 0.0
  %2315 = vadd.xlane.f32.xlu0 %v2314
  %v2316 = vpop.xlane.xlu0 %2315
  %v2317 = vsel %vm40, %v2113, 0.0
  %2318 = vadd.xlane.f32.xlu0 %v2317
  %v2319 = vpop.xlane.xlu0 %2318
  %v2320 = vsel %vm40, %v2114, 0.0
  %2321 = vadd.xlane.f32.xlu0 %v2320
  %v2322 = vpop.xlane.xlu0 %2321
  %v2323 = vsel %vm40, %v2115, 0.0
  %2324 = vadd.xlane.f32.xlu0 %v2323
  %v2325 = vpop.xlane.xlu0 %2324
  %v2326 = vsel %vm40, %v2116, 0.0
  %2327 = vadd.xlane.f32.xlu0 %v2326
  %v2328 = vpop.xlane.xlu0 %2327
  %v2329 = vsel %vm40, %v2117, 0.0
  %2330 = vadd.xlane.f32.xlu0 %v2329
  %v2331 = vpop.xlane.xlu0 %2330
  %v2332 = vsel %vm40, %v2118, 0.0
  %2333 = vadd.xlane.f32.xlu0 %v2332
  %v2334 = vpop.xlane.xlu0 %2333
  %v2335 = vsel %vm40, %v2119, 0.0
  %2336 = vadd.xlane.f32.xlu0 %v2335
  %v2337 = vpop.xlane.xlu0 %2336
  %v2338 = vsel %vm40, %v2120, 0.0
  %2339 = vadd.xlane.f32.xlu0 %v2338
  %v2340 = vpop.xlane.xlu0 %2339
  %v2341 = vsel %vm40, %v2121, 0.0
  %2342 = vadd.xlane.f32.xlu0 %v2341
  %v2343 = vpop.xlane.xlu0 %2342
  %v2344 = vsel %vm40, %v2122, 0.0
  %2345 = vadd.xlane.f32.xlu0 %v2344
  %v2346 = vpop.xlane.xlu0 %2345
  %v2347 = vsel %vm40, %v2123, 0.0
  %2348 = vadd.xlane.f32.xlu0 %v2347
  %v2349 = vpop.xlane.xlu0 %2348
  %v2350 = vsel %vm40, %v2124, 0.0
  %2351 = vadd.xlane.f32.xlu0 %v2350
  %v2352 = vpop.xlane.xlu0 %2351
  %v2353 = vsel %vm40, %v2125, 0.0
  %2354 = vadd.xlane.f32.xlu0 %v2353
  %v2355 = vpop.xlane.xlu0 %2354
  %v2356 = vsel %vm40, %v2126, 0.0
  %2357 = vadd.xlane.f32.xlu0 %v2356
  %v2358 = vpop.xlane.xlu0 %2357
  %v2359 = vsel %vm40, %v2127, 0.0
  %2360 = vadd.xlane.f32.xlu0 %v2359
  %v2361 = vpop.xlane.xlu0 %2360
  %v2362 = vsel %vm40, %v2128, 0.0
  %2363 = vadd.xlane.f32.xlu0 %v2362
  %v2364 = vpop.xlane.xlu0 %2363
  %v2365 = vsel %vm40, %v2129, 0.0
  %2366 = vadd.xlane.f32.xlu0 %v2365
  %v2367 = vpop.xlane.xlu0 %2366
  %v2368 = vsel %vm40, %v2130, 0.0
  %2369 = vadd.xlane.f32.xlu0 %v2368
  %v2370 = vpop.xlane.xlu0 %2369
  %v2371 = vsel %vm40, %v2131, 0.0
  %2372 = vadd.xlane.f32.xlu0 %v2371
  %v2373 = vpop.xlane.xlu0 %2372
  %v2374 = vsel %vm40, %v2132, 0.0
  %2375 = vadd.xlane.f32.xlu0 %v2374
  %v2376 = vpop.xlane.xlu0 %2375
  %v2377 = vsel %vm40, %v2133, 0.0
  %2378 = vadd.xlane.f32.xlu0 %v2377
  %v2379 = vpop.xlane.xlu0 %2378
  %v2380 = vsel %vm40, %v2134, 0.0
  %2381 = vadd.xlane.f32.xlu0 %v2380
  %v2382 = vpop.xlane.xlu0 %2381
  %v2383 = vsel %vm40, %v2135, 0.0
  %2384 = vadd.xlane.f32.xlu0 %v2383
  %v2385 = vpop.xlane.xlu0 %2384
  %v2386 = vsel %vm40, %v2136, 0.0
  %2387 = vadd.xlane.f32.xlu0 %v2386
  %v2388 = vpop.xlane.xlu0 %2387
  %v2389 = vsel %vm40, %v2137, 0.0
  %2390 = vadd.xlane.f32.xlu0 %v2389
  %v2391 = vpop.xlane.xlu0 %2390
  %v2392 = vsel %vm40, %v2138, 0.0
  %2393 = vadd.xlane.f32.xlu0 %v2392
  %v2394 = vpop.xlane.xlu0 %2393
  %v2395 = vsel %vm40, %v2139, 0.0
  %2396 = vadd.xlane.f32.xlu0 %v2395
  %v2397 = vpop.xlane.xlu0 %2396
  %v2398 = vsel %vm40, %v2140, 0.0
  %2399 = vadd.xlane.f32.xlu0 %v2398
  %v2400 = vpop.xlane.xlu0 %2399
  %v2401 = vsel %vm40, %v2141, 0.0
  %2402 = vadd.xlane.f32.xlu0 %v2401
  %v2403 = vpop.xlane.xlu0 %2402
  %v2404 = vsel %vm40, %v2142, 0.0
  %2405 = vadd.xlane.f32.xlu0 %v2404
  %v2406 = vpop.xlane.xlu0 %2405
  %v2407 = vsel %vm40, %v2143, 0.0
  %2408 = vadd.xlane.f32.xlu0 %v2407
  %v2409 = vpop.xlane.xlu0 %2408
  %v2410 = vsel %vm40, %v2144, 0.0
  %2411 = vadd.xlane.f32.xlu0 %v2410
  %v2412 = vpop.xlane.xlu0 %2411
  %v2413 = vsel %vm40, %v2145, 0.0
  %2414 = vadd.xlane.f32.xlu0 %v2413
  %v2415 = vpop.xlane.xlu0 %2414
  %v2416 = vsel %vm40, %v2146, 0.0
  %2417 = vadd.xlane.f32.xlu0 %v2416
  %v2418 = vpop.xlane.xlu0 %2417
  %v2419 = vsel %vm40, %v2147, 0.0
  %2420 = vadd.xlane.f32.xlu0 %v2419
  %v2421 = vpop.xlane.xlu0 %2420
  %v2422 = vsel %vm40, %v2148, 0.0
  %2423 = vadd.xlane.f32.xlu0 %v2422
  %v2424 = vpop.xlane.xlu0 %2423
  %v2425 = vsel %vm40, %v2149, 0.0
  %2426 = vadd.xlane.f32.xlu0 %v2425
  %v2427 = vpop.xlane.xlu0 %2426
  %v2428 = vsel %vm40, %v2150, 0.0
  %2429 = vadd.xlane.f32.xlu0 %v2428
  %v2430 = vpop.xlane.xlu0 %2429
  %v2431 = vsel %vm40, %v2151, 0.0
  %2432 = vadd.xlane.f32.xlu0 %v2431
  %v2433 = vpop.xlane.xlu0 %2432
  %v2434 = vsel %vm40, %v2152, 0.0
  %2435 = vadd.xlane.f32.xlu0 %v2434
  %v2436 = vpop.xlane.xlu0 %2435
  %v2437 = vsel %vm40, %v2153, 0.0
  %2438 = vadd.xlane.f32.xlu0 %v2437
  %v2439 = vpop.xlane.xlu0 %2438
  %v2440 = vsel %vm40, %v2154, 0.0
  %2441 = vadd.xlane.f32.xlu0 %v2440
  %v2442 = vpop.xlane.xlu0 %2441
  %v2443 = vsel %vm40, %v2155, 0.0
  %2444 = vadd.xlane.f32.xlu0 %v2443
  %v2445 = vpop.xlane.xlu0 %2444
  %v2446 = vsel %vm40, %v2156, 0.0
  %2447 = vadd.xlane.f32.xlu0 %v2446
  %v2448 = vpop.xlane.xlu0 %2447
  %v2449 = vsel %vm40, %v2157, 0.0
  %2450 = vadd.xlane.f32.xlu0 %v2449
  %v2451 = vpop.xlane.xlu0 %2450
  %v2452 = vsel %vm40, %v2158, 0.0
  %2453 = vadd.xlane.f32.xlu0 %v2452
  %v2454 = vpop.xlane.xlu0 %2453
  %v2455 = vsel %vm40, %v2159, 0.0
  %2456 = vadd.xlane.f32.xlu0 %v2455
  %v2457 = vpop.xlane.xlu0 %2456
  %v2458 = vsel %vm40, %v2160, 0.0
  %2459 = vadd.xlane.f32.xlu0 %v2458
  %v2460 = vpop.xlane.xlu0 %2459
  %v2461 = vsel %vm40, %v2161, 0.0
  %2462 = vadd.xlane.f32.xlu0 %v2461
  %v2463 = vpop.xlane.xlu0 %2462
  %v2464 = vsel %vm40, %v2162, 0.0
  %2465 = vadd.xlane.f32.xlu0 %v2464
  %v2466 = vpop.xlane.xlu0 %2465
  %v2467 = vsel %vm40, %v2163, 0.0
  %2468 = vadd.xlane.f32.xlu0 %v2467
  %v2469 = vpop.xlane.xlu0 %2468
  %v2470 = vsel %vm40, %v2164, 0.0
  %2471 = vadd.xlane.f32.xlu0 %v2470
  %v2472 = vpop.xlane.xlu0 %2471
  %v2473 = vsel %vm40, %v2165, 0.0
  %2474 = vadd.xlane.f32.xlu0 %v2473
  %v2475 = vpop.xlane.xlu0 %2474
  %v2476 = vsel %vm40, %v2166, 0.0
  %2477 = vadd.xlane.f32.xlu0 %v2476
  %v2478 = vpop.xlane.xlu0 %2477
  %v2479 = vsel %vm40, %v2167, 0.0
  %2480 = vadd.xlane.f32.xlu0 %v2479
  %v2481 = vpop.xlane.xlu0 %2480
  %v2482 = vsel %vm40, %v2168, 0.0
  %2483 = vadd.xlane.f32.xlu0 %v2482
  %v2484 = vpop.xlane.xlu0 %2483
  %v2485 = vsel %vm40, %v2169, 0.0
  %2486 = vadd.xlane.f32.xlu0 %v2485
  %v2487 = vpop.xlane.xlu0 %2486
  %v2488 = vsel %vm40, %v2170, 0.0
  %2489 = vadd.xlane.f32.xlu0 %v2488
  %v2490 = vpop.xlane.xlu0 %2489
  %v2491 = vsel %vm40, %v2171, 0.0
  %2492 = vadd.xlane.f32.xlu0 %v2491
  %v2493 = vpop.xlane.xlu0 %2492
  %v2494 = vsel %vm40, %v2172, 0.0
  %2495 = vadd.xlane.f32.xlu0 %v2494
  %v2496 = vpop.xlane.xlu0 %2495
  %v2497 = vsel %vm40, %v2173, 0.0
  %2498 = vadd.xlane.f32.xlu0 %v2497
  %v2499 = vpop.xlane.xlu0 %2498
  %v2500 = vsel %vm40, %v2174, 0.0
  %2501 = vadd.xlane.f32.xlu0 %v2500
  %v2502 = vpop.xlane.xlu0 %2501
  %v2503 = vsel %vm40, %v2175, 0.0
  %2504 = vadd.xlane.f32.xlu0 %v2503
  %v2505 = vpop.xlane.xlu0 %2504
  %v2506 = vsel %vm40, %v2176, 0.0
  %2507 = vadd.xlane.f32.xlu0 %v2506
  %v2508 = vpop.xlane.xlu0 %2507
  %v2509 = vsel %vm40, %v2177, 0.0
  %2510 = vadd.xlane.f32.xlu0 %v2509
  %v2511 = vpop.xlane.xlu0 %2510
  %v2512 = vsel %vm40, %v2178, 0.0
  %2513 = vadd.xlane.f32.xlu0 %v2512
  %v2514 = vpop.xlane.xlu0 %2513
  %v2515 = vsel %vm40, %v2179, 0.0
  %2516 = vadd.xlane.f32.xlu0 %v2515
  %v2517 = vpop.xlane.xlu0 %2516
  %v2518 = vsel %vm40, %v2180, 0.0
  %2519 = vadd.xlane.f32.xlu0 %v2518
  %v2520 = vpop.xlane.xlu0 %2519
  %v2521 = vsel %vm40, %v2181, 0.0
  %2522 = vadd.xlane.f32.xlu0 %v2521
  %v2523 = vpop.xlane.xlu0 %2522
  %v2524 = vsel %vm40, %v2182, 0.0
  %2525 = vadd.xlane.f32.xlu0 %v2524
  %v2526 = vpop.xlane.xlu0 %2525
  %v2527 = vsel %vm40, %v2183, 0.0
  %2528 = vadd.xlane.f32.xlu0 %v2527
  %v2529 = vpop.xlane.xlu0 %2528
  %v2530 = vsel %vm40, %v2184, 0.0
  %2531 = vadd.xlane.f32.xlu0 %v2530
  %v2532 = vpop.xlane.xlu0 %2531
  %v2533 = vsel %vm40, %v2185, 0.0
  %2534 = vadd.xlane.f32.xlu0 %v2533
  %v2535 = vpop.xlane.xlu0 %2534
  %v2536 = vsel %vm40, %v2186, 0.0
  %2537 = vadd.xlane.f32.xlu0 %v2536
  %v2538 = vpop.xlane.xlu0 %2537
  %v2539 = vsel %vm40, %v2187, 0.0
  %2540 = vadd.xlane.f32.xlu0 %v2539
  %v2541 = vpop.xlane.xlu0 %2540
  %v2542 = vsel %vm40, %v2188, 0.0
  %2543 = vadd.xlane.f32.xlu0 %v2542
  %v2544 = vpop.xlane.xlu0 %2543
  %v2545 = vsel %vm40, %v2189, 0.0
  %2546 = vadd.xlane.f32.xlu0 %v2545
  %v2547 = vpop.xlane.xlu0 %2546
  %v2548 = vsel %vm40, %v2190, 0.0
  %2549 = vadd.xlane.f32.xlu0 %v2548
  %v2550 = vpop.xlane.xlu0 %2549
  %v2551 = vsel %vm40, %v2191, 0.0
  %2552 = vadd.xlane.f32.xlu0 %v2551
  %v2553 = vpop.xlane.xlu0 %2552
  %v2554 = vsel %vm40, %v2192, 0.0
  %2555 = vadd.xlane.f32.xlu0 %v2554
  %v2556 = vpop.xlane.xlu0 %2555
  %v2557 = vsel %vm40, %v2193, 0.0
  %2558 = vadd.xlane.f32.xlu0 %v2557
  %v2559 = vpop.xlane.xlu0 %2558
  %v2560 = vsel %vm40, %v2194, 0.0
  %2561 = vadd.xlane.f32.xlu0 %v2560
  %v2562 = vpop.xlane.xlu0 %2561
  %v2563 = vsel %vm40, %v2195, 0.0
  %2564 = vadd.xlane.f32.xlu0 %v2563
  %v2565 = vpop.xlane.xlu0 %2564
  %v2566 = vsel %vm40, %v2196, 0.0
  %2567 = vadd.xlane.f32.xlu0 %v2566
  %v2568 = vpop.xlane.xlu0 %2567
  %v2569 = vsel %vm40, %v2197, 0.0
  %2570 = vadd.xlane.f32.xlu0 %v2569
  %v2571 = vpop.xlane.xlu0 %2570
  %v2572 = vsel %vm40, %v2198, 0.0
  %2573 = vadd.xlane.f32.xlu0 %v2572
  %v2574 = vpop.xlane.xlu0 %2573
  %v2575 = vsel %vm40, %v2199, 0.0
  %2576 = vadd.xlane.f32.xlu0 %v2575
  %v2577 = vpop.xlane.xlu0 %2576
  %v2578 = vsel %vm40, %v2200, 0.0
  %2579 = vadd.xlane.f32.xlu0 %v2578
  %v2580 = vpop.xlane.xlu0 %2579
  %v2581 = vsel %vm40, %v2201, 0.0
  %2582 = vadd.xlane.f32.xlu0 %v2581
  %v2583 = vpop.xlane.xlu0 %2582
  %v2584 = vsel %vm40, %v2202, 0.0
  %2585 = vadd.xlane.f32.xlu0 %v2584
  %v2586 = vpop.xlane.xlu0 %2585
  %v2587 = vld [vmem:[%s4] sm:$0xff]
  %vm2588 = vcmp.gt.f32.partialorder %v2587, 0.5
  %v2717 = vlaneseq
  %v2718 = vand.u32 %v2717, 127
  %v2719 = vlaneseq
  %v2720 = vshrl.u32 %v2719, 7
  %v2721 = vsub.s32 %v2718, %v2720
  %v2722 = vrot.slane %v2205, %v2721
  %v2723 = vadd.s32 %v2718, 4294967288
  %v2724 = vlaneseq
  %v2725 = vshrl.u32 %v2724, 7
  %v2726 = vsub.s32 %v2723, %v2725
  %v2727 = vrot.slane %v2208, %v2726
  %vm2728 = vcmask 130112
  %v2729 = vsel %vm2728, %v2727, %v2722
  %v2730 = vadd.s32 %v2718, 4294967280
  %v2731 = vlaneseq
  %v2732 = vshrl.u32 %v2731, 7
  %v2733 = vsub.s32 %v2730, %v2732
  %v2734 = vrot.slane %v2211, %v2733
  %vm2735 = vcmask 195712
  %v2736 = vsel %vm2735, %v2734, %v2729
  %v2737 = vadd.s32 %v2718, 4294967272
  %v2738 = vlaneseq
  %v2739 = vshrl.u32 %v2738, 7
  %v2740 = vsub.s32 %v2737, %v2739
  %v2741 = vrot.slane %v2214, %v2740
  %vm2742 = vcmask 261312
  %v2743 = vsel %vm2742, %v2741, %v2736
  %v2744 = vadd.s32 %v2718, 4294967264
  %v2745 = vlaneseq
  %v2746 = vshrl.u32 %v2745, 7
  %v2747 = vsub.s32 %v2744, %v2746
  %v2748 = vrot.slane %v2217, %v2747
  %vm2749 = vcmask 326912
  %v2750 = vsel %vm2749, %v2748, %v2743
  %v2751 = vadd.s32 %v2718, 4294967256
  %v2752 = vlaneseq
  %v2753 = vshrl.u32 %v2752, 7
  %v2754 = vsub.s32 %v2751, %v2753
  %v2755 = vrot.slane %v2220, %v2754
  %vm2756 = vcmask 392512
  %v2757 = vsel %vm2756, %v2755, %v2750
  %v2758 = vadd.s32 %v2718, 4294967248
  %v2759 = vlaneseq
  %v2760 = vshrl.u32 %v2759, 7
  %v2761 = vsub.s32 %v2758, %v2760
  %v2762 = vrot.slane %v2223, %v2761
  %vm2763 = vcmask 458112
  %v2764 = vsel %vm2763, %v2762, %v2757
  %v2765 = vadd.s32 %v2718, 4294967240
  %v2766 = vlaneseq
  %v2767 = vshrl.u32 %v2766, 7
  %v2768 = vsub.s32 %v2765, %v2767
  %v2769 = vrot.slane %v2226, %v2768
  %vm2770 = vcmask 523712
  %v2771 = vsel %vm2770, %v2769, %v2764
  %v2772 = vadd.s32 %v2718, 4294967232
  %v2773 = vlaneseq
  %v2774 = vshrl.u32 %v2773, 7
  %v2775 = vsub.s32 %v2772, %v2774
  %v2776 = vrot.slane %v2229, %v2775
  %vm2777 = vcmask 589312
  %v2778 = vsel %vm2777, %v2776, %v2771
  %v2779 = vadd.s32 %v2718, 4294967224
  %v2780 = vlaneseq
  %v2781 = vshrl.u32 %v2780, 7
  %v2782 = vsub.s32 %v2779, %v2781
  %v2783 = vrot.slane %v2232, %v2782
  %vm2784 = vcmask 654912
  %v2785 = vsel %vm2784, %v2783, %v2778
  %v2786 = vadd.s32 %v2718, 4294967216
  %v2787 = vlaneseq
  %v2788 = vshrl.u32 %v2787, 7
  %v2789 = vsub.s32 %v2786, %v2788
  %v2790 = vrot.slane %v2235, %v2789
  %vm2791 = vcmask 720512
  %v2792 = vsel %vm2791, %v2790, %v2785
  %v2793 = vadd.s32 %v2718, 4294967208
  %v2794 = vlaneseq
  %v2795 = vshrl.u32 %v2794, 7
  %v2796 = vsub.s32 %v2793, %v2795
  %v2797 = vrot.slane %v2238, %v2796
  %vm2798 = vcmask 786112
  %v2799 = vsel %vm2798, %v2797, %v2792
  %v2800 = vadd.s32 %v2718, 4294967200
  %v2801 = vlaneseq
  %v2802 = vshrl.u32 %v2801, 7
  %v2803 = vsub.s32 %v2800, %v2802
  %v2804 = vrot.slane %v2241, %v2803
  %vm2805 = vcmask 851712
  %v2806 = vsel %vm2805, %v2804, %v2799
  %v2807 = vadd.s32 %v2718, 4294967192
  %v2808 = vlaneseq
  %v2809 = vshrl.u32 %v2808, 7
  %v2810 = vsub.s32 %v2807, %v2809
  %v2811 = vrot.slane %v2244, %v2810
  %vm2812 = vcmask 917312
  %v2813 = vsel %vm2812, %v2811, %v2806
  %v2814 = vadd.s32 %v2718, 4294967184
  %v2815 = vlaneseq
  %v2816 = vshrl.u32 %v2815, 7
  %v2817 = vsub.s32 %v2814, %v2816
  %v2818 = vrot.slane %v2247, %v2817
  %vm2819 = vcmask 982912
  %v2820 = vsel %vm2819, %v2818, %v2813
  %v2821 = vadd.s32 %v2718, 4294967176
  %v2822 = vlaneseq
  %v2823 = vshrl.u32 %v2822, 7
  %v2824 = vsub.s32 %v2821, %v2823
  %v2825 = vrot.slane %v2250, %v2824
  %vm2826 = vcmask 1048512
  %v2827 = vsel %vm2826, %v2825, %v2820
  %v2828 = vlaneseq
  %v2829 = vshrl.u32 %v2828, 7
  %v2830 = vsub.s32 %v2718, %v2829
  %v2831 = vrot.slane %v2253, %v2830
  %v2832 = vlaneseq
  %v2833 = vshrl.u32 %v2832, 7
  %v2834 = vsub.s32 %v2723, %v2833
  %v2835 = vrot.slane %v2256, %v2834
  %v2836 = vsel %vm2728, %v2835, %v2831
  %v2837 = vlaneseq
  %v2838 = vshrl.u32 %v2837, 7
  %v2839 = vsub.s32 %v2730, %v2838
  %v2840 = vrot.slane %v2259, %v2839
  %v2841 = vsel %vm2735, %v2840, %v2836
  %v2842 = vlaneseq
  %v2843 = vshrl.u32 %v2842, 7
  %v2844 = vsub.s32 %v2737, %v2843
  %v2845 = vrot.slane %v2262, %v2844
  %v2846 = vsel %vm2742, %v2845, %v2841
  %v2847 = vlaneseq
  %v2848 = vshrl.u32 %v2847, 7
  %v2849 = vsub.s32 %v2744, %v2848
  %v2850 = vrot.slane %v2265, %v2849
  %v2851 = vsel %vm2749, %v2850, %v2846
  %v2852 = vlaneseq
  %v2853 = vshrl.u32 %v2852, 7
  %v2854 = vsub.s32 %v2751, %v2853
  %v2855 = vrot.slane %v2268, %v2854
  %v2856 = vsel %vm2756, %v2855, %v2851
  %v2857 = vlaneseq
  %v2858 = vshrl.u32 %v2857, 7
  %v2859 = vsub.s32 %v2758, %v2858
  %v2860 = vrot.slane %v2271, %v2859
  %v2861 = vsel %vm2763, %v2860, %v2856
  %v2862 = vlaneseq
  %v2863 = vshrl.u32 %v2862, 7
  %v2864 = vsub.s32 %v2765, %v2863
  %v2865 = vrot.slane %v2274, %v2864
  %v2866 = vsel %vm2770, %v2865, %v2861
  %v2867 = vlaneseq
  %v2868 = vshrl.u32 %v2867, 7
  %v2869 = vsub.s32 %v2772, %v2868
  %v2870 = vrot.slane %v2277, %v2869
  %v2871 = vsel %vm2777, %v2870, %v2866
  %v2872 = vlaneseq
  %v2873 = vshrl.u32 %v2872, 7
  %v2874 = vsub.s32 %v2779, %v2873
  %v2875 = vrot.slane %v2280, %v2874
  %v2876 = vsel %vm2784, %v2875, %v2871
  %v2877 = vlaneseq
  %v2878 = vshrl.u32 %v2877, 7
  %v2879 = vsub.s32 %v2786, %v2878
  %v2880 = vrot.slane %v2283, %v2879
  %v2881 = vsel %vm2791, %v2880, %v2876
  %v2882 = vlaneseq
  %v2883 = vshrl.u32 %v2882, 7
  %v2884 = vsub.s32 %v2793, %v2883
  %v2885 = vrot.slane %v2286, %v2884
  %v2886 = vsel %vm2798, %v2885, %v2881
  %v2887 = vlaneseq
  %v2888 = vshrl.u32 %v2887, 7
  %v2889 = vsub.s32 %v2800, %v2888
  %v2890 = vrot.slane %v2289, %v2889
  %v2891 = vsel %vm2805, %v2890, %v2886
  %v2892 = vlaneseq
  %v2893 = vshrl.u32 %v2892, 7
  %v2894 = vsub.s32 %v2807, %v2893
  %v2895 = vrot.slane %v2292, %v2894
  %v2896 = vsel %vm2812, %v2895, %v2891
  %v2897 = vlaneseq
  %v2898 = vshrl.u32 %v2897, 7
  %v2899 = vsub.s32 %v2814, %v2898
  %v2900 = vrot.slane %v2295, %v2899
  %v2901 = vsel %vm2819, %v2900, %v2896
  %v2902 = vlaneseq
  %v2903 = vshrl.u32 %v2902, 7
  %v2904 = vsub.s32 %v2821, %v2903
  %v2905 = vrot.slane %v2298, %v2904
  %v2906 = vsel %vm2826, %v2905, %v2901
  %v2907 = vlaneseq
  %v2908 = vshrl.u32 %v2907, 7
  %v2909 = vsub.s32 %v2718, %v2908
  %v2910 = vrot.slane %v2301, %v2909
  %v2911 = vlaneseq
  %v2912 = vshrl.u32 %v2911, 7
  %v2913 = vsub.s32 %v2723, %v2912
  %v2914 = vrot.slane %v2304, %v2913
  %v2915 = vsel %vm2728, %v2914, %v2910
  %v2916 = vlaneseq
  %v2917 = vshrl.u32 %v2916, 7
  %v2918 = vsub.s32 %v2730, %v2917
  %v2919 = vrot.slane %v2307, %v2918
  %v2920 = vsel %vm2735, %v2919, %v2915
  %v2921 = vlaneseq
  %v2922 = vshrl.u32 %v2921, 7
  %v2923 = vsub.s32 %v2737, %v2922
  %v2924 = vrot.slane %v2310, %v2923
  %v2925 = vsel %vm2742, %v2924, %v2920
  %v2926 = vlaneseq
  %v2927 = vshrl.u32 %v2926, 7
  %v2928 = vsub.s32 %v2744, %v2927
  %v2929 = vrot.slane %v2313, %v2928
  %v2930 = vsel %vm2749, %v2929, %v2925
  %v2931 = vlaneseq
  %v2932 = vshrl.u32 %v2931, 7
  %v2933 = vsub.s32 %v2751, %v2932
  %v2934 = vrot.slane %v2316, %v2933
  %v2935 = vsel %vm2756, %v2934, %v2930
  %v2936 = vlaneseq
  %v2937 = vshrl.u32 %v2936, 7
  %v2938 = vsub.s32 %v2758, %v2937
  %v2939 = vrot.slane %v2319, %v2938
  %v2940 = vsel %vm2763, %v2939, %v2935
  %v2941 = vlaneseq
  %v2942 = vshrl.u32 %v2941, 7
  %v2943 = vsub.s32 %v2765, %v2942
  %v2944 = vrot.slane %v2322, %v2943
  %v2945 = vsel %vm2770, %v2944, %v2940
  %v2946 = vlaneseq
  %v2947 = vshrl.u32 %v2946, 7
  %v2948 = vsub.s32 %v2772, %v2947
  %v2949 = vrot.slane %v2325, %v2948
  %v2950 = vsel %vm2777, %v2949, %v2945
  %v2951 = vlaneseq
  %v2952 = vshrl.u32 %v2951, 7
  %v2953 = vsub.s32 %v2779, %v2952
  %v2954 = vrot.slane %v2328, %v2953
  %v2955 = vsel %vm2784, %v2954, %v2950
  %v2956 = vlaneseq
  %v2957 = vshrl.u32 %v2956, 7
  %v2958 = vsub.s32 %v2786, %v2957
  %v2959 = vrot.slane %v2331, %v2958
  %v2960 = vsel %vm2791, %v2959, %v2955
  %v2961 = vlaneseq
  %v2962 = vshrl.u32 %v2961, 7
  %v2963 = vsub.s32 %v2793, %v2962
  %v2964 = vrot.slane %v2334, %v2963
  %v2965 = vsel %vm2798, %v2964, %v2960
  %v2966 = vlaneseq
  %v2967 = vshrl.u32 %v2966, 7
  %v2968 = vsub.s32 %v2800, %v2967
  %v2969 = vrot.slane %v2337, %v2968
  %v2970 = vsel %vm2805, %v2969, %v2965
  %v2971 = vlaneseq
  %v2972 = vshrl.u32 %v2971, 7
  %v2973 = vsub.s32 %v2807, %v2972
  %v2974 = vrot.slane %v2340, %v2973
  %v2975 = vsel %vm2812, %v2974, %v2970
  %v2976 = vlaneseq
  %v2977 = vshrl.u32 %v2976, 7
  %v2978 = vsub.s32 %v2814, %v2977
  %v2979 = vrot.slane %v2343, %v2978
  %v2980 = vsel %vm2819, %v2979, %v2975
  %v2981 = vlaneseq
  %v2982 = vshrl.u32 %v2981, 7
  %v2983 = vsub.s32 %v2821, %v2982
  %v2984 = vrot.slane %v2346, %v2983
  %v2985 = vsel %vm2826, %v2984, %v2980
  %v2986 = vlaneseq
  %v2987 = vshrl.u32 %v2986, 7
  %v2988 = vsub.s32 %v2718, %v2987
  %v2989 = vrot.slane %v2349, %v2988
  %v2990 = vlaneseq
  %v2991 = vshrl.u32 %v2990, 7
  %v2992 = vsub.s32 %v2723, %v2991
  %v2993 = vrot.slane %v2352, %v2992
  %v2994 = vsel %vm2728, %v2993, %v2989
  %v2995 = vlaneseq
  %v2996 = vshrl.u32 %v2995, 7
  %v2997 = vsub.s32 %v2730, %v2996
  %v2998 = vrot.slane %v2355, %v2997
  %v2999 = vsel %vm2735, %v2998, %v2994
  %v3000 = vlaneseq
  %v3001 = vshrl.u32 %v3000, 7
  %v3002 = vsub.s32 %v2737, %v3001
  %v3003 = vrot.slane %v2358, %v3002
  %v3004 = vsel %vm2742, %v3003, %v2999
  %v3005 = vlaneseq
  %v3006 = vshrl.u32 %v3005, 7
  %v3007 = vsub.s32 %v2744, %v3006
  %v3008 = vrot.slane %v2361, %v3007
  %v3009 = vsel %vm2749, %v3008, %v3004
  %v3010 = vlaneseq
  %v3011 = vshrl.u32 %v3010, 7
  %v3012 = vsub.s32 %v2751, %v3011
  %v3013 = vrot.slane %v2364, %v3012
  %v3014 = vsel %vm2756, %v3013, %v3009
  %v3015 = vlaneseq
  %v3016 = vshrl.u32 %v3015, 7
  %v3017 = vsub.s32 %v2758, %v3016
  %v3018 = vrot.slane %v2367, %v3017
  %v3019 = vsel %vm2763, %v3018, %v3014
  %v3020 = vlaneseq
  %v3021 = vshrl.u32 %v3020, 7
  %v3022 = vsub.s32 %v2765, %v3021
  %v3023 = vrot.slane %v2370, %v3022
  %v3024 = vsel %vm2770, %v3023, %v3019
  %v3025 = vlaneseq
  %v3026 = vshrl.u32 %v3025, 7
  %v3027 = vsub.s32 %v2772, %v3026
  %v3028 = vrot.slane %v2373, %v3027
  %v3029 = vsel %vm2777, %v3028, %v3024
  %v3030 = vlaneseq
  %v3031 = vshrl.u32 %v3030, 7
  %v3032 = vsub.s32 %v2779, %v3031
  %v3033 = vrot.slane %v2376, %v3032
  %v3034 = vsel %vm2784, %v3033, %v3029
  %v3035 = vlaneseq
  %v3036 = vshrl.u32 %v3035, 7
  %v3037 = vsub.s32 %v2786, %v3036
  %v3038 = vrot.slane %v2379, %v3037
  %v3039 = vsel %vm2791, %v3038, %v3034
  %v3040 = vlaneseq
  %v3041 = vshrl.u32 %v3040, 7
  %v3042 = vsub.s32 %v2793, %v3041
  %v3043 = vrot.slane %v2382, %v3042
  %v3044 = vsel %vm2798, %v3043, %v3039
  %v3045 = vlaneseq
  %v3046 = vshrl.u32 %v3045, 7
  %v3047 = vsub.s32 %v2800, %v3046
  %v3048 = vrot.slane %v2385, %v3047
  %v3049 = vsel %vm2805, %v3048, %v3044
  %v3050 = vlaneseq
  %v3051 = vshrl.u32 %v3050, 7
  %v3052 = vsub.s32 %v2807, %v3051
  %v3053 = vrot.slane %v2388, %v3052
  %v3054 = vsel %vm2812, %v3053, %v3049
  %v3055 = vlaneseq
  %v3056 = vshrl.u32 %v3055, 7
  %v3057 = vsub.s32 %v2814, %v3056
  %v3058 = vrot.slane %v2391, %v3057
  %v3059 = vsel %vm2819, %v3058, %v3054
  %v3060 = vlaneseq
  %v3061 = vshrl.u32 %v3060, 7
  %v3062 = vsub.s32 %v2821, %v3061
  %v3063 = vrot.slane %v2394, %v3062
  %v3064 = vsel %vm2826, %v3063, %v3059
  %v3065 = vlaneseq
  %v3066 = vshrl.u32 %v3065, 7
  %v3067 = vsub.s32 %v2718, %v3066
  %v3068 = vrot.slane %v2397, %v3067
  %v3069 = vlaneseq
  %v3070 = vshrl.u32 %v3069, 7
  %v3071 = vsub.s32 %v2723, %v3070
  %v3072 = vrot.slane %v2400, %v3071
  %v3073 = vsel %vm2728, %v3072, %v3068
  %v3074 = vlaneseq
  %v3075 = vshrl.u32 %v3074, 7
  %v3076 = vsub.s32 %v2730, %v3075
  %v3077 = vrot.slane %v2403, %v3076
  %v3078 = vsel %vm2735, %v3077, %v3073
  %v3079 = vlaneseq
  %v3080 = vshrl.u32 %v3079, 7
  %v3081 = vsub.s32 %v2737, %v3080
  %v3082 = vrot.slane %v2406, %v3081
  %v3083 = vsel %vm2742, %v3082, %v3078
  %v3084 = vlaneseq
  %v3085 = vshrl.u32 %v3084, 7
  %v3086 = vsub.s32 %v2744, %v3085
  %v3087 = vrot.slane %v2409, %v3086
  %v3088 = vsel %vm2749, %v3087, %v3083
  %v3089 = vlaneseq
  %v3090 = vshrl.u32 %v3089, 7
  %v3091 = vsub.s32 %v2751, %v3090
  %v3092 = vrot.slane %v2412, %v3091
  %v3093 = vsel %vm2756, %v3092, %v3088
  %v3094 = vlaneseq
  %v3095 = vshrl.u32 %v3094, 7
  %v3096 = vsub.s32 %v2758, %v3095
  %v3097 = vrot.slane %v2415, %v3096
  %v3098 = vsel %vm2763, %v3097, %v3093
  %v3099 = vlaneseq
  %v3100 = vshrl.u32 %v3099, 7
  %v3101 = vsub.s32 %v2765, %v3100
  %v3102 = vrot.slane %v2418, %v3101
  %v3103 = vsel %vm2770, %v3102, %v3098
  %v3104 = vlaneseq
  %v3105 = vshrl.u32 %v3104, 7
  %v3106 = vsub.s32 %v2772, %v3105
  %v3107 = vrot.slane %v2421, %v3106
  %v3108 = vsel %vm2777, %v3107, %v3103
  %v3109 = vlaneseq
  %v3110 = vshrl.u32 %v3109, 7
  %v3111 = vsub.s32 %v2779, %v3110
  %v3112 = vrot.slane %v2424, %v3111
  %v3113 = vsel %vm2784, %v3112, %v3108
  %v3114 = vlaneseq
  %v3115 = vshrl.u32 %v3114, 7
  %v3116 = vsub.s32 %v2786, %v3115
  %v3117 = vrot.slane %v2427, %v3116
  %v3118 = vsel %vm2791, %v3117, %v3113
  %v3119 = vlaneseq
  %v3120 = vshrl.u32 %v3119, 7
  %v3121 = vsub.s32 %v2793, %v3120
  %v3122 = vrot.slane %v2430, %v3121
  %v3123 = vsel %vm2798, %v3122, %v3118
  %v3124 = vlaneseq
  %v3125 = vshrl.u32 %v3124, 7
  %v3126 = vsub.s32 %v2800, %v3125
  %v3127 = vrot.slane %v2433, %v3126
  %v3128 = vsel %vm2805, %v3127, %v3123
  %v3129 = vlaneseq
  %v3130 = vshrl.u32 %v3129, 7
  %v3131 = vsub.s32 %v2807, %v3130
  %v3132 = vrot.slane %v2436, %v3131
  %v3133 = vsel %vm2812, %v3132, %v3128
  %v3134 = vlaneseq
  %v3135 = vshrl.u32 %v3134, 7
  %v3136 = vsub.s32 %v2814, %v3135
  %v3137 = vrot.slane %v2439, %v3136
  %v3138 = vsel %vm2819, %v3137, %v3133
  %v3139 = vlaneseq
  %v3140 = vshrl.u32 %v3139, 7
  %v3141 = vsub.s32 %v2821, %v3140
  %v3142 = vrot.slane %v2442, %v3141
  %v3143 = vsel %vm2826, %v3142, %v3138
  %v3144 = vlaneseq
  %v3145 = vshrl.u32 %v3144, 7
  %v3146 = vsub.s32 %v2718, %v3145
  %v3147 = vrot.slane %v2445, %v3146
  %v3148 = vlaneseq
  %v3149 = vshrl.u32 %v3148, 7
  %v3150 = vsub.s32 %v2723, %v3149
  %v3151 = vrot.slane %v2448, %v3150
  %v3152 = vsel %vm2728, %v3151, %v3147
  %v3153 = vlaneseq
  %v3154 = vshrl.u32 %v3153, 7
  %v3155 = vsub.s32 %v2730, %v3154
  %v3156 = vrot.slane %v2451, %v3155
  %v3157 = vsel %vm2735, %v3156, %v3152
  %v3158 = vlaneseq
  %v3159 = vshrl.u32 %v3158, 7
  %v3160 = vsub.s32 %v2737, %v3159
  %v3161 = vrot.slane %v2454, %v3160
  %v3162 = vsel %vm2742, %v3161, %v3157
  %v3163 = vlaneseq
  %v3164 = vshrl.u32 %v3163, 7
  %v3165 = vsub.s32 %v2744, %v3164
  %v3166 = vrot.slane %v2457, %v3165
  %v3167 = vsel %vm2749, %v3166, %v3162
  %v3168 = vlaneseq
  %v3169 = vshrl.u32 %v3168, 7
  %v3170 = vsub.s32 %v2751, %v3169
  %v3171 = vrot.slane %v2460, %v3170
  %v3172 = vsel %vm2756, %v3171, %v3167
  %v3173 = vlaneseq
  %v3174 = vshrl.u32 %v3173, 7
  %v3175 = vsub.s32 %v2758, %v3174
  %v3176 = vrot.slane %v2463, %v3175
  %v3177 = vsel %vm2763, %v3176, %v3172
  %v3178 = vlaneseq
  %v3179 = vshrl.u32 %v3178, 7
  %v3180 = vsub.s32 %v2765, %v3179
  %v3181 = vrot.slane %v2466, %v3180
  %v3182 = vsel %vm2770, %v3181, %v3177
  %v3183 = vlaneseq
  %v3184 = vshrl.u32 %v3183, 7
  %v3185 = vsub.s32 %v2772, %v3184
  %v3186 = vrot.slane %v2469, %v3185
  %v3187 = vsel %vm2777, %v3186, %v3182
  %v3188 = vlaneseq
  %v3189 = vshrl.u32 %v3188, 7
  %v3190 = vsub.s32 %v2779, %v3189
  %v3191 = vrot.slane %v2472, %v3190
  %v3192 = vsel %vm2784, %v3191, %v3187
  %v3193 = vlaneseq
  %v3194 = vshrl.u32 %v3193, 7
  %v3195 = vsub.s32 %v2786, %v3194
  %v3196 = vrot.slane %v2475, %v3195
  %v3197 = vsel %vm2791, %v3196, %v3192
  %v3198 = vlaneseq
  %v3199 = vshrl.u32 %v3198, 7
  %v3200 = vsub.s32 %v2793, %v3199
  %v3201 = vrot.slane %v2478, %v3200
  %v3202 = vsel %vm2798, %v3201, %v3197
  %v3203 = vlaneseq
  %v3204 = vshrl.u32 %v3203, 7
  %v3205 = vsub.s32 %v2800, %v3204
  %v3206 = vrot.slane %v2481, %v3205
  %v3207 = vsel %vm2805, %v3206, %v3202
  %v3208 = vlaneseq
  %v3209 = vshrl.u32 %v3208, 7
  %v3210 = vsub.s32 %v2807, %v3209
  %v3211 = vrot.slane %v2484, %v3210
  %v3212 = vsel %vm2812, %v3211, %v3207
  %v3213 = vlaneseq
  %v3214 = vshrl.u32 %v3213, 7
  %v3215 = vsub.s32 %v2814, %v3214
  %v3216 = vrot.slane %v2487, %v3215
  %v3217 = vsel %vm2819, %v3216, %v3212
  %v3218 = vlaneseq
  %v3219 = vshrl.u32 %v3218, 7
  %v3220 = vsub.s32 %v2821, %v3219
  %v3221 = vrot.slane %v2490, %v3220
  %v3222 = vsel %vm2826, %v3221, %v3217
  %v3223 = vlaneseq
  %v3224 = vshrl.u32 %v3223, 7
  %v3225 = vsub.s32 %v2718, %v3224
  %v3226 = vrot.slane %v2493, %v3225
  %v3227 = vlaneseq
  %v3228 = vshrl.u32 %v3227, 7
  %v3229 = vsub.s32 %v2723, %v3228
  %v3230 = vrot.slane %v2496, %v3229
  %v3231 = vsel %vm2728, %v3230, %v3226
  %v3232 = vlaneseq
  %v3233 = vshrl.u32 %v3232, 7
  %v3234 = vsub.s32 %v2730, %v3233
  %v3235 = vrot.slane %v2499, %v3234
  %v3236 = vsel %vm2735, %v3235, %v3231
  %v3237 = vlaneseq
  %v3238 = vshrl.u32 %v3237, 7
  %v3239 = vsub.s32 %v2737, %v3238
  %v3240 = vrot.slane %v2502, %v3239
  %v3241 = vsel %vm2742, %v3240, %v3236
  %v3242 = vlaneseq
  %v3243 = vshrl.u32 %v3242, 7
  %v3244 = vsub.s32 %v2744, %v3243
  %v3245 = vrot.slane %v2505, %v3244
  %v3246 = vsel %vm2749, %v3245, %v3241
  %v3247 = vlaneseq
  %v3248 = vshrl.u32 %v3247, 7
  %v3249 = vsub.s32 %v2751, %v3248
  %v3250 = vrot.slane %v2508, %v3249
  %v3251 = vsel %vm2756, %v3250, %v3246
  %v3252 = vlaneseq
  %v3253 = vshrl.u32 %v3252, 7
  %v3254 = vsub.s32 %v2758, %v3253
  %v3255 = vrot.slane %v2511, %v3254
  %v3256 = vsel %vm2763, %v3255, %v3251
  %v3257 = vlaneseq
  %v3258 = vshrl.u32 %v3257, 7
  %v3259 = vsub.s32 %v2765, %v3258
  %v3260 = vrot.slane %v2514, %v3259
  %v3261 = vsel %vm2770, %v3260, %v3256
  %v3262 = vlaneseq
  %v3263 = vshrl.u32 %v3262, 7
  %v3264 = vsub.s32 %v2772, %v3263
  %v3265 = vrot.slane %v2517, %v3264
  %v3266 = vsel %vm2777, %v3265, %v3261
  %v3267 = vlaneseq
  %v3268 = vshrl.u32 %v3267, 7
  %v3269 = vsub.s32 %v2779, %v3268
  %v3270 = vrot.slane %v2520, %v3269
  %v3271 = vsel %vm2784, %v3270, %v3266
  %v3272 = vlaneseq
  %v3273 = vshrl.u32 %v3272, 7
  %v3274 = vsub.s32 %v2786, %v3273
  %v3275 = vrot.slane %v2523, %v3274
  %v3276 = vsel %vm2791, %v3275, %v3271
  %v3277 = vlaneseq
  %v3278 = vshrl.u32 %v3277, 7
  %v3279 = vsub.s32 %v2793, %v3278
  %v3280 = vrot.slane %v2526, %v3279
  %v3281 = vsel %vm2798, %v3280, %v3276
  %v3282 = vlaneseq
  %v3283 = vshrl.u32 %v3282, 7
  %v3284 = vsub.s32 %v2800, %v3283
  %v3285 = vrot.slane %v2529, %v3284
  %v3286 = vsel %vm2805, %v3285, %v3281
  %v3287 = vlaneseq
  %v3288 = vshrl.u32 %v3287, 7
  %v3289 = vsub.s32 %v2807, %v3288
  %v3290 = vrot.slane %v2532, %v3289
  %v3291 = vsel %vm2812, %v3290, %v3286
  %v3292 = vlaneseq
  %v3293 = vshrl.u32 %v3292, 7
  %v3294 = vsub.s32 %v2814, %v3293
  %v3295 = vrot.slane %v2535, %v3294
  %v3296 = vsel %vm2819, %v3295, %v3291
  %v3297 = vlaneseq
  %v3298 = vshrl.u32 %v3297, 7
  %v3299 = vsub.s32 %v2821, %v3298
  %v3300 = vrot.slane %v2538, %v3299
  %v3301 = vsel %vm2826, %v3300, %v3296
  %v3302 = vlaneseq
  %v3303 = vshrl.u32 %v3302, 7
  %v3304 = vsub.s32 %v2718, %v3303
  %v3305 = vrot.slane %v2541, %v3304
  %v3306 = vlaneseq
  %v3307 = vshrl.u32 %v3306, 7
  %v3308 = vsub.s32 %v2723, %v3307
  %v3309 = vrot.slane %v2544, %v3308
  %v3310 = vsel %vm2728, %v3309, %v3305
  %v3311 = vlaneseq
  %v3312 = vshrl.u32 %v3311, 7
  %v3313 = vsub.s32 %v2730, %v3312
  %v3314 = vrot.slane %v2547, %v3313
  %v3315 = vsel %vm2735, %v3314, %v3310
  %v3316 = vlaneseq
  %v3317 = vshrl.u32 %v3316, 7
  %v3318 = vsub.s32 %v2737, %v3317
  %v3319 = vrot.slane %v2550, %v3318
  %v3320 = vsel %vm2742, %v3319, %v3315
  %v3321 = vlaneseq
  %v3322 = vshrl.u32 %v3321, 7
  %v3323 = vsub.s32 %v2744, %v3322
  %v3324 = vrot.slane %v2553, %v3323
  %v3325 = vsel %vm2749, %v3324, %v3320
  %v3326 = vlaneseq
  %v3327 = vshrl.u32 %v3326, 7
  %v3328 = vsub.s32 %v2751, %v3327
  %v3329 = vrot.slane %v2556, %v3328
  %v3330 = vsel %vm2756, %v3329, %v3325
  %v3331 = vlaneseq
  %v3332 = vshrl.u32 %v3331, 7
  %v3333 = vsub.s32 %v2758, %v3332
  %v3334 = vrot.slane %v2559, %v3333
  %v3335 = vsel %vm2763, %v3334, %v3330
  %v3336 = vlaneseq
  %v3337 = vshrl.u32 %v3336, 7
  %v3338 = vsub.s32 %v2765, %v3337
  %v3339 = vrot.slane %v2562, %v3338
  %v3340 = vsel %vm2770, %v3339, %v3335
  %v3341 = vlaneseq
  %v3342 = vshrl.u32 %v3341, 7
  %v3343 = vsub.s32 %v2772, %v3342
  %v3344 = vrot.slane %v2565, %v3343
  %v3345 = vsel %vm2777, %v3344, %v3340
  %v3346 = vlaneseq
  %v3347 = vshrl.u32 %v3346, 7
  %v3348 = vsub.s32 %v2779, %v3347
  %v3349 = vrot.slane %v2568, %v3348
  %v3350 = vsel %vm2784, %v3349, %v3345
  %v3351 = vlaneseq
  %v3352 = vshrl.u32 %v3351, 7
  %v3353 = vsub.s32 %v2786, %v3352
  %v3354 = vrot.slane %v2571, %v3353
  %v3355 = vsel %vm2791, %v3354, %v3350
  %v3356 = vlaneseq
  %v3357 = vshrl.u32 %v3356, 7
  %v3358 = vsub.s32 %v2793, %v3357
  %v3359 = vrot.slane %v2574, %v3358
  %v3360 = vsel %vm2798, %v3359, %v3355
  %v3361 = vlaneseq
  %v3362 = vshrl.u32 %v3361, 7
  %v3363 = vsub.s32 %v2800, %v3362
  %v3364 = vrot.slane %v2577, %v3363
  %v3365 = vsel %vm2805, %v3364, %v3360
  %v3366 = vlaneseq
  %v3367 = vshrl.u32 %v3366, 7
  %v3368 = vsub.s32 %v2807, %v3367
  %v3369 = vrot.slane %v2580, %v3368
  %v3370 = vsel %vm2812, %v3369, %v3365
  %v3371 = vlaneseq
  %v3372 = vshrl.u32 %v3371, 7
  %v3373 = vsub.s32 %v2814, %v3372
  %v3374 = vrot.slane %v2583, %v3373
  %v3375 = vsel %vm2819, %v3374, %v3370
  %v3376 = vlaneseq
  %v3377 = vshrl.u32 %v3376, 7
  %v3378 = vsub.s32 %v2821, %v3377
  %v3379 = vrot.slane %v2586, %v3378
  %v3380 = vsel %vm2826, %v3379, %v3375
  %vm3381 = vcmask 1041409
  %v3382 = vsel %vm3381, %v2906, %v2827
  %vm3383 = vcmask 1042434
  %v3384 = vsel %vm3383, %v2985, %v3382
  %vm3385 = vcmask 1043459
  %v3386 = vsel %vm3385, %v3064, %v3384
  %vm3387 = vcmask 1044484
  %v3388 = vsel %vm3387, %v3143, %v3386
  %vm3389 = vcmask 1045509
  %v3390 = vsel %vm3389, %v3222, %v3388
  %vm3391 = vcmask 1046534
  %v3392 = vsel %vm3391, %v3301, %v3390
  %vm3393 = vcmask 1047559
  %v3394 = vsel %vm3393, %v3380, %v3392
  %v3396 = vsel %vm2588, -1e+20, %v3394
  %v3397 = vld [vmem:[%s5] sm:$0xff]
  %vm3398 = vcmp.eq.s32.totalorder %v2718, 0
  %3399 = vrot.lane.b32.xlu0 %v3397, 1
  %v3400 = vpop.permute.xlu0 %3399
  %v3401 = vsel %vm3398, -1e+20, %v3400
  %v3402 = vmax.f32 %v3397, %v3401
  %v3403 = vsub.f32 %v3397, %v3401
  %v3404 = vand.u32 2147483647, %v3403
  %v3405 = vsub.f32 0.0, %v3404
  %v3406 = vmul.f32 %v3405, 1.442695
  %v3407 = vpow.pop %v3406
  %v3408 = vadd.f32 %v3407, 1.0
  %v3409 = vlog2.pop %v3408
  %v3410 = vmul.f32 %v3409, 0.6931472
  %v3411 = vadd.f32 %v3402, %v3410
  %v3412 = vadd.f32 %v3411, %v3396
  %3413 = vmax.xlane.f32.xlu0 %v3412
  %v3414 = vpop.xlane.xlu0 %3413
  %v3415 = vsub.f32 %v3412, %v3414
  %v3416 = vmul.f32 %v3415, 1.442695
  %v3417 = vpow.pop %v3416
  %3418 = vadd.xlane.f32.xlu0 %v3417
  %v3419 = vpop.xlane.xlu0 %3418
  %v3420 = vrcp.pop %v3419
  %v3421 = vmul.f32 %v3419, %v3420
  %v3422 = vsub.f32 2.0, %v3421
  %v3423 = vmul.f32 %v3420, %v3422
  %v3424 = vmul.f32 %v3417, %v3423
  %v3425 = vld [vmem:[%s2] sm:$0xf]
  %v3426 = vld [vmem:[%s2 + $0x4] sm:$0xf]
  %v3427 = vld [vmem:[%s2 + $0x8] sm:$0xf]
  %v3428 = vld [vmem:[%s2 + $0xc] sm:$0xf]
  %v3429 = vld [vmem:[%s2 + $0x10] sm:$0xf]
  %v3430 = vld [vmem:[%s2 + $0x14] sm:$0xf]
  %v3431 = vld [vmem:[%s2 + $0x18] sm:$0xf]
  %v3432 = vld [vmem:[%s2 + $0x1c] sm:$0xf]
  %v3433 = vld [vmem:[%s2 + $0x20] sm:$0xf]
  %v3434 = vld [vmem:[%s2 + $0x24] sm:$0xf]
  %v3435 = vld [vmem:[%s2 + $0x28] sm:$0xf]
  %v3436 = vld [vmem:[%s2 + $0x2c] sm:$0xf]
  %v3437 = vld [vmem:[%s2 + $0x30] sm:$0xf]
  %v3438 = vld [vmem:[%s2 + $0x34] sm:$0xf]
  %v3439 = vld [vmem:[%s2 + $0x38] sm:$0xf]
  %v3440 = vld [vmem:[%s2 + $0x3c] sm:$0xf]
  %v3441 = vld [vmem:[%s2 + $0x40] sm:$0xf]
  %v3442 = vld [vmem:[%s2 + $0x44] sm:$0xf]
  %v3443 = vld [vmem:[%s2 + $0x48] sm:$0xf]
  %v3444 = vld [vmem:[%s2 + $0x4c] sm:$0xf]
  %v3445 = vld [vmem:[%s2 + $0x50] sm:$0xf]
  %v3446 = vld [vmem:[%s2 + $0x54] sm:$0xf]
  %v3447 = vld [vmem:[%s2 + $0x58] sm:$0xf]
  %v3448 = vld [vmem:[%s2 + $0x5c] sm:$0xf]
  %v3449 = vld [vmem:[%s2 + $0x60] sm:$0xf]
  %v3450 = vld [vmem:[%s2 + $0x64] sm:$0xf]
  %v3451 = vld [vmem:[%s2 + $0x68] sm:$0xf]
  %v3452 = vld [vmem:[%s2 + $0x6c] sm:$0xf]
  %v3453 = vld [vmem:[%s2 + $0x70] sm:$0xf]
  %v3454 = vld [vmem:[%s2 + $0x74] sm:$0xf]
  %v3455 = vld [vmem:[%s2 + $0x78] sm:$0xf]
  %v3456 = vld [vmem:[%s2 + $0x7c] sm:$0xf]
  %v3457 = vld [vmem:[%s2 + $0x80] sm:$0xf]
  %v3458 = vld [vmem:[%s2 + $0x84] sm:$0xf]
  %v3459 = vld [vmem:[%s2 + $0x88] sm:$0xf]
  %v3460 = vld [vmem:[%s2 + $0x8c] sm:$0xf]
  %v3461 = vld [vmem:[%s2 + $0x90] sm:$0xf]
  %v3462 = vld [vmem:[%s2 + $0x94] sm:$0xf]
  %v3463 = vld [vmem:[%s2 + $0x98] sm:$0xf]
  %v3464 = vld [vmem:[%s2 + $0x9c] sm:$0xf]
  %v3465 = vld [vmem:[%s2 + $0xa0] sm:$0xf]
  %v3466 = vld [vmem:[%s2 + $0xa4] sm:$0xf]
  %v3467 = vld [vmem:[%s2 + $0xa8] sm:$0xf]
  %v3468 = vld [vmem:[%s2 + $0xac] sm:$0xf]
  %v3469 = vld [vmem:[%s2 + $0xb0] sm:$0xf]
  %v3470 = vld [vmem:[%s2 + $0xb4] sm:$0xf]
  %v3471 = vld [vmem:[%s2 + $0xb8] sm:$0xf]
  %v3472 = vld [vmem:[%s2 + $0xbc] sm:$0xf]
  %v3473 = vld [vmem:[%s2 + $0xc0] sm:$0xf]
  %v3474 = vld [vmem:[%s2 + $0xc4] sm:$0xf]
  %v3475 = vld [vmem:[%s2 + $0xc8] sm:$0xf]
  %v3476 = vld [vmem:[%s2 + $0xcc] sm:$0xf]
  %v3477 = vld [vmem:[%s2 + $0xd0] sm:$0xf]
  %v3478 = vld [vmem:[%s2 + $0xd4] sm:$0xf]
  %v3479 = vld [vmem:[%s2 + $0xd8] sm:$0xf]
  %v3480 = vld [vmem:[%s2 + $0xdc] sm:$0xf]
  %v3481 = vld [vmem:[%s2 + $0xe0] sm:$0xf]
  %v3482 = vld [vmem:[%s2 + $0xe4] sm:$0xf]
  %v3483 = vld [vmem:[%s2 + $0xe8] sm:$0xf]
  %v3484 = vld [vmem:[%s2 + $0xec] sm:$0xf]
  %v3485 = vld [vmem:[%s2 + $0xf0] sm:$0xf]
  %v3486 = vld [vmem:[%s2 + $0xf4] sm:$0xf]
  %v3487 = vld [vmem:[%s2 + $0xf8] sm:$0xf]
  %v3488 = vld [vmem:[%s2 + $0xfc] sm:$0xf]
  %v3489 = vld [vmem:[%s2 + $0x100] sm:$0xf]
  %v3490 = vld [vmem:[%s2 + $0x104] sm:$0xf]
  %v3491 = vld [vmem:[%s2 + $0x108] sm:$0xf]
  %v3492 = vld [vmem:[%s2 + $0x10c] sm:$0xf]
  %v3493 = vld [vmem:[%s2 + $0x110] sm:$0xf]
  %v3494 = vld [vmem:[%s2 + $0x114] sm:$0xf]
  %v3495 = vld [vmem:[%s2 + $0x118] sm:$0xf]
  %v3496 = vld [vmem:[%s2 + $0x11c] sm:$0xf]
  %v3497 = vld [vmem:[%s2 + $0x120] sm:$0xf]
  %v3498 = vld [vmem:[%s2 + $0x124] sm:$0xf]
  %v3499 = vld [vmem:[%s2 + $0x128] sm:$0xf]
  %v3500 = vld [vmem:[%s2 + $0x12c] sm:$0xf]
  %v3501 = vld [vmem:[%s2 + $0x130] sm:$0xf]
  %v3502 = vld [vmem:[%s2 + $0x134] sm:$0xf]
  %v3503 = vld [vmem:[%s2 + $0x138] sm:$0xf]
  %v3504 = vld [vmem:[%s2 + $0x13c] sm:$0xf]
  %v3505 = vld [vmem:[%s2 + $0x140] sm:$0xf]
  %v3506 = vld [vmem:[%s2 + $0x144] sm:$0xf]
  %v3507 = vld [vmem:[%s2 + $0x148] sm:$0xf]
  %v3508 = vld [vmem:[%s2 + $0x14c] sm:$0xf]
  %v3509 = vld [vmem:[%s2 + $0x150] sm:$0xf]
  %v3510 = vld [vmem:[%s2 + $0x154] sm:$0xf]
  %v3511 = vld [vmem:[%s2 + $0x158] sm:$0xf]
  %v3512 = vld [vmem:[%s2 + $0x15c] sm:$0xf]
  %v3513 = vld [vmem:[%s2 + $0x160] sm:$0xf]
  %v3514 = vld [vmem:[%s2 + $0x164] sm:$0xf]
  %v3515 = vld [vmem:[%s2 + $0x168] sm:$0xf]
  %v3516 = vld [vmem:[%s2 + $0x16c] sm:$0xf]
  %v3517 = vld [vmem:[%s2 + $0x170] sm:$0xf]
  %v3518 = vld [vmem:[%s2 + $0x174] sm:$0xf]
  %v3519 = vld [vmem:[%s2 + $0x178] sm:$0xf]
  %v3520 = vld [vmem:[%s2 + $0x17c] sm:$0xf]
  %v3521 = vld [vmem:[%s2 + $0x180] sm:$0xf]
  %v3522 = vld [vmem:[%s2 + $0x184] sm:$0xf]
  %v3523 = vld [vmem:[%s2 + $0x188] sm:$0xf]
  %v3524 = vld [vmem:[%s2 + $0x18c] sm:$0xf]
  %v3525 = vld [vmem:[%s2 + $0x190] sm:$0xf]
  %v3526 = vld [vmem:[%s2 + $0x194] sm:$0xf]
  %v3527 = vld [vmem:[%s2 + $0x198] sm:$0xf]
  %v3528 = vld [vmem:[%s2 + $0x19c] sm:$0xf]
  %v3529 = vld [vmem:[%s2 + $0x1a0] sm:$0xf]
  %v3530 = vld [vmem:[%s2 + $0x1a4] sm:$0xf]
  %v3531 = vld [vmem:[%s2 + $0x1a8] sm:$0xf]
  %v3532 = vld [vmem:[%s2 + $0x1ac] sm:$0xf]
  %v3533 = vld [vmem:[%s2 + $0x1b0] sm:$0xf]
  %v3534 = vld [vmem:[%s2 + $0x1b4] sm:$0xf]
  %v3535 = vld [vmem:[%s2 + $0x1b8] sm:$0xf]
  %v3536 = vld [vmem:[%s2 + $0x1bc] sm:$0xf]
  %v3537 = vld [vmem:[%s2 + $0x1c0] sm:$0xf]
  %v3538 = vld [vmem:[%s2 + $0x1c4] sm:$0xf]
  %v3539 = vld [vmem:[%s2 + $0x1c8] sm:$0xf]
  %v3540 = vld [vmem:[%s2 + $0x1cc] sm:$0xf]
  %v3541 = vld [vmem:[%s2 + $0x1d0] sm:$0xf]
  %v3542 = vld [vmem:[%s2 + $0x1d4] sm:$0xf]
  %v3543 = vld [vmem:[%s2 + $0x1d8] sm:$0xf]
  %v3544 = vld [vmem:[%s2 + $0x1dc] sm:$0xf]
  %v3545 = vld [vmem:[%s2 + $0x1e0] sm:$0xf]
  %v3546 = vld [vmem:[%s2 + $0x1e4] sm:$0xf]
  %v3547 = vld [vmem:[%s2 + $0x1e8] sm:$0xf]
  %v3548 = vld [vmem:[%s2 + $0x1ec] sm:$0xf]
  %v3549 = vld [vmem:[%s2 + $0x1f0] sm:$0xf]
  %v3550 = vld [vmem:[%s2 + $0x1f4] sm:$0xf]
  %v3551 = vld [vmem:[%s2 + $0x1f8] sm:$0xf]
  %v3552 = vld [vmem:[%s2 + $0x1fc] sm:$0xf]
  %v3553 = vunpack.c.l.bf16 %v3425
  %v3554 = vunpack.c.l.bf16 %v3426
  %v3555 = vunpack.c.l.bf16 %v3427
  %v3556 = vunpack.c.l.bf16 %v3428
  %v3557 = vunpack.c.l.bf16 %v3429
  %v3558 = vunpack.c.l.bf16 %v3430
  %v3559 = vunpack.c.l.bf16 %v3431
  %v3560 = vunpack.c.l.bf16 %v3432
  %v3561 = vunpack.c.l.bf16 %v3433
  %v3562 = vunpack.c.l.bf16 %v3434
  %v3563 = vunpack.c.l.bf16 %v3435
  %v3564 = vunpack.c.l.bf16 %v3436
  %v3565 = vunpack.c.l.bf16 %v3437
  %v3566 = vunpack.c.l.bf16 %v3438
  %v3567 = vunpack.c.l.bf16 %v3439
  %v3568 = vunpack.c.l.bf16 %v3440
  %v3569 = vunpack.c.l.bf16 %v3441
  %v3570 = vunpack.c.l.bf16 %v3442
  %v3571 = vunpack.c.l.bf16 %v3443
  %v3572 = vunpack.c.l.bf16 %v3444
  %v3573 = vunpack.c.l.bf16 %v3445
  %v3574 = vunpack.c.l.bf16 %v3446
  %v3575 = vunpack.c.l.bf16 %v3447
  %v3576 = vunpack.c.l.bf16 %v3448
  %v3577 = vunpack.c.l.bf16 %v3449
  %v3578 = vunpack.c.l.bf16 %v3450
  %v3579 = vunpack.c.l.bf16 %v3451
  %v3580 = vunpack.c.l.bf16 %v3452
  %v3581 = vunpack.c.l.bf16 %v3453
  %v3582 = vunpack.c.l.bf16 %v3454
  %v3583 = vunpack.c.l.bf16 %v3455
  %v3584 = vunpack.c.l.bf16 %v3456
  %v3585 = vunpack.c.l.bf16 %v3457
  %v3586 = vunpack.c.l.bf16 %v3458
  %v3587 = vunpack.c.l.bf16 %v3459
  %v3588 = vunpack.c.l.bf16 %v3460
  %v3589 = vunpack.c.l.bf16 %v3461
  %v3590 = vunpack.c.l.bf16 %v3462
  %v3591 = vunpack.c.l.bf16 %v3463
  %v3592 = vunpack.c.l.bf16 %v3464
  %v3593 = vunpack.c.l.bf16 %v3465
  %v3594 = vunpack.c.l.bf16 %v3466
  %v3595 = vunpack.c.l.bf16 %v3467
  %v3596 = vunpack.c.l.bf16 %v3468
  %v3597 = vunpack.c.l.bf16 %v3469
  %v3598 = vunpack.c.l.bf16 %v3470
  %v3599 = vunpack.c.l.bf16 %v3471
  %v3600 = vunpack.c.l.bf16 %v3472
  %v3601 = vunpack.c.l.bf16 %v3473
  %v3602 = vunpack.c.l.bf16 %v3474
  %v3603 = vunpack.c.l.bf16 %v3475
  %v3604 = vunpack.c.l.bf16 %v3476
  %v3605 = vunpack.c.l.bf16 %v3477
  %v3606 = vunpack.c.l.bf16 %v3478
  %v3607 = vunpack.c.l.bf16 %v3479
  %v3608 = vunpack.c.l.bf16 %v3480
  %v3609 = vunpack.c.l.bf16 %v3481
  %v3610 = vunpack.c.l.bf16 %v3482
  %v3611 = vunpack.c.l.bf16 %v3483
  %v3612 = vunpack.c.l.bf16 %v3484
  %v3613 = vunpack.c.l.bf16 %v3485
  %v3614 = vunpack.c.l.bf16 %v3486
  %v3615 = vunpack.c.l.bf16 %v3487
  %v3616 = vunpack.c.l.bf16 %v3488
  %v3617 = vunpack.c.l.bf16 %v3489
  %v3618 = vunpack.c.l.bf16 %v3490
  %v3619 = vunpack.c.l.bf16 %v3491
  %v3620 = vunpack.c.l.bf16 %v3492
  %v3621 = vunpack.c.l.bf16 %v3493
  %v3622 = vunpack.c.l.bf16 %v3494
  %v3623 = vunpack.c.l.bf16 %v3495
  %v3624 = vunpack.c.l.bf16 %v3496
  %v3625 = vunpack.c.l.bf16 %v3497
  %v3626 = vunpack.c.l.bf16 %v3498
  %v3627 = vunpack.c.l.bf16 %v3499
  %v3628 = vunpack.c.l.bf16 %v3500
  %v3629 = vunpack.c.l.bf16 %v3501
  %v3630 = vunpack.c.l.bf16 %v3502
  %v3631 = vunpack.c.l.bf16 %v3503
  %v3632 = vunpack.c.l.bf16 %v3504
  %v3633 = vunpack.c.l.bf16 %v3505
  %v3634 = vunpack.c.l.bf16 %v3506
  %v3635 = vunpack.c.l.bf16 %v3507
  %v3636 = vunpack.c.l.bf16 %v3508
  %v3637 = vunpack.c.l.bf16 %v3509
  %v3638 = vunpack.c.l.bf16 %v3510
  %v3639 = vunpack.c.l.bf16 %v3511
  %v3640 = vunpack.c.l.bf16 %v3512
  %v3641 = vunpack.c.l.bf16 %v3513
  %v3642 = vunpack.c.l.bf16 %v3514
  %v3643 = vunpack.c.l.bf16 %v3515
  %v3644 = vunpack.c.l.bf16 %v3516
  %v3645 = vunpack.c.l.bf16 %v3517
  %v3646 = vunpack.c.l.bf16 %v3518
  %v3647 = vunpack.c.l.bf16 %v3519
  %v3648 = vunpack.c.l.bf16 %v3520
  %v3649 = vunpack.c.l.bf16 %v3521
  %v3650 = vunpack.c.l.bf16 %v3522
  %v3651 = vunpack.c.l.bf16 %v3523
  %v3652 = vunpack.c.l.bf16 %v3524
  %v3653 = vunpack.c.l.bf16 %v3525
  %v3654 = vunpack.c.l.bf16 %v3526
  %v3655 = vunpack.c.l.bf16 %v3527
  %v3656 = vunpack.c.l.bf16 %v3528
  %v3657 = vunpack.c.l.bf16 %v3529
  %v3658 = vunpack.c.l.bf16 %v3530
  %v3659 = vunpack.c.l.bf16 %v3531
  %v3660 = vunpack.c.l.bf16 %v3532
  %v3661 = vunpack.c.l.bf16 %v3533
  %v3662 = vunpack.c.l.bf16 %v3534
  %v3663 = vunpack.c.l.bf16 %v3535
  %v3664 = vunpack.c.l.bf16 %v3536
  %v3665 = vunpack.c.l.bf16 %v3537
  %v3666 = vunpack.c.l.bf16 %v3538
  %v3667 = vunpack.c.l.bf16 %v3539
  %v3668 = vunpack.c.l.bf16 %v3540
  %v3669 = vunpack.c.l.bf16 %v3541
  %v3670 = vunpack.c.l.bf16 %v3542
  %v3671 = vunpack.c.l.bf16 %v3543
  %v3672 = vunpack.c.l.bf16 %v3544
  %v3673 = vunpack.c.l.bf16 %v3545
  %v3674 = vunpack.c.l.bf16 %v3546
  %v3675 = vunpack.c.l.bf16 %v3547
  %v3676 = vunpack.c.l.bf16 %v3548
  %v3677 = vunpack.c.l.bf16 %v3549
  %v3678 = vunpack.c.l.bf16 %v3550
  %v3679 = vunpack.c.l.bf16 %v3551
  %v3680 = vunpack.c.l.bf16 %v3552
  %v3682 = vcombine.high %v3424, %v3424
  %v3684 = vunpack.c.l.s4 1966171168
  %v3685 = vunpack.c.0.s8 %v3684
  %v3686 = vlaneseq
  %v3687 = vshrl.u32 %v3686, 7
  %v3688 = vsub.s32 %v3685, %v3687
  %v3689 = vrot.slane %v3424, %v3688
  %v3691 = vunpack.c.l.s4 1966171168
  %v3692 = vunpack.c.0.s8 %v3691
  %v3693 = vlaneseq
  %v3694 = vshrl.u32 %v3693, 7
  %v3695 = vsub.s32 %v3692, %v3694
  %v3696 = vrot.slane %v3682, %v3695
  %v3697 = vcombine.high %v3689, %v3689
  %v3698 = vcombine.high %v3696, %v3696
  %v3700 = vunpack.c.l.s4 1966171168
  %v3701 = vunpack.c.0.s8 %v3700
  %v3702 = vlaneseq
  %v3703 = vshrl.u32 %v3702, 7
  %v3704 = vsub.s32 %v3701, %v3703
  %v3705 = vrot.slane %v3689, %v3704
  %v3707 = vunpack.c.l.s4 1966171168
  %v3708 = vunpack.c.0.s8 %v3707
  %v3709 = vlaneseq
  %v3710 = vshrl.u32 %v3709, 7
  %v3711 = vsub.s32 %v3708, %v3710
  %v3712 = vrot.slane %v3696, %v3711
  %v3714 = vunpack.c.l.s4 1966171168
  %v3715 = vunpack.c.0.s8 %v3714
  %v3716 = vlaneseq
  %v3717 = vshrl.u32 %v3716, 7
  %v3718 = vsub.s32 %v3715, %v3717
  %v3719 = vrot.slane %v3697, %v3718
  %v3721 = vunpack.c.l.s4 1966171168
  %v3722 = vunpack.c.0.s8 %v3721
  %v3723 = vlaneseq
  %v3724 = vshrl.u32 %v3723, 7
  %v3725 = vsub.s32 %v3722, %v3724
  %v3726 = vrot.slane %v3698, %v3725
  %v3727 = vcombine.high %v3705, %v3705
  %v3728 = vcombine.high %v3712, %v3712
  %v3729 = vcombine.high %v3719, %v3719
  %v3730 = vcombine.high %v3726, %v3726
  %3739 = vmatprep.subr.mxu0 0.0
  %3740 = vmatpush1.msra.mxu0 %v3553
  %3741 = vmatprep.subr.mxu0 0.0
  %3742 = vmatpush1.msra.mxu0 %v3554
  %3743 = vmatprep.subr.mxu0 0.0
  %3744 = vmatpush1.msra.mxu0 %v3555
  %3745 = vmatprep.subr.mxu0 0.0
  %3746 = vmatpush1.msra.mxu0 %v3556
  %3747 = vmatprep.subr.mxu0 0.0
  %3748 = vmatpush1.msra.mxu0 %v3557
  %3749 = vmatprep.subr.mxu0 0.0
  %3750 = vmatpush1.msra.mxu0 %v3558
  %3751 = vmatprep.subr.mxu0 0.0
  %3752 = vmatpush1.msra.mxu0 %v3559
  %3753 = vmatprep.subr.mxu0 0.0
  %3754 = vmatpush1.msra.mxu0 %v3560
  %3755 = vmatprep.subr.mxu0 0.0
  %3756 = vmatpush1.msra.mxu0 %v3561
  %3757 = vmatprep.subr.mxu0 0.0
  %3758 = vmatpush1.msra.mxu0 %v3562
  %3759 = vmatprep.subr.mxu0 0.0
  %3760 = vmatpush1.msra.mxu0 %v3563
  %3761 = vmatprep.subr.mxu0 0.0
  %3762 = vmatpush1.msra.mxu0 %v3564
  %3763 = vmatprep.subr.mxu0 0.0
  %3764 = vmatpush1.msra.mxu0 %v3565
  %3765 = vmatprep.subr.mxu0 0.0
  %3766 = vmatpush1.msra.mxu0 %v3566
  %3767 = vmatprep.subr.mxu0 0.0
  %3768 = vmatpush1.msra.mxu0 %v3567
  %3769 = vmatprep.subr.mxu0 0.0
  %3770 = vmatpush1.msra.mxu0 %v3568
  %3771 = vmatprep.subr.mxu0 0.0
  %3772 = vmatpush1.msra.mxu0 0.0
  %3773 = vmatprep.subr.mxu0 0.0
  %3774 = vmatpush1.msra.mxu0 0.0
  %3775 = vmatprep.subr.mxu0 0.0
  %3776 = vmatpush1.msra.mxu0 0.0
  %3777 = vmatprep.subr.mxu0 0.0
  %3778 = vmatpush1.msra.mxu0 0.0
  %3779 = vmatprep.subr.mxu0 0.0
  %3780 = vmatpush1.msra.mxu0 0.0
  %3781 = vmatprep.subr.mxu0 0.0
  %3782 = vmatpush1.msra.mxu0 0.0
  %3783 = vmatprep.subr.mxu0 0.0
  %3784 = vmatpush1.msra.mxu0 0.0
  %3785 = vmatprep.subr.mxu0 0.0
  %3786 = vmatpush1.msra.mxu0 0.0
  %3787 = vmatprep.subr.mxu0 0.0
  %3788 = vmatpush1.msra.mxu0 0.0
  %3789 = vmatprep.subr.mxu0 0.0
  %3790 = vmatpush1.msra.mxu0 0.0
  %3791 = vmatprep.subr.mxu0 0.0
  %3792 = vmatpush1.msra.mxu0 0.0
  %3793 = vmatprep.subr.mxu0 0.0
  %3794 = vmatpush1.msra.mxu0 0.0
  %3795 = vmatprep.subr.mxu0 0.0
  %3796 = vmatpush1.msra.mxu0 0.0
  %3797 = vmatprep.subr.mxu0 0.0
  %3798 = vmatpush1.msra.mxu0 0.0
  %3799 = vmatprep.subr.mxu0 0.0
  %3800 = vmatpush1.msra.mxu0 0.0
  %3801 = vmatprep.subr.mxu0 0.0
  %3802 = vmatpush1.msra.mxu0 0.0
  %3803 = vmatprep.mubr.f32.mxu0 0.0
  %3804 = vmatmul.mubr.f32.gmra.mrb[0].mxu0 %v3705
  %v3805 = vpop.f32.mrb[0].mxu0
  %v3806 = vadd.f32 0.0, %v3805
  %v3807 = vpop.f32.mrb[0].mxu0
  %3808 = vdwg.mxu0
  %3809 = vmatprep.subr.mxu0 0.0
  %3810 = vmatpush1.msra.mxu0 %v3569
  %3811 = vmatprep.subr.mxu0 0.0
  %3812 = vmatpush1.msra.mxu0 %v3570
  %3813 = vmatprep.subr.mxu0 0.0
  %3814 = vmatpush1.msra.mxu0 %v3571
  %3815 = vmatprep.subr.mxu0 0.0
  %3816 = vmatpush1.msra.mxu0 %v3572
  %3817 = vmatprep.subr.mxu0 0.0
  %3818 = vmatpush1.msra.mxu0 %v3573
  %3819 = vmatprep.subr.mxu0 0.0
  %3820 = vmatpush1.msra.mxu0 %v3574
  %3821 = vmatprep.subr.mxu0 0.0
  %3822 = vmatpush1.msra.mxu0 %v3575
  %3823 = vmatprep.subr.mxu0 0.0
  %3824 = vmatpush1.msra.mxu0 %v3576
  %3825 = vmatprep.subr.mxu0 0.0
  %3826 = vmatpush1.msra.mxu0 %v3577
  %3827 = vmatprep.subr.mxu0 0.0
  %3828 = vmatpush1.msra.mxu0 %v3578
  %3829 = vmatprep.subr.mxu0 0.0
  %3830 = vmatpush1.msra.mxu0 %v3579
  %3831 = vmatprep.subr.mxu0 0.0
  %3832 = vmatpush1.msra.mxu0 %v3580
  %3833 = vmatprep.subr.mxu0 0.0
  %3834 = vmatpush1.msra.mxu0 %v3581
  %3835 = vmatprep.subr.mxu0 0.0
  %3836 = vmatpush1.msra.mxu0 %v3582
  %3837 = vmatprep.subr.mxu0 0.0
  %3838 = vmatpush1.msra.mxu0 %v3583
  %3839 = vmatprep.subr.mxu0 0.0
  %3840 = vmatpush1.msra.mxu0 %v3584
  %3841 = vmatprep.subr.mxu0 0.0
  %3842 = vmatpush1.msra.mxu0 0.0
  %3843 = vmatprep.subr.mxu0 0.0
  %3844 = vmatpush1.msra.mxu0 0.0
  %3845 = vmatprep.subr.mxu0 0.0
  %3846 = vmatpush1.msra.mxu0 0.0
  %3847 = vmatprep.subr.mxu0 0.0
  %3848 = vmatpush1.msra.mxu0 0.0
  %3849 = vmatprep.subr.mxu0 0.0
  %3850 = vmatpush1.msra.mxu0 0.0
  %3851 = vmatprep.subr.mxu0 0.0
  %3852 = vmatpush1.msra.mxu0 0.0
  %3853 = vmatprep.subr.mxu0 0.0
  %3854 = vmatpush1.msra.mxu0 0.0
  %3855 = vmatprep.subr.mxu0 0.0
  %3856 = vmatpush1.msra.mxu0 0.0
  %3857 = vmatprep.subr.mxu0 0.0
  %3858 = vmatpush1.msra.mxu0 0.0
  %3859 = vmatprep.subr.mxu0 0.0
  %3860 = vmatpush1.msra.mxu0 0.0
  %3861 = vmatprep.subr.mxu0 0.0
  %3862 = vmatpush1.msra.mxu0 0.0
  %3863 = vmatprep.subr.mxu0 0.0
  %3864 = vmatpush1.msra.mxu0 0.0
  %3865 = vmatprep.subr.mxu0 0.0
  %3866 = vmatpush1.msra.mxu0 0.0
  %3867 = vmatprep.subr.mxu0 0.0
  %3868 = vmatpush1.msra.mxu0 0.0
  %3869 = vmatprep.subr.mxu0 0.0
  %3870 = vmatpush1.msra.mxu0 0.0
  %3871 = vmatprep.subr.mxu0 0.0
  %3872 = vmatpush1.msra.mxu0 0.0
  %3873 = vmatprep.mubr.f32.mxu0 0.0
  %3874 = vmatmul.mubr.f32.gmra.mrb[0].mxu0 %v3719
  %v3875 = vpop.f32.mrb[0].mxu0
  %v3876 = vadd.f32 0.0, %v3875
  %v3877 = vpop.f32.mrb[0].mxu0
  %3878 = vdwg.mxu0
  %3879 = vmatprep.subr.mxu0 0.0
  %3880 = vmatpush1.msra.mxu0 %v3585
  %3881 = vmatprep.subr.mxu0 0.0
  %3882 = vmatpush1.msra.mxu0 %v3586
  %3883 = vmatprep.subr.mxu0 0.0
  %3884 = vmatpush1.msra.mxu0 %v3587
  %3885 = vmatprep.subr.mxu0 0.0
  %3886 = vmatpush1.msra.mxu0 %v3588
  %3887 = vmatprep.subr.mxu0 0.0
  %3888 = vmatpush1.msra.mxu0 %v3589
  %3889 = vmatprep.subr.mxu0 0.0
  %3890 = vmatpush1.msra.mxu0 %v3590
  %3891 = vmatprep.subr.mxu0 0.0
  %3892 = vmatpush1.msra.mxu0 %v3591
  %3893 = vmatprep.subr.mxu0 0.0
  %3894 = vmatpush1.msra.mxu0 %v3592
  %3895 = vmatprep.subr.mxu0 0.0
  %3896 = vmatpush1.msra.mxu0 %v3593
  %3897 = vmatprep.subr.mxu0 0.0
  %3898 = vmatpush1.msra.mxu0 %v3594
  %3899 = vmatprep.subr.mxu0 0.0
  %3900 = vmatpush1.msra.mxu0 %v3595
  %3901 = vmatprep.subr.mxu0 0.0
  %3902 = vmatpush1.msra.mxu0 %v3596
  %3903 = vmatprep.subr.mxu0 0.0
  %3904 = vmatpush1.msra.mxu0 %v3597
  %3905 = vmatprep.subr.mxu0 0.0
  %3906 = vmatpush1.msra.mxu0 %v3598
  %3907 = vmatprep.subr.mxu0 0.0
  %3908 = vmatpush1.msra.mxu0 %v3599
  %3909 = vmatprep.subr.mxu0 0.0
  %3910 = vmatpush1.msra.mxu0 %v3600
  %3911 = vmatprep.subr.mxu0 0.0
  %3912 = vmatpush1.msra.mxu0 0.0
  %3913 = vmatprep.subr.mxu0 0.0
  %3914 = vmatpush1.msra.mxu0 0.0
  %3915 = vmatprep.subr.mxu0 0.0
  %3916 = vmatpush1.msra.mxu0 0.0
  %3917 = vmatprep.subr.mxu0 0.0
  %3918 = vmatpush1.msra.mxu0 0.0
  %3919 = vmatprep.subr.mxu0 0.0
  %3920 = vmatpush1.msra.mxu0 0.0
  %3921 = vmatprep.subr.mxu0 0.0
  %3922 = vmatpush1.msra.mxu0 0.0
  %3923 = vmatprep.subr.mxu0 0.0
  %3924 = vmatpush1.msra.mxu0 0.0
  %3925 = vmatprep.subr.mxu0 0.0
  %3926 = vmatpush1.msra.mxu0 0.0
  %3927 = vmatprep.subr.mxu0 0.0
  %3928 = vmatpush1.msra.mxu0 0.0
  %3929 = vmatprep.subr.mxu0 0.0
  %3930 = vmatpush1.msra.mxu0 0.0
  %3931 = vmatprep.subr.mxu0 0.0
  %3932 = vmatpush1.msra.mxu0 0.0
  %3933 = vmatprep.subr.mxu0 0.0
  %3934 = vmatpush1.msra.mxu0 0.0
  %3935 = vmatprep.subr.mxu0 0.0
  %3936 = vmatpush1.msra.mxu0 0.0
  %3937 = vmatprep.subr.mxu0 0.0
  %3938 = vmatpush1.msra.mxu0 0.0
  %3939 = vmatprep.subr.mxu0 0.0
  %3940 = vmatpush1.msra.mxu0 0.0
  %3941 = vmatprep.subr.mxu0 0.0
  %3942 = vmatpush1.msra.mxu0 0.0
  %3943 = vmatprep.mubr.f32.mxu0 0.0
  %3944 = vmatmul.mubr.f32.gmra.mrb[0].mxu0 %v3727
  %v3945 = vpop.f32.mrb[0].mxu0
  %v3946 = vadd.f32 0.0, %v3945
  %v3947 = vpop.f32.mrb[0].mxu0
  %3948 = vdwg.mxu0
  %3949 = vmatprep.subr.mxu0 0.0
  %3950 = vmatpush1.msra.mxu0 %v3601
  %3951 = vmatprep.subr.mxu0 0.0
  %3952 = vmatpush1.msra.mxu0 %v3602
  %3953 = vmatprep.subr.mxu0 0.0
  %3954 = vmatpush1.msra.mxu0 %v3603
  %3955 = vmatprep.subr.mxu0 0.0
  %3956 = vmatpush1.msra.mxu0 %v3604
  %3957 = vmatprep.subr.mxu0 0.0
  %3958 = vmatpush1.msra.mxu0 %v3605
  %3959 = vmatprep.subr.mxu0 0.0
  %3960 = vmatpush1.msra.mxu0 %v3606
  %3961 = vmatprep.subr.mxu0 0.0
  %3962 = vmatpush1.msra.mxu0 %v3607
  %3963 = vmatprep.subr.mxu0 0.0
  %3964 = vmatpush1.msra.mxu0 %v3608
  %3965 = vmatprep.subr.mxu0 0.0
  %3966 = vmatpush1.msra.mxu0 %v3609
  %3967 = vmatprep.subr.mxu0 0.0
  %3968 = vmatpush1.msra.mxu0 %v3610
  %3969 = vmatprep.subr.mxu0 0.0
  %3970 = vmatpush1.msra.mxu0 %v3611
  %3971 = vmatprep.subr.mxu0 0.0
  %3972 = vmatpush1.msra.mxu0 %v3612
  %3973 = vmatprep.subr.mxu0 0.0
  %3974 = vmatpush1.msra.mxu0 %v3613
  %3975 = vmatprep.subr.mxu0 0.0
  %3976 = vmatpush1.msra.mxu0 %v3614
  %3977 = vmatprep.subr.mxu0 0.0
  %3978 = vmatpush1.msra.mxu0 %v3615
  %3979 = vmatprep.subr.mxu0 0.0
  %3980 = vmatpush1.msra.mxu0 %v3616
  %3981 = vmatprep.subr.mxu0 0.0
  %3982 = vmatpush1.msra.mxu0 0.0
  %3983 = vmatprep.subr.mxu0 0.0
  %3984 = vmatpush1.msra.mxu0 0.0
  %3985 = vmatprep.subr.mxu0 0.0
  %3986 = vmatpush1.msra.mxu0 0.0
  %3987 = vmatprep.subr.mxu0 0.0
  %3988 = vmatpush1.msra.mxu0 0.0
  %3989 = vmatprep.subr.mxu0 0.0
  %3990 = vmatpush1.msra.mxu0 0.0
  %3991 = vmatprep.subr.mxu0 0.0
  %3992 = vmatpush1.msra.mxu0 0.0
  %3993 = vmatprep.subr.mxu0 0.0
  %3994 = vmatpush1.msra.mxu0 0.0
  %3995 = vmatprep.subr.mxu0 0.0
  %3996 = vmatpush1.msra.mxu0 0.0
  %3997 = vmatprep.subr.mxu0 0.0
  %3998 = vmatpush1.msra.mxu0 0.0
  %3999 = vmatprep.subr.mxu0 0.0
  %4000 = vmatpush1.msra.mxu0 0.0
  %4001 = vmatprep.subr.mxu0 0.0
  %4002 = vmatpush1.msra.mxu0 0.0
  %4003 = vmatprep.subr.mxu0 0.0
  %4004 = vmatpush1.msra.mxu0 0.0
  %4005 = vmatprep.subr.mxu0 0.0
  %4006 = vmatpush1.msra.mxu0 0.0
  %4007 = vmatprep.subr.mxu0 0.0
  %4008 = vmatpush1.msra.mxu0 0.0
  %4009 = vmatprep.subr.mxu0 0.0
  %4010 = vmatpush1.msra.mxu0 0.0
  %4011 = vmatprep.subr.mxu0 0.0
  %4012 = vmatpush1.msra.mxu0 0.0
  %4013 = vmatprep.mubr.f32.mxu0 0.0
  %4014 = vmatmul.mubr.f32.gmra.mrb[0].mxu0 %v3729
  %v4015 = vpop.f32.mrb[0].mxu0
  %v4016 = vadd.f32 0.0, %v4015
  %v4017 = vpop.f32.mrb[0].mxu0
  %4018 = vdwg.mxu0
  %4019 = vmatprep.subr.mxu0 0.0
  %4020 = vmatpush1.msra.mxu0 %v3617
  %4021 = vmatprep.subr.mxu0 0.0
  %4022 = vmatpush1.msra.mxu0 %v3618
  %4023 = vmatprep.subr.mxu0 0.0
  %4024 = vmatpush1.msra.mxu0 %v3619
  %4025 = vmatprep.subr.mxu0 0.0
  %4026 = vmatpush1.msra.mxu0 %v3620
  %4027 = vmatprep.subr.mxu0 0.0
  %4028 = vmatpush1.msra.mxu0 %v3621
  %4029 = vmatprep.subr.mxu0 0.0
  %4030 = vmatpush1.msra.mxu0 %v3622
  %4031 = vmatprep.subr.mxu0 0.0
  %4032 = vmatpush1.msra.mxu0 %v3623
  %4033 = vmatprep.subr.mxu0 0.0
  %4034 = vmatpush1.msra.mxu0 %v3624
  %4035 = vmatprep.subr.mxu0 0.0
  %4036 = vmatpush1.msra.mxu0 %v3625
  %4037 = vmatprep.subr.mxu0 0.0
  %4038 = vmatpush1.msra.mxu0 %v3626
  %4039 = vmatprep.subr.mxu0 0.0
  %4040 = vmatpush1.msra.mxu0 %v3627
  %4041 = vmatprep.subr.mxu0 0.0
  %4042 = vmatpush1.msra.mxu0 %v3628
  %4043 = vmatprep.subr.mxu0 0.0
  %4044 = vmatpush1.msra.mxu0 %v3629
  %4045 = vmatprep.subr.mxu0 0.0
  %4046 = vmatpush1.msra.mxu0 %v3630
  %4047 = vmatprep.subr.mxu0 0.0
  %4048 = vmatpush1.msra.mxu0 %v3631
  %4049 = vmatprep.subr.mxu0 0.0
  %4050 = vmatpush1.msra.mxu0 %v3632
  %4051 = vmatprep.subr.mxu0 0.0
  %4052 = vmatpush1.msra.mxu0 0.0
  %4053 = vmatprep.subr.mxu0 0.0
  %4054 = vmatpush1.msra.mxu0 0.0
  %4055 = vmatprep.subr.mxu0 0.0
  %4056 = vmatpush1.msra.mxu0 0.0
  %4057 = vmatprep.subr.mxu0 0.0
  %4058 = vmatpush1.msra.mxu0 0.0
  %4059 = vmatprep.subr.mxu0 0.0
  %4060 = vmatpush1.msra.mxu0 0.0
  %4061 = vmatprep.subr.mxu0 0.0
  %4062 = vmatpush1.msra.mxu0 0.0
  %4063 = vmatprep.subr.mxu0 0.0
  %4064 = vmatpush1.msra.mxu0 0.0
  %4065 = vmatprep.subr.mxu0 0.0
  %4066 = vmatpush1.msra.mxu0 0.0
  %4067 = vmatprep.subr.mxu0 0.0
  %4068 = vmatpush1.msra.mxu0 0.0
  %4069 = vmatprep.subr.mxu0 0.0
  %4070 = vmatpush1.msra.mxu0 0.0
  %4071 = vmatprep.subr.mxu0 0.0
  %4072 = vmatpush1.msra.mxu0 0.0
  %4073 = vmatprep.subr.mxu0 0.0
  %4074 = vmatpush1.msra.mxu0 0.0
  %4075 = vmatprep.subr.mxu0 0.0
  %4076 = vmatpush1.msra.mxu0 0.0
  %4077 = vmatprep.subr.mxu0 0.0
  %4078 = vmatpush1.msra.mxu0 0.0
  %4079 = vmatprep.subr.mxu0 0.0
  %4080 = vmatpush1.msra.mxu0 0.0
  %4081 = vmatprep.subr.mxu0 0.0
  %4082 = vmatpush1.msra.mxu0 0.0
  %4083 = vmatprep.mubr.f32.mxu0 0.0
  %4084 = vmatmul.mubr.f32.gmra.mrb[0].mxu0 %v3712
  %v4085 = vpop.f32.mrb[0].mxu0
  %v4086 = vadd.f32 0.0, %v4085
  %v4087 = vpop.f32.mrb[0].mxu0
  %4088 = vdwg.mxu0
  %4089 = vmatprep.subr.mxu0 0.0
  %4090 = vmatpush1.msra.mxu0 %v3633
  %4091 = vmatprep.subr.mxu0 0.0
  %4092 = vmatpush1.msra.mxu0 %v3634
  %4093 = vmatprep.subr.mxu0 0.0
  %4094 = vmatpush1.msra.mxu0 %v3635
  %4095 = vmatprep.subr.mxu0 0.0
  %4096 = vmatpush1.msra.mxu0 %v3636
  %4097 = vmatprep.subr.mxu0 0.0
  %4098 = vmatpush1.msra.mxu0 %v3637
  %4099 = vmatprep.subr.mxu0 0.0
  %4100 = vmatpush1.msra.mxu0 %v3638
  %4101 = vmatprep.subr.mxu0 0.0
  %4102 = vmatpush1.msra.mxu0 %v3639
  %4103 = vmatprep.subr.mxu0 0.0
  %4104 = vmatpush1.msra.mxu0 %v3640
  %4105 = vmatprep.subr.mxu0 0.0
  %4106 = vmatpush1.msra.mxu0 %v3641
  %4107 = vmatprep.subr.mxu0 0.0
  %4108 = vmatpush1.msra.mxu0 %v3642
  %4109 = vmatprep.subr.mxu0 0.0
  %4110 = vmatpush1.msra.mxu0 %v3643
  %4111 = vmatprep.subr.mxu0 0.0
  %4112 = vmatpush1.msra.mxu0 %v3644
  %4113 = vmatprep.subr.mxu0 0.0
  %4114 = vmatpush1.msra.mxu0 %v3645
  %4115 = vmatprep.subr.mxu0 0.0
  %4116 = vmatpush1.msra.mxu0 %v3646
  %4117 = vmatprep.subr.mxu0 0.0
  %4118 = vmatpush1.msra.mxu0 %v3647
  %4119 = vmatprep.subr.mxu0 0.0
  %4120 = vmatpush1.msra.mxu0 %v3648
  %4121 = vmatprep.subr.mxu0 0.0
  %4122 = vmatpush1.msra.mxu0 0.0
  %4123 = vmatprep.subr.mxu0 0.0
  %4124 = vmatpush1.msra.mxu0 0.0
  %4125 = vmatprep.subr.mxu0 0.0
  %4126 = vmatpush1.msra.mxu0 0.0
  %4127 = vmatprep.subr.mxu0 0.0
  %4128 = vmatpush1.msra.mxu0 0.0
  %4129 = vmatprep.subr.mxu0 0.0
  %4130 = vmatpush1.msra.mxu0 0.0
  %4131 = vmatprep.subr.mxu0 0.0
  %4132 = vmatpush1.msra.mxu0 0.0
  %4133 = vmatprep.subr.mxu0 0.0
  %4134 = vmatpush1.msra.mxu0 0.0
  %4135 = vmatprep.subr.mxu0 0.0
  %4136 = vmatpush1.msra.mxu0 0.0
  %4137 = vmatprep.subr.mxu0 0.0
  %4138 = vmatpush1.msra.mxu0 0.0
  %4139 = vmatprep.subr.mxu0 0.0
  %4140 = vmatpush1.msra.mxu0 0.0
  %4141 = vmatprep.subr.mxu0 0.0
  %4142 = vmatpush1.msra.mxu0 0.0
  %4143 = vmatprep.subr.mxu0 0.0
  %4144 = vmatpush1.msra.mxu0 0.0
  %4145 = vmatprep.subr.mxu0 0.0
  %4146 = vmatpush1.msra.mxu0 0.0
  %4147 = vmatprep.subr.mxu0 0.0
  %4148 = vmatpush1.msra.mxu0 0.0
  %4149 = vmatprep.subr.mxu0 0.0
  %4150 = vmatpush1.msra.mxu0 0.0
  %4151 = vmatprep.subr.mxu0 0.0
  %4152 = vmatpush1.msra.mxu0 0.0
  %4153 = vmatprep.mubr.f32.mxu0 0.0
  %4154 = vmatmul.mubr.f32.gmra.mrb[0].mxu0 %v3726
  %v4155 = vpop.f32.mrb[0].mxu0
  %v4156 = vadd.f32 0.0, %v4155
  %v4157 = vpop.f32.mrb[0].mxu0
  %4158 = vdwg.mxu0
  %4159 = vmatprep.subr.mxu0 0.0
  %4160 = vmatpush1.msra.mxu0 %v3649
  %4161 = vmatprep.subr.mxu0 0.0
  %4162 = vmatpush1.msra.mxu0 %v3650
  %4163 = vmatprep.subr.mxu0 0.0
  %4164 = vmatpush1.msra.mxu0 %v3651
  %4165 = vmatprep.subr.mxu0 0.0
  %4166 = vmatpush1.msra.mxu0 %v3652
  %4167 = vmatprep.subr.mxu0 0.0
  %4168 = vmatpush1.msra.mxu0 %v3653
  %4169 = vmatprep.subr.mxu0 0.0
  %4170 = vmatpush1.msra.mxu0 %v3654
  %4171 = vmatprep.subr.mxu0 0.0
  %4172 = vmatpush1.msra.mxu0 %v3655
  %4173 = vmatprep.subr.mxu0 0.0
  %4174 = vmatpush1.msra.mxu0 %v3656
  %4175 = vmatprep.subr.mxu0 0.0
  %4176 = vmatpush1.msra.mxu0 %v3657
  %4177 = vmatprep.subr.mxu0 0.0
  %4178 = vmatpush1.msra.mxu0 %v3658
  %4179 = vmatprep.subr.mxu0 0.0
  %4180 = vmatpush1.msra.mxu0 %v3659
  %4181 = vmatprep.subr.mxu0 0.0
  %4182 = vmatpush1.msra.mxu0 %v3660
  %4183 = vmatprep.subr.mxu0 0.0
  %4184 = vmatpush1.msra.mxu0 %v3661
  %4185 = vmatprep.subr.mxu0 0.0
  %4186 = vmatpush1.msra.mxu0 %v3662
  %4187 = vmatprep.subr.mxu0 0.0
  %4188 = vmatpush1.msra.mxu0 %v3663
  %4189 = vmatprep.subr.mxu0 0.0
  %4190 = vmatpush1.msra.mxu0 %v3664
  %4191 = vmatprep.subr.mxu0 0.0
  %4192 = vmatpush1.msra.mxu0 0.0
  %4193 = vmatprep.subr.mxu0 0.0
  %4194 = vmatpush1.msra.mxu0 0.0
  %4195 = vmatprep.subr.mxu0 0.0
  %4196 = vmatpush1.msra.mxu0 0.0
  %4197 = vmatprep.subr.mxu0 0.0
  %4198 = vmatpush1.msra.mxu0 0.0
  %4199 = vmatprep.subr.mxu0 0.0
  %4200 = vmatpush1.msra.mxu0 0.0
  %4201 = vmatprep.subr.mxu0 0.0
  %4202 = vmatpush1.msra.mxu0 0.0
  %4203 = vmatprep.subr.mxu0 0.0
  %4204 = vmatpush1.msra.mxu0 0.0
  %4205 = vmatprep.subr.mxu0 0.0
  %4206 = vmatpush1.msra.mxu0 0.0
  %4207 = vmatprep.subr.mxu0 0.0
  %4208 = vmatpush1.msra.mxu0 0.0
  %4209 = vmatprep.subr.mxu0 0.0
  %4210 = vmatpush1.msra.mxu0 0.0
  %4211 = vmatprep.subr.mxu0 0.0
  %4212 = vmatpush1.msra.mxu0 0.0
  %4213 = vmatprep.subr.mxu0 0.0
  %4214 = vmatpush1.msra.mxu0 0.0
  %4215 = vmatprep.subr.mxu0 0.0
  %4216 = vmatpush1.msra.mxu0 0.0
  %4217 = vmatprep.subr.mxu0 0.0
  %4218 = vmatpush1.msra.mxu0 0.0
  %4219 = vmatprep.subr.mxu0 0.0
  %4220 = vmatpush1.msra.mxu0 0.0
  %4221 = vmatprep.subr.mxu0 0.0
  %4222 = vmatpush1.msra.mxu0 0.0
  %4223 = vmatprep.mubr.f32.mxu0 0.0
  %4224 = vmatmul.mubr.f32.gmra.mrb[0].mxu0 %v3728
  %v4225 = vpop.f32.mrb[0].mxu0
  %v4226 = vadd.f32 0.0, %v4225
  %v4227 = vpop.f32.mrb[0].mxu0
  %4228 = vdwg.mxu0
  %4229 = vmatprep.subr.mxu0 0.0
  %4230 = vmatpush1.msra.mxu0 %v3665
  %4231 = vmatprep.subr.mxu0 0.0
  %4232 = vmatpush1.msra.mxu0 %v3666
  %4233 = vmatprep.subr.mxu0 0.0
  %4234 = vmatpush1.msra.mxu0 %v3667
  %4235 = vmatprep.subr.mxu0 0.0
  %4236 = vmatpush1.msra.mxu0 %v3668
  %4237 = vmatprep.subr.mxu0 0.0
  %4238 = vmatpush1.msra.mxu0 %v3669
  %4239 = vmatprep.subr.mxu0 0.0
  %4240 = vmatpush1.msra.mxu0 %v3670
  %4241 = vmatprep.subr.mxu0 0.0
  %4242 = vmatpush1.msra.mxu0 %v3671
  %4243 = vmatprep.subr.mxu0 0.0
  %4244 = vmatpush1.msra.mxu0 %v3672
  %4245 = vmatprep.subr.mxu0 0.0
  %4246 = vmatpush1.msra.mxu0 %v3673
  %4247 = vmatprep.subr.mxu0 0.0
  %4248 = vmatpush1.msra.mxu0 %v3674
  %4249 = vmatprep.subr.mxu0 0.0
  %4250 = vmatpush1.msra.mxu0 %v3675
  %4251 = vmatprep.subr.mxu0 0.0
  %4252 = vmatpush1.msra.mxu0 %v3676
  %4253 = vmatprep.subr.mxu0 0.0
  %4254 = vmatpush1.msra.mxu0 %v3677
  %4255 = vmatprep.subr.mxu0 0.0
  %4256 = vmatpush1.msra.mxu0 %v3678
  %4257 = vmatprep.subr.mxu0 0.0
  %4258 = vmatpush1.msra.mxu0 %v3679
  %4259 = vmatprep.subr.mxu0 0.0
  %4260 = vmatpush1.msra.mxu0 %v3680
  %4261 = vmatprep.subr.mxu0 0.0
  %4262 = vmatpush1.msra.mxu0 0.0
  %4263 = vmatprep.subr.mxu0 0.0
  %4264 = vmatpush1.msra.mxu0 0.0
  %4265 = vmatprep.subr.mxu0 0.0
  %4266 = vmatpush1.msra.mxu0 0.0
  %4267 = vmatprep.subr.mxu0 0.0
  %4268 = vmatpush1.msra.mxu0 0.0
  %4269 = vmatprep.subr.mxu0 0.0
  %4270 = vmatpush1.msra.mxu0 0.0
  %4271 = vmatprep.subr.mxu0 0.0
  %4272 = vmatpush1.msra.mxu0 0.0
  %4273 = vmatprep.subr.mxu0 0.0
  %4274 = vmatpush1.msra.mxu0 0.0
  %4275 = vmatprep.subr.mxu0 0.0
  %4276 = vmatpush1.msra.mxu0 0.0
  %4277 = vmatprep.subr.mxu0 0.0
  %4278 = vmatpush1.msra.mxu0 0.0
  %4279 = vmatprep.subr.mxu0 0.0
  %4280 = vmatpush1.msra.mxu0 0.0
  %4281 = vmatprep.subr.mxu0 0.0
  %4282 = vmatpush1.msra.mxu0 0.0
  %4283 = vmatprep.subr.mxu0 0.0
  %4284 = vmatpush1.msra.mxu0 0.0
  %4285 = vmatprep.subr.mxu0 0.0
  %4286 = vmatpush1.msra.mxu0 0.0
  %4287 = vmatprep.subr.mxu0 0.0
  %4288 = vmatpush1.msra.mxu0 0.0
  %4289 = vmatprep.subr.mxu0 0.0
  %4290 = vmatpush1.msra.mxu0 0.0
  %4291 = vmatprep.subr.mxu0 0.0
  %4292 = vmatpush1.msra.mxu0 0.0
  %4293 = vmatprep.mubr.f32.mxu0 0.0
  %4294 = vmatmul.mubr.f32.gmra.mrb[0].mxu0 %v3730
  %v4295 = vpop.f32.mrb[0].mxu0
  %v4296 = vadd.f32 0.0, %v4295
  %v4297 = vpop.f32.mrb[0].mxu0
  %4298 = vdwg.mxu0
  %v4307 = vrot.slane %v3876, 7
  %v4308 = vsel %vm3381, %v4307, %v3806
  %v4309 = vrot.slane %v3946, 6
  %v4310 = vsel %vm3383, %v4309, %v4308
  %v4311 = vrot.slane %v4016, 5
  %v4312 = vsel %vm3385, %v4311, %v4310
  %v4313 = vrot.slane %v4086, 4
  %v4314 = vsel %vm3387, %v4313, %v4312
  %v4315 = vrot.slane %v4156, 3
  %v4316 = vsel %vm3389, %v4315, %v4314
  %v4317 = vrot.slane %v4226, 2
  %v4318 = vsel %vm3391, %v4317, %v4316
  %v4319 = vrot.slane %v4296, 1
  %v4320 = vsel %vm3393, %v4319, %v4318
  %4322 = vst [vmem:[%s9] sm:$0xff] %v4320
  %4323 = vst [vmem:[%s10] sm:$0xff] %v3424
  %4324 = vst [vmem:[%s11] sm:$0xff] %v3412
  // Predicated region
  $region38: #{attention_v2.1} parent=0 // pred_check
    _
  $region39: #{attention_v2.1} parent=0 // pred_check_branch
    %4326 = sbr.rel (0) target = $region41
  $region40: #{attention_v2.1} parent=0 // pred_region
    _
  $region41: #{attention_v2.1} parent=0 // pred_fallthru
    _
  // Predicated region
  $region42: #{attention_v2.1} parent=0 // pred_check
    _
  $region43: #{attention_v2.1} parent=0 // pred_check_branch
    %4328 = sbr.rel (0) target = $region45
  $region44: #{attention_v2.1} parent=0 // pred_region
    _
  $region45: #{attention_v2.1} parent=0 // pred_fallthru
    _
  // Predicated region
  $region46: #{attention_v2.1} parent=0 // pred_check
    _
  $region47: #{attention_v2.1} parent=0 // pred_check_branch
    %4330 = sbr.rel (0) target = $region49
  $region48: #{attention_v2.1} parent=0 // pred_region
    _
  $region49: #{attention_v2.1} parent=0 // pred_fallthru
    _
  // Predicated region
  $region50: #{attention_v2.1} parent=0 // pred_check
    _
  $region51: #{attention_v2.1} parent=0 // pred_check_branch
    %4332 = sbr.rel (0) target = $region53
  $region52: #{attention_v2.1} parent=0 // pred_region
    _
  $region53: #{attention_v2.1} parent=0 // pred_fallthru
    _
  // Predicated region
  $region54: #{attention_v2.1} parent=0 // pred_check
    _
  $region55: #{attention_v2.1} parent=0 // pred_check_branch
    %4334 = sbr.rel (0) target = $region57
  $region56: #{attention_v2.1} parent=0 // pred_region
    _
  $region57: #{attention_v2.1} parent=0 // pred_fallthru
    _
  // Predicated region
  $region58: #{attention_v2.1} parent=0 // pred_check
    _
  $region59: #{attention_v2.1} parent=0 // pred_check_branch
    %4336 = sbr.rel (0) target = $region61
  $region60: #{attention_v2.1} parent=0 // pred_region
    _
  $region61: #{attention_v2.1} parent=0 // pred_fallthru
    _

</llo_original>
